<compile_context>
chip_gen: v5e
topology: v5e:2x2
jax: 0.10.0
libtpu: 0.0.40
codegen_flags: <defaults>
</compile_context>

<pallas_src>
import functools

import numpy as np
import jax
import jax.numpy as jnp
from jax.experimental import pallas as pl
from jax.experimental.pallas import tpu as pltpu


def _interp_matrix(out_size: int, in_size: int) -> np.ndarray:
    """1-D bilinear interpolation matrix, PyTorch align_corners=True semantics."""
    if in_size == 1:
        return np.ones((out_size, 1), np.float32)
    coords = np.arange(out_size, dtype=np.float64) * (in_size - 1) / (out_size - 1)
    lo = np.floor(coords).astype(np.int64)
    hi = np.minimum(lo + 1, in_size - 1)
    frac = coords - lo
    M = np.zeros((out_size, in_size), np.float64)
    M[np.arange(out_size), lo] += 1.0 - frac
    M[np.arange(out_size), hi] += frac
    return M.astype(np.float32)


def _fuse_kernel(xup_ref, en_ref, wpre_ref, w9_ref, bnb_ref, o_ref, *,
                 H2: int, W2: int):
    """One block of B images per grid step; all activations are (rows, C)."""
    B, P2, Cd = o_ref.shape
    Cin = en_ref.shape[-1]
    R = B * P2

    # --- pre_conv: 1x1 conv on `en` == channel matmul (softmax w[0] folded
    #     into wpre).  bf16 operands, f32 accumulation.
    en = en_ref[...].reshape(R, Cin)
    pre = jnp.dot(en, wpre_ref[...], preferred_element_type=jnp.float32)

    # --- fusion add in f32 (x_up already carries softmax w[1]).
    fused = pre + xup_ref[...].reshape(R, Cd).astype(jnp.float32)     # (R, Cd)

    # --- border masks for 'same' padding, hoisted out of the 9-tap loop.
    p = jax.lax.broadcasted_iota(jnp.int32, (H2, W2, 1), 0).reshape(P2, 1)
    q = jax.lax.broadcasted_iota(jnp.int32, (H2, W2, 1), 1).reshape(P2, 1)
    if B > 1:
        p = jnp.broadcast_to(p[None], (B, P2, 1)).reshape(R, 1)
        q = jnp.broadcast_to(q[None], (B, P2, 1)).reshape(R, 1)
    not_top, not_bot = p >= 1, p < H2 - 1
    not_left, not_right = q >= 1, q < W2 - 1

    def tap_mask(dy, dx):
        m = None
        if dy == -1:
            m = not_top
        elif dy == 1:
            m = not_bot
        if dx == -1:
            m = not_left if m is None else m & not_left
        elif dx == 1:
            m = not_right if m is None else m & not_right
        return m

    # --- 3x3 'same' conv (BN scale folded into w9) as 9 accumulated K=Cd
    #     matmuls over rolled + masked taps.  The masks also kill any
    #     cross-image / wrap-around contamination from the flat roll.
    acc = None
    t = 0
    for dy in (-1, 0, 1):
        for dx in (-1, 0, 1):
            s = dy * W2 + dx                       # flat-index shift of the tap
            tap = fused if s == 0 else jnp.roll(fused, -s, axis=0)
            m = tap_mask(dy, dx)
            if m is not None:
                tap = jnp.where(m, tap, 0.0)       # zero padding at the border
            contrib = jnp.dot(tap.astype(jnp.bfloat16), w9_ref[t],
                              preferred_element_type=jnp.float32)
            acc = contrib if acc is None else acc + contrib
            t += 1

    # --- BN bias + ReLU (f32 elementwise), dense lane-wide output store.
    out = jnp.maximum(acc + bnb_ref[...], 0.0)
    o_ref[...] = out.reshape(B, P2, Cd).astype(o_ref.dtype)


def _pick_images_per_step(n: int) -> int:
    # Batch images per grid step so every matmul has M = B*P2 rows (amortizes
    # ~0.35 us/step on v5e/v6e); keep the grid >= 2 steps when possible so
    # v7x's two TensorCores both get work.
    for b in (4, 3, 2):
        if n % b == 0 and n // b >= 2:
            return b
    return 2 if n % 2 == 0 else 1


def _vmem_limit_bytes() -> int:
    # v5e/v6e have 128 MiB of physical VMEM, v7x only 64 MiB: take ~75% of the
    # chip's capacity, capped at 100 MB and floored at the 32 MB scoped default.
    try:
        cap = int(pltpu.get_tpu_info().vmem_capacity_bytes)
    except Exception:
        cap = 64 * 1024 * 1024
    return int(min(100 * 1024 * 1024, max(32 * 1024 * 1024, (cap * 3) // 4)))


@jax.jit
def fuse_forward(x_nchw, en_nchw, params):
    N, Cd, H, W = x_nchw.shape
    _, Cin, H2, W2 = en_nchw.shape
    assert H2 == 2 * H and W2 == 2 * W
    P2 = H2 * W2

    w_sm = jax.nn.softmax(params['weight'])

    # NCHW -> pixel-major channels-last.
    # TODO(synk): keep activations channels-last through the surrounding model;
    # at real resolutions these XLA transposes move as many HBM bytes as the
    # kernel itself.
    en = jnp.transpose(en_nchw, (0, 2, 3, 1)).reshape(N, P2, Cin).astype(jnp.bfloat16)

    # Separable bilinear 2x upsample (align_corners=True): Ah over rows then Aw
    # over cols -- O(HW*(H+W)) work instead of the quadratic kron(Ah, Aw)
    # matrix, which at real EGENet resolutions no longer fits v7x's 64 MiB
    # VMEM.  softmax w[1] is folded in here.
    # TODO(synk): move these two small einsums in-kernel (batched matmuls over
    # a row-tiled grid) if the x_up HBM round-trip ever shows up in profiles.
    x_f32 = jnp.transpose(x_nchw, (0, 2, 3, 1)).astype(jnp.float32)   # (N,H,W,Cd)
    x_up = jnp.einsum('ph,nhwc->npwc', params['ah'], x_f32)
    x_up = jnp.einsum('qw,npwc->npqc', params['aw'], x_up)
    x_up = (x_up * w_sm[1]).reshape(N, P2, Cd).astype(jnp.bfloat16)

    # Fold softmax w[0] into the 1x1 conv and the BN scale into the 3x3 conv;
    # only the BN bias add + ReLU stay elementwise in the kernel.
    wpre = (jnp.transpose(params['pre_w'][:, :, 0, 0], (1, 0))
            * w_sm[0]).astype(jnp.bfloat16)                           # (Cin, Cd)
    eps = 1e-5
    scale = params['bn_gamma'] / jnp.sqrt(params['bn_var'] + eps)
    bias = params['bn_beta'] - params['bn_mean'] * scale
    # TODO(synk): training-mode batch statistics of BatchNorm2d are not
    # reproduced (eval-mode running stats are folded into the conv weights).
    w9 = (jnp.transpose(params['post_w'], (2, 3, 1, 0)).reshape(9, Cd, Cd)
          * scale[None, None, :]).astype(jnp.bfloat16)                # (9, Cd, Cd)
    bnb = bias.reshape(1, Cd).astype(jnp.float32)

    B = _pick_images_per_step(N)
    kernel = functools.partial(_fuse_kernel, H2=H2, W2=W2)

    # One block of B images per grid step.  For large EGENet resolutions this
    # grid would additionally be tiled over H2 row blocks with a 1-row halo on
    # en / x_up (sized so 2x the per-block inputs plus the resident weights
    # stay under ~48 MB for v7x's 64 MiB VMEM) to restore DMA/compute
    # pipelining and keep both v7x TensorCores busy.
    out = pl.pallas_call(
        kernel,
        out_shape=jax.ShapeDtypeStruct((N, P2, Cd), jnp.float32),
        grid=(N // B,),
        in_specs=[
            pl.BlockSpec((B, P2, Cd), lambda n: (n, 0, 0)),    # x_up  (bf16)
            pl.BlockSpec((B, P2, Cin), lambda n: (n, 0, 0)),   # en    (bf16)
            # Grid-invariant weights: single-buffered, DMA'd once.
            pl.BlockSpec((Cin, Cd), lambda n: (0, 0),
                         pipeline_mode=pl.Buffered(1)),        # 1x1 w * softmax
            pl.BlockSpec((9, Cd, Cd), lambda n: (0, 0, 0),
                         pipeline_mode=pl.Buffered(1)),        # 3x3 w * bn scale
            pl.BlockSpec((1, Cd), lambda n: (0, 0),
                         pipeline_mode=pl.Buffered(1)),        # bn bias
        ],
        out_specs=pl.BlockSpec((B, P2, Cd), lambda n: (n, 0, 0)),
        compiler_params=pltpu.CompilerParams(
            dimension_semantics=("parallel",),
            vmem_limit_bytes=_vmem_limit_bytes()),
    )(x_up, en, wpre, w9, bnb)

    # back to NCHW
    return jnp.transpose(out.reshape(N, H2, W2, Cd), (0, 3, 1, 2))


def ref_forward(x_nchw, en_nchw, params):
    """Pure-JAX f32 reference of Fuse.forward (same align_corners=True matrices)."""
    ah, aw = params['ah'], params['aw']
    w_sm = jax.nn.softmax(params['weight'])
    x_up = jnp.einsum('ph,nchw->ncpw', ah, x_nchw)
    x_up = jnp.einsum('qw,ncpw->ncpq', aw, x_up)
    pre = jnp.einsum('oi,nihw->nohw', params['pre_w'][:, :, 0, 0], en_nchw)
    fused = pre * w_sm[0] + x_up * w_sm[1]
    conv = jax.lax.conv_general_dilated(
        fused, params['post_w'], window_strides=(1, 1), padding='SAME',
        dimension_numbers=('NCHW', 'OIHW', 'NCHW'))
    eps = 1e-5
    scale = params['bn_gamma'] / jnp.sqrt(params['bn_var'] + eps)
    bias = params['bn_beta'] - params['bn_mean'] * scale
    out = conv * scale[None, :, None, None] + bias[None, :, None, None]
    return jnp.maximum(out, 0.0)


if __name__ == "__main__":
    key = jax.random.PRNGKey(0)
    # Module defaults: in_channels=128, decode_channels=128; small spatial size.
    N, Cin, Cd = 2, 128, 128
    H, W = 8, 8                    # low-res spatial of x; en is (2H, 2W)
    H2, W2 = 2 * H, 2 * W
    ks = jax.random.split(key, 8)

    x = jax.random.normal(ks[0], (N, Cd, H, W), jnp.float32)       # decoder feature
    en = jax.random.normal(ks[1], (N, Cin, H2, W2), jnp.float32)   # encoder feature

    params = dict(
        weight=jnp.ones((2,), jnp.float32),                        # nn.Parameter(torch.ones(2))
        pre_w=0.1 * jax.random.normal(ks[2], (Cd, Cin, 1, 1), jnp.float32),
        post_w=0.05 * jax.random.normal(ks[3], (Cd, Cd, 3, 3), jnp.float32),
        bn_gamma=1.0 + 0.1 * jax.random.normal(ks[4], (Cd,), jnp.float32),
        bn_beta=0.1 * jax.random.normal(ks[5], (Cd,), jnp.float32),
        bn_mean=0.1 * jax.random.normal(ks[6], (Cd,), jnp.float32),
        bn_var=jnp.abs(jax.random.normal(ks[7], (Cd,), jnp.float32)) + 0.5,
        ah=jnp.asarray(_interp_matrix(H2, H)),
        aw=jnp.asarray(_interp_matrix(W2, W)),
    )

    out = jax.block_until_ready(fuse_forward(x, en, params))
    assert out.shape == (N, Cd, H2, W2)
    ref = ref_forward(x, en, params)

    out_np, ref_np = np.asarray(out), np.asarray(ref)
    err = np.abs(out_np - ref_np)
    # Error budget: bf16 operands with K up to 9*Cd = 1152 f32-accumulated MACs
    # plus an upstream bf16 1x1-conv/upsample, scaled by BN factors up to ~2
    # => worst-element |err| ~ 3-4e-2 while the mean error stays in the 1e-3s.
    np.testing.assert_allclose(out_np, ref_np, rtol=2e-2, atol=5e-2)
    assert float(err.mean()) < 1e-2
    print("KERNEL_OK")
</pallas_src>

<mosaic_0001>
module attributes {stable_mosaic.version = 11 : i64} {
  func.func @_fuse_kernel(%arg0: i32, %arg1: memref<2x256x128xbf16, #tpu.memory_space<vmem>>, %arg2: memref<2x256x128xbf16, #tpu.memory_space<vmem>>, %arg3: memref<128x128xbf16, #tpu.memory_space<vmem>>, %arg4: memref<9x128x128xbf16, #tpu.memory_space<vmem>>, %arg5: memref<1x128xf32, #tpu.memory_space<vmem>>, %arg6: memref<2x256x128xf32, #tpu.memory_space<vmem>>) attributes {dimension_semantics = [#tpu.dimension_semantics<parallel>], iteration_bounds = array<i64: 1>, scalar_prefetch = 0 : i64, scratch_operands = 0 : i64, tpu.core_type = #tpu.core_type<tc>, window_params = [{transform_indices = @transform_0, window_bounds = array<i64: 2, 256, 128>}, {transform_indices = @transform_1, window_bounds = array<i64: 2, 256, 128>}, {pipeline_mode = #tpu.pipeline_mode<synchronous>, transform_indices = @transform_2, window_bounds = array<i64: 128, 128>}, {pipeline_mode = #tpu.pipeline_mode<synchronous>, transform_indices = @transform_3, window_bounds = array<i64: 9, 128, 128>}, {pipeline_mode = #tpu.pipeline_mode<synchronous>, transform_indices = @transform_4, window_bounds = array<i64: 1, 128>}, {transform_indices = @transform_5, window_bounds = array<i64: 2, 256, 128>}]} {
    %c0 = arith.constant 0 : index
    %c0_0 = arith.constant 0 : index
    %c0_1 = arith.constant 0 : index
    %0 = vector.load %arg2[%c0, %c0_0, %c0_1] : memref<2x256x128xbf16, #tpu.memory_space<vmem>>, vector<2x256x128xbf16>
    %1 = vector.shape_cast %0 : vector<2x256x128xbf16> to vector<512x128xbf16>
    %c0_2 = arith.constant 0 : index
    %c0_3 = arith.constant 0 : index
    %2 = vector.load %arg3[%c0_2, %c0_3] : memref<128x128xbf16, #tpu.memory_space<vmem>>, vector<128x128xbf16>
    %cst = arith.constant dense<0.000000e+00> : vector<512x128xf32>
    %3 = tpu.matmul %1, %2, %cst {dimension_numbers = #tpu.dot_dimension_numbers<[1], [0], [0], [1], [0, 0, 1, 1], [], []>} : vector<512x128xbf16>, vector<128x128xbf16>, vector<512x128xf32> -> vector<512x128xf32>
    %c0_4 = arith.constant 0 : index
    %c0_5 = arith.constant 0 : index
    %c0_6 = arith.constant 0 : index
    %4 = vector.load %arg1[%c0_4, %c0_5, %c0_6] : memref<2x256x128xbf16, #tpu.memory_space<vmem>>, vector<2x256x128xbf16>
    %5 = vector.shape_cast %4 : vector<2x256x128xbf16> to vector<512x128xbf16>
    %6 = arith.extf %5 : vector<512x128xbf16> to vector<512x128xf32>
    %7 = arith.addf %3, %6 : vector<512x128xf32>
    %8 = tpu.iota {dimensions = array<i32: 0>} : vector<16x16x1xi32>
    %9 = vector.shape_cast %8 : vector<16x16x1xi32> to vector<256x1xi32>
    %10 = tpu.iota {dimensions = array<i32: 1>} : vector<16x16x1xi32>
    %11 = vector.shape_cast %10 : vector<16x16x1xi32> to vector<256x1xi32>
    %12 = vector.shape_cast %9 : vector<256x1xi32> to vector<1x256x1xi32>
    %13 = vector.shape_cast %12 : vector<1x256x1xi32> to vector<1x256x1xi32>
    %14 = vector.broadcast %13 : vector<1x256x1xi32> to vector<2x256x1xi32>
    %15 = vector.shape_cast %14 : vector<2x256x1xi32> to vector<512x1xi32>
    %16 = vector.shape_cast %11 : vector<256x1xi32> to vector<1x256x1xi32>
    %17 = vector.shape_cast %16 : vector<1x256x1xi32> to vector<1x256x1xi32>
    %18 = vector.broadcast %17 : vector<1x256x1xi32> to vector<2x256x1xi32>
    %19 = vector.shape_cast %18 : vector<2x256x1xi32> to vector<512x1xi32>
    %c1_i32 = arith.constant 1 : i32
    %20 = vector.broadcast %c1_i32 : i32 to vector<512x1xi32>
    %21 = arith.cmpi sge, %15, %20 : vector<512x1xi32>
    %c15_i32 = arith.constant 15 : i32
    %22 = vector.broadcast %c15_i32 : i32 to vector<512x1xi32>
    %23 = arith.cmpi slt, %15, %22 : vector<512x1xi32>
    %c1_i32_7 = arith.constant 1 : i32
    %24 = vector.broadcast %c1_i32_7 : i32 to vector<512x1xi32>
    %25 = arith.cmpi sge, %19, %24 : vector<512x1xi32>
    %c15_i32_8 = arith.constant 15 : i32
    %26 = vector.broadcast %c15_i32_8 : i32 to vector<512x1xi32>
    %27 = arith.cmpi slt, %19, %26 : vector<512x1xi32>
    %28 = vector.extract_strided_slice %7 {offsets = [495, 0], sizes = [17, 128], strides = [1, 1]} : vector<512x128xf32> to vector<17x128xf32>
    %29 = vector.extract_strided_slice %7 {offsets = [0, 0], sizes = [495, 128], strides = [1, 1]} : vector<512x128xf32> to vector<495x128xf32>
    %30 = tpu.concatenate %28, %29 in 0 : vector<17x128xf32>, vector<495x128xf32> -> vector<512x128xf32>
    %31 = arith.andi %21, %25 : vector<512x1xi1>
    %cst_9 = arith.constant 0.000000e+00 : f32
    %32 = vector.shape_cast %31 : vector<512x1xi1> to vector<512x1xi1>
    %33 = vector.broadcast %32 : vector<512x1xi1> to vector<512x128xi1>
    %34 = vector.broadcast %cst_9 : f32 to vector<512x128xf32>
    %35 = arith.select %33, %30, %34 : vector<512x128xi1>, vector<512x128xf32>
    %36 = arith.truncf %35 : vector<512x128xf32> to vector<512x128xbf16>
    %c0_10 = arith.constant 0 : index
    %c0_11 = arith.constant 0 : index
    %c0_12 = arith.constant 0 : index
    %37 = vector.load %arg4[%c0_10, %c0_11, %c0_12] : memref<9x128x128xbf16, #tpu.memory_space<vmem>>, vector<1x128x128xbf16>
    %38 = vector.shape_cast %37 : vector<1x128x128xbf16> to vector<128x128xbf16>
    %cst_13 = arith.constant dense<0.000000e+00> : vector<512x128xf32>
    %39 = tpu.matmul %36, %38, %cst_13 {dimension_numbers = #tpu.dot_dimension_numbers<[1], [0], [0], [1], [0, 0, 1, 1], [], []>} : vector<512x128xbf16>, vector<128x128xbf16>, vector<512x128xf32> -> vector<512x128xf32>
    %40 = vector.extract_strided_slice %7 {offsets = [496, 0], sizes = [16, 128], strides = [1, 1]} : vector<512x128xf32> to vector<16x128xf32>
    %41 = vector.extract_strided_slice %7 {offsets = [0, 0], sizes = [496, 128], strides = [1, 1]} : vector<512x128xf32> to vector<496x128xf32>
    %42 = tpu.concatenate %40, %41 in 0 : vector<16x128xf32>, vector<496x128xf32> -> vector<512x128xf32>
    %cst_14 = arith.constant 0.000000e+00 : f32
    %43 = vector.shape_cast %21 : vector<512x1xi1> to vector<512x1xi1>
    %44 = vector.broadcast %43 : vector<512x1xi1> to vector<512x128xi1>
    %45 = vector.broadcast %cst_14 : f32 to vector<512x128xf32>
    %46 = arith.select %44, %42, %45 : vector<512x128xi1>, vector<512x128xf32>
    %47 = arith.truncf %46 : vector<512x128xf32> to vector<512x128xbf16>
    %c1 = arith.constant 1 : index
    %c0_15 = arith.constant 0 : index
    %c0_16 = arith.constant 0 : index
    %48 = vector.load %arg4[%c1, %c0_15, %c0_16] : memref<9x128x128xbf16, #tpu.memory_space<vmem>>, vector<1x128x128xbf16>
    %49 = vector.shape_cast %48 : vector<1x128x128xbf16> to vector<128x128xbf16>
    %cst_17 = arith.constant dense<0.000000e+00> : vector<512x128xf32>
    %50 = tpu.matmul %47, %49, %cst_17 {dimension_numbers = #tpu.dot_dimension_numbers<[1], [0], [0], [1], [0, 0, 1, 1], [], []>} : vector<512x128xbf16>, vector<128x128xbf16>, vector<512x128xf32> -> vector<512x128xf32>
    %51 = arith.addf %39, %50 : vector<512x128xf32>
    %52 = vector.extract_strided_slice %7 {offsets = [497, 0], sizes = [15, 128], strides = [1, 1]} : vector<512x128xf32> to vector<15x128xf32>
    %53 = vector.extract_strided_slice %7 {offsets = [0, 0], sizes = [497, 128], strides = [1, 1]} : vector<512x128xf32> to vector<497x128xf32>
    %54 = tpu.concatenate %52, %53 in 0 : vector<15x128xf32>, vector<497x128xf32> -> vector<512x128xf32>
    %55 = arith.andi %21, %27 : vector<512x1xi1>
    %cst_18 = arith.constant 0.000000e+00 : f32
    %56 = vector.shape_cast %55 : vector<512x1xi1> to vector<512x1xi1>
    %57 = vector.broadcast %56 : vector<512x1xi1> to vector<512x128xi1>
    %58 = vector.broadcast %cst_18 : f32 to vector<512x128xf32>
    %59 = arith.select %57, %54, %58 : vector<512x128xi1>, vector<512x128xf32>
    %60 = arith.truncf %59 : vector<512x128xf32> to vector<512x128xbf16>
    %c2 = arith.constant 2 : index
    %c0_19 = arith.constant 0 : index
    %c0_20 = arith.constant 0 : index
    %61 = vector.load %arg4[%c2, %c0_19, %c0_20] : memref<9x128x128xbf16, #tpu.memory_space<vmem>>, vector<1x128x128xbf16>
    %62 = vector.shape_cast %61 : vector<1x128x128xbf16> to vector<128x128xbf16>
    %cst_21 = arith.constant dense<0.000000e+00> : vector<512x128xf32>
    %63 = tpu.matmul %60, %62, %cst_21 {dimension_numbers = #tpu.dot_dimension_numbers<[1], [0], [0], [1], [0, 0, 1, 1], [], []>} : vector<512x128xbf16>, vector<128x128xbf16>, vector<512x128xf32> -> vector<512x128xf32>
    %64 = arith.addf %51, %63 : vector<512x128xf32>
    %65 = vector.extract_strided_slice %7 {offsets = [511, 0], sizes = [1, 128], strides = [1, 1]} : vector<512x128xf32> to vector<1x128xf32>
    %66 = vector.extract_strided_slice %7 {offsets = [0, 0], sizes = [511, 128], strides = [1, 1]} : vector<512x128xf32> to vector<511x128xf32>
    %67 = tpu.concatenate %65, %66 in 0 : vector<1x128xf32>, vector<511x128xf32> -> vector<512x128xf32>
    %cst_22 = arith.constant 0.000000e+00 : f32
    %68 = vector.shape_cast %25 : vector<512x1xi1> to vector<512x1xi1>
    %69 = vector.broadcast %68 : vector<512x1xi1> to vector<512x128xi1>
    %70 = vector.broadcast %cst_22 : f32 to vector<512x128xf32>
    %71 = arith.select %69, %67, %70 : vector<512x128xi1>, vector<512x128xf32>
    %72 = arith.truncf %71 : vector<512x128xf32> to vector<512x128xbf16>
    %c3 = arith.constant 3 : index
    %c0_23 = arith.constant 0 : index
    %c0_24 = arith.constant 0 : index
    %73 = vector.load %arg4[%c3, %c0_23, %c0_24] : memref<9x128x128xbf16, #tpu.memory_space<vmem>>, vector<1x128x128xbf16>
    %74 = vector.shape_cast %73 : vector<1x128x128xbf16> to vector<128x128xbf16>
    %cst_25 = arith.constant dense<0.000000e+00> : vector<512x128xf32>
    %75 = tpu.matmul %72, %74, %cst_25 {dimension_numbers = #tpu.dot_dimension_numbers<[1], [0], [0], [1], [0, 0, 1, 1], [], []>} : vector<512x128xbf16>, vector<128x128xbf16>, vector<512x128xf32> -> vector<512x128xf32>
    %76 = arith.addf %64, %75 : vector<512x128xf32>
    %77 = arith.truncf %7 : vector<512x128xf32> to vector<512x128xbf16>
    %c4 = arith.constant 4 : index
    %c0_26 = arith.constant 0 : index
    %c0_27 = arith.constant 0 : index
    %78 = vector.load %arg4[%c4, %c0_26, %c0_27] : memref<9x128x128xbf16, #tpu.memory_space<vmem>>, vector<1x128x128xbf16>
    %79 = vector.shape_cast %78 : vector<1x128x128xbf16> to vector<128x128xbf16>
    %cst_28 = arith.constant dense<0.000000e+00> : vector<512x128xf32>
    %80 = tpu.matmul %77, %79, %cst_28 {dimension_numbers = #tpu.dot_dimension_numbers<[1], [0], [0], [1], [0, 0, 1, 1], [], []>} : vector<512x128xbf16>, vector<128x128xbf16>, vector<512x128xf32> -> vector<512x128xf32>
    %81 = arith.addf %76, %80 : vector<512x128xf32>
    %82 = vector.extract_strided_slice %7 {offsets = [1, 0], sizes = [511, 128], strides = [1, 1]} : vector<512x128xf32> to vector<511x128xf32>
    %83 = vector.extract_strided_slice %7 {offsets = [0, 0], sizes = [1, 128], strides = [1, 1]} : vector<512x128xf32> to vector<1x128xf32>
    %84 = tpu.concatenate %82, %83 in 0 : vector<511x128xf32>, vector<1x128xf32> -> vector<512x128xf32>
    %cst_29 = arith.constant 0.000000e+00 : f32
    %85 = vector.shape_cast %27 : vector<512x1xi1> to vector<512x1xi1>
    %86 = vector.broadcast %85 : vector<512x1xi1> to vector<512x128xi1>
    %87 = vector.broadcast %cst_29 : f32 to vector<512x128xf32>
    %88 = arith.select %86, %84, %87 : vector<512x128xi1>, vector<512x128xf32>
    %89 = arith.truncf %88 : vector<512x128xf32> to vector<512x128xbf16>
    %c5 = arith.constant 5 : index
    %c0_30 = arith.constant 0 : index
    %c0_31 = arith.constant 0 : index
    %90 = vector.load %arg4[%c5, %c0_30, %c0_31] : memref<9x128x128xbf16, #tpu.memory_space<vmem>>, vector<1x128x128xbf16>
    %91 = vector.shape_cast %90 : vector<1x128x128xbf16> to vector<128x128xbf16>
    %cst_32 = arith.constant dense<0.000000e+00> : vector<512x128xf32>
    %92 = tpu.matmul %89, %91, %cst_32 {dimension_numbers = #tpu.dot_dimension_numbers<[1], [0], [0], [1], [0, 0, 1, 1], [], []>} : vector<512x128xbf16>, vector<128x128xbf16>, vector<512x128xf32> -> vector<512x128xf32>
    %93 = arith.addf %81, %92 : vector<512x128xf32>
    %94 = vector.extract_strided_slice %7 {offsets = [15, 0], sizes = [497, 128], strides = [1, 1]} : vector<512x128xf32> to vector<497x128xf32>
    %95 = vector.extract_strided_slice %7 {offsets = [0, 0], sizes = [15, 128], strides = [1, 1]} : vector<512x128xf32> to vector<15x128xf32>
    %96 = tpu.concatenate %94, %95 in 0 : vector<497x128xf32>, vector<15x128xf32> -> vector<512x128xf32>
    %97 = arith.andi %23, %25 : vector<512x1xi1>
    %cst_33 = arith.constant 0.000000e+00 : f32
    %98 = vector.shape_cast %97 : vector<512x1xi1> to vector<512x1xi1>
    %99 = vector.broadcast %98 : vector<512x1xi1> to vector<512x128xi1>
    %100 = vector.broadcast %cst_33 : f32 to vector<512x128xf32>
    %101 = arith.select %99, %96, %100 : vector<512x128xi1>, vector<512x128xf32>
    %102 = arith.truncf %101 : vector<512x128xf32> to vector<512x128xbf16>
    %c6 = arith.constant 6 : index
    %c0_34 = arith.constant 0 : index
    %c0_35 = arith.constant 0 : index
    %103 = vector.load %arg4[%c6, %c0_34, %c0_35] : memref<9x128x128xbf16, #tpu.memory_space<vmem>>, vector<1x128x128xbf16>
    %104 = vector.shape_cast %103 : vector<1x128x128xbf16> to vector<128x128xbf16>
    %cst_36 = arith.constant dense<0.000000e+00> : vector<512x128xf32>
    %105 = tpu.matmul %102, %104, %cst_36 {dimension_numbers = #tpu.dot_dimension_numbers<[1], [0], [0], [1], [0, 0, 1, 1], [], []>} : vector<512x128xbf16>, vector<128x128xbf16>, vector<512x128xf32> -> vector<512x128xf32>
    %106 = arith.addf %93, %105 : vector<512x128xf32>
    %107 = vector.extract_strided_slice %7 {offsets = [16, 0], sizes = [496, 128], strides = [1, 1]} : vector<512x128xf32> to vector<496x128xf32>
    %108 = vector.extract_strided_slice %7 {offsets = [0, 0], sizes = [16, 128], strides = [1, 1]} : vector<512x128xf32> to vector<16x128xf32>
    %109 = tpu.concatenate %107, %108 in 0 : vector<496x128xf32>, vector<16x128xf32> -> vector<512x128xf32>
    %cst_37 = arith.constant 0.000000e+00 : f32
    %110 = vector.shape_cast %23 : vector<512x1xi1> to vector<512x1xi1>
    %111 = vector.broadcast %110 : vector<512x1xi1> to vector<512x128xi1>
    %112 = vector.broadcast %cst_37 : f32 to vector<512x128xf32>
    %113 = arith.select %111, %109, %112 : vector<512x128xi1>, vector<512x128xf32>
    %114 = arith.truncf %113 : vector<512x128xf32> to vector<512x128xbf16>
    %c7 = arith.constant 7 : index
    %c0_38 = arith.constant 0 : index
    %c0_39 = arith.constant 0 : index
    %115 = vector.load %arg4[%c7, %c0_38, %c0_39] : memref<9x128x128xbf16, #tpu.memory_space<vmem>>, vector<1x128x128xbf16>
    %116 = vector.shape_cast %115 : vector<1x128x128xbf16> to vector<128x128xbf16>
    %cst_40 = arith.constant dense<0.000000e+00> : vector<512x128xf32>
    %117 = tpu.matmul %114, %116, %cst_40 {dimension_numbers = #tpu.dot_dimension_numbers<[1], [0], [0], [1], [0, 0, 1, 1], [], []>} : vector<512x128xbf16>, vector<128x128xbf16>, vector<512x128xf32> -> vector<512x128xf32>
    %118 = arith.addf %106, %117 : vector<512x128xf32>
    %119 = vector.extract_strided_slice %7 {offsets = [17, 0], sizes = [495, 128], strides = [1, 1]} : vector<512x128xf32> to vector<495x128xf32>
    %120 = vector.extract_strided_slice %7 {offsets = [0, 0], sizes = [17, 128], strides = [1, 1]} : vector<512x128xf32> to vector<17x128xf32>
    %121 = tpu.concatenate %119, %120 in 0 : vector<495x128xf32>, vector<17x128xf32> -> vector<512x128xf32>
    %122 = arith.andi %23, %27 : vector<512x1xi1>
    %cst_41 = arith.constant 0.000000e+00 : f32
    %123 = vector.shape_cast %122 : vector<512x1xi1> to vector<512x1xi1>
    %124 = vector.broadcast %123 : vector<512x1xi1> to vector<512x128xi1>
    %125 = vector.broadcast %cst_41 : f32 to vector<512x128xf32>
    %126 = arith.select %124, %121, %125 : vector<512x128xi1>, vector<512x128xf32>
    %127 = arith.truncf %126 : vector<512x128xf32> to vector<512x128xbf16>
    %c8 = arith.constant 8 : index
    %c0_42 = arith.constant 0 : index
    %c0_43 = arith.constant 0 : index
    %128 = vector.load %arg4[%c8, %c0_42, %c0_43] : memref<9x128x128xbf16, #tpu.memory_space<vmem>>, vector<1x128x128xbf16>
    %129 = vector.shape_cast %128 : vector<1x128x128xbf16> to vector<128x128xbf16>
    %cst_44 = arith.constant dense<0.000000e+00> : vector<512x128xf32>
    %130 = tpu.matmul %127, %129, %cst_44 {dimension_numbers = #tpu.dot_dimension_numbers<[1], [0], [0], [1], [0, 0, 1, 1], [], []>} : vector<512x128xbf16>, vector<128x128xbf16>, vector<512x128xf32> -> vector<512x128xf32>
    %131 = arith.addf %118, %130 : vector<512x128xf32>
    %c0_45 = arith.constant 0 : index
    %c0_46 = arith.constant 0 : index
    %132 = vector.load %arg5[%c0_45, %c0_46] : memref<1x128xf32, #tpu.memory_space<vmem>>, vector<1x128xf32>
    %133 = vector.broadcast %132 : vector<1x128xf32> to vector<512x128xf32>
    %134 = arith.addf %131, %133 : vector<512x128xf32>
    %cst_47 = arith.constant 0.000000e+00 : f32
    %135 = vector.broadcast %cst_47 : f32 to vector<512x128xf32>
    %136 = arith.maximumf %134, %135 : vector<512x128xf32>
    %137 = vector.shape_cast %136 : vector<512x128xf32> to vector<2x256x128xf32>
    %c0_48 = arith.constant 0 : index
    %c0_49 = arith.constant 0 : index
    %c0_50 = arith.constant 0 : index
    %138 = vector.load %arg6[%c0_48, %c0_49, %c0_50] : memref<2x256x128xf32, #tpu.memory_space<vmem>>, vector<2x256x128xf32>
    tpu.vector_store %arg6[%c0_48, %c0_49, %c0_50], %137 {strides = array<i32>} : memref<2x256x128xf32, #tpu.memory_space<vmem>>, vector<2x256x128xf32>,
    return
  }
  func.func @transform_0(%arg0: i32) -> (i32, i32, i32) {
    %c0_i32 = arith.constant 0 : i32
    %c0_i32_0 = arith.constant 0 : i32
    %c0_i32_1 = arith.constant 0 : i32
    return %arg0, %c0_i32, %c0_i32_0 : i32, i32, i32
  }
  func.func @transform_1(%arg0: i32) -> (i32, i32, i32) {
    %c0_i32 = arith.constant 0 : i32
    %c0_i32_0 = arith.constant 0 : i32
    %c0_i32_1 = arith.constant 0 : i32
    return %arg0, %c0_i32, %c0_i32_0 : i32, i32, i32
  }
  func.func @transform_2(%arg0: i32) -> (i32, i32) {
    %c0_i32 = arith.constant 0 : i32
    %c0_i32_0 = arith.constant 0 : i32
    %c0_i32_1 = arith.constant 0 : i32
    return %c0_i32, %c0_i32_0 : i32, i32
  }
  func.func @transform_3(%arg0: i32) -> (i32, i32, i32) {
    %c0_i32 = arith.constant 0 : i32
    %c0_i32_0 = arith.constant 0 : i32
    %c0_i32_1 = arith.constant 0 : i32
    %c0_i32_2 = arith.constant 0 : i32
    return %c0_i32, %c0_i32_0, %c0_i32_1 : i32, i32, i32
  }
  func.func @transform_4(%arg0: i32) -> (i32, i32) {
    %c0_i32 = arith.constant 0 : i32
    %c0_i32_0 = arith.constant 0 : i32
    %c0_i32_1 = arith.constant 0 : i32
    return %c0_i32, %c0_i32_0 : i32, i32
  }
  func.func @transform_5(%arg0: i32) -> (i32, i32, i32) {
    %c0_i32 = arith.constant 0 : i32
    %c0_i32_0 = arith.constant 0 : i32
    %c0_i32_1 = arith.constant 0 : i32
    return %arg0, %c0_i32, %c0_i32_0 : i32, i32, i32
  }
}

</mosaic_0001>

<llo_original>
// kernel: fuse_forward.1
$region0: #{fuse_forward.1}
  #allocation0 [shape = 'u32[]', space=smem, size = 0x4, offset = 0x4, fixed_abs, tag = 'smem constant byte address 0x4 - core index']
  #allocation1 [shape = 'u32[72,128]{1,0:T(1,128)}', space=vmem, size = 0x9000, scoped, tag = 'internal scratch']
  %s0 = inlined_call_operand.vmem [shape: bf16[2,256,128], index: 0, kind: input, shape index: {}]
  %s1 = inlined_call_operand.vmem [shape: bf16[2,256,128], index: 1, kind: input, shape index: {}]
  %s2 = inlined_call_operand.vmem [shape: bf16[128,128], index: 2, kind: input, shape index: {}]
  %s3 = inlined_call_operand.vmem [shape: bf16[9,128,128], index: 3, kind: input, shape index: {}]
  %s4 = inlined_call_operand.vmem [shape: f32[1,128], index: 4, kind: input, shape index: {}]
  %s5 = inlined_call_operand.hbm [shape: f32[2,256,128], index: 5, kind: output, shape index: {}]
  %s6 = sld [smem:[#allocation0]]
  $region30: #{fuse_forward.1} parent=0
    _
  %s8 = ssub.s32 1, %s6
  %s9 = scalar_select 0, %s8, %s6
  $region1: #{fuse_forward.1} parent=0
    #allocation2 [shape = 'u8[262144]{0}', space=vmem, size = 0x40000, scoped, tag = 'output window, operand 0, single buffered']
    #allocation3 [shape = 's32[1]{0}', space=sflag, size = 0x4, scoped, tag = 'scoped memory for fuse_forward.1']
    %10 = vsyncpa [#allocation3], 0
    // Predicated region
    $region2: #{fuse_forward.1} parent=1 // pred_check
      _
    $region3: #{fuse_forward.1} parent=1 // pred_check_branch
      %12 = sbr.rel (0) target = $region5
    $region4: #{fuse_forward.1} parent=1 // pred_region
      _
    $region5: #{fuse_forward.1} parent=1 // pred_fallthru
      _
    // Predicated region
    $region6: #{fuse_forward.1} parent=1 // pred_check
      _
    $region7: #{fuse_forward.1} parent=1 // pred_check_branch
      %14 = sbr.rel (0) target = $region9
    $region8: #{fuse_forward.1} parent=1 // pred_region
      _
    $region9: #{fuse_forward.1} parent=1 // pred_fallthru
      _
    // Predicated region
    $region10: #{fuse_forward.1} parent=1 // pred_check
      _
    $region11: #{fuse_forward.1} parent=1 // pred_check_branch
      %16 = sbr.rel (0) target = $region13
    $region12: #{fuse_forward.1} parent=1 // pred_region
      _
    $region13: #{fuse_forward.1} parent=1 // pred_fallthru
      _
    // Predicated region
    $region14: #{fuse_forward.1} parent=1 // pred_check
      _
    $region15: #{fuse_forward.1} parent=1 // pred_check_branch
      %18 = sbr.rel (0) target = $region17
    $region16: #{fuse_forward.1} parent=1 // pred_region
      _
    $region17: #{fuse_forward.1} parent=1 // pred_fallthru
      _
    // Predicated region
    $region18: #{fuse_forward.1} parent=1 // pred_check
      _
    $region19: #{fuse_forward.1} parent=1 // pred_check_branch
      %20 = sbr.rel (0) target = $region21
    $region20: #{fuse_forward.1} parent=1 // pred_region
      _
    $region21: #{fuse_forward.1} parent=1 // pred_fallthru
      _
    %v21 = vld [vmem:[%s1] sm:$0xf]
    %v22 = vld [vmem:[%s1 + $0x4] sm:$0xf]
    %v23 = vld [vmem:[%s1 + $0x8] sm:$0xf]
    %v24 = vld [vmem:[%s1 + $0xc] sm:$0xf]
    %v25 = vld [vmem:[%s1 + $0x10] sm:$0xf]
    %v26 = vld [vmem:[%s1 + $0x14] sm:$0xf]
    %v27 = vld [vmem:[%s1 + $0x18] sm:$0xf]
    %v28 = vld [vmem:[%s1 + $0x1c] sm:$0xf]
    %v29 = vld [vmem:[%s1 + $0x20] sm:$0xf]
    %v30 = vld [vmem:[%s1 + $0x24] sm:$0xf]
    %v31 = vld [vmem:[%s1 + $0x28] sm:$0xf]
    %v32 = vld [vmem:[%s1 + $0x2c] sm:$0xf]
    %v33 = vld [vmem:[%s1 + $0x30] sm:$0xf]
    %v34 = vld [vmem:[%s1 + $0x34] sm:$0xf]
    %v35 = vld [vmem:[%s1 + $0x38] sm:$0xf]
    %v36 = vld [vmem:[%s1 + $0x3c] sm:$0xf]
    %v37 = vld [vmem:[%s1 + $0x40] sm:$0xf]
    %v38 = vld [vmem:[%s1 + $0x44] sm:$0xf]
    %v39 = vld [vmem:[%s1 + $0x48] sm:$0xf]
    %v40 = vld [vmem:[%s1 + $0x4c] sm:$0xf]
    %v41 = vld [vmem:[%s1 + $0x50] sm:$0xf]
    %v42 = vld [vmem:[%s1 + $0x54] sm:$0xf]
    %v43 = vld [vmem:[%s1 + $0x58] sm:$0xf]
    %v44 = vld [vmem:[%s1 + $0x5c] sm:$0xf]
    %v45 = vld [vmem:[%s1 + $0x60] sm:$0xf]
    %v46 = vld [vmem:[%s1 + $0x64] sm:$0xf]
    %v47 = vld [vmem:[%s1 + $0x68] sm:$0xf]
    %v48 = vld [vmem:[%s1 + $0x6c] sm:$0xf]
    %v49 = vld [vmem:[%s1 + $0x70] sm:$0xf]
    %v50 = vld [vmem:[%s1 + $0x74] sm:$0xf]
    %v51 = vld [vmem:[%s1 + $0x78] sm:$0xf]
    %v52 = vld [vmem:[%s1 + $0x7c] sm:$0xf]
    %v53 = vld [vmem:[%s1 + $0x80] sm:$0xf]
    %v54 = vld [vmem:[%s1 + $0x84] sm:$0xf]
    %v55 = vld [vmem:[%s1 + $0x88] sm:$0xf]
    %v56 = vld [vmem:[%s1 + $0x8c] sm:$0xf]
    %v57 = vld [vmem:[%s1 + $0x90] sm:$0xf]
    %v58 = vld [vmem:[%s1 + $0x94] sm:$0xf]
    %v59 = vld [vmem:[%s1 + $0x98] sm:$0xf]
    %v60 = vld [vmem:[%s1 + $0x9c] sm:$0xf]
    %v61 = vld [vmem:[%s1 + $0xa0] sm:$0xf]
    %v62 = vld [vmem:[%s1 + $0xa4] sm:$0xf]
    %v63 = vld [vmem:[%s1 + $0xa8] sm:$0xf]
    %v64 = vld [vmem:[%s1 + $0xac] sm:$0xf]
    %v65 = vld [vmem:[%s1 + $0xb0] sm:$0xf]
    %v66 = vld [vmem:[%s1 + $0xb4] sm:$0xf]
    %v67 = vld [vmem:[%s1 + $0xb8] sm:$0xf]
    %v68 = vld [vmem:[%s1 + $0xbc] sm:$0xf]
    %v69 = vld [vmem:[%s1 + $0xc0] sm:$0xf]
    %v70 = vld [vmem:[%s1 + $0xc4] sm:$0xf]
    %v71 = vld [vmem:[%s1 + $0xc8] sm:$0xf]
    %v72 = vld [vmem:[%s1 + $0xcc] sm:$0xf]
    %v73 = vld [vmem:[%s1 + $0xd0] sm:$0xf]
    %v74 = vld [vmem:[%s1 + $0xd4] sm:$0xf]
    %v75 = vld [vmem:[%s1 + $0xd8] sm:$0xf]
    %v76 = vld [vmem:[%s1 + $0xdc] sm:$0xf]
    %v77 = vld [vmem:[%s1 + $0xe0] sm:$0xf]
    %v78 = vld [vmem:[%s1 + $0xe4] sm:$0xf]
    %v79 = vld [vmem:[%s1 + $0xe8] sm:$0xf]
    %v80 = vld [vmem:[%s1 + $0xec] sm:$0xf]
    %v81 = vld [vmem:[%s1 + $0xf0] sm:$0xf]
    %v82 = vld [vmem:[%s1 + $0xf4] sm:$0xf]
    %v83 = vld [vmem:[%s1 + $0xf8] sm:$0xf]
    %v84 = vld [vmem:[%s1 + $0xfc] sm:$0xf]
    %v85 = vld [vmem:[%s2] sm:$0xf]
    %v86 = vld [vmem:[%s2 + $0x4] sm:$0xf]
    %v87 = vld [vmem:[%s2 + $0x8] sm:$0xf]
    %v88 = vld [vmem:[%s2 + $0xc] sm:$0xf]
    %v89 = vld [vmem:[%s2 + $0x10] sm:$0xf]
    %v90 = vld [vmem:[%s2 + $0x14] sm:$0xf]
    %v91 = vld [vmem:[%s2 + $0x18] sm:$0xf]
    %v92 = vld [vmem:[%s2 + $0x1c] sm:$0xf]
    %v93 = vld [vmem:[%s2 + $0x20] sm:$0xf]
    %v94 = vld [vmem:[%s2 + $0x24] sm:$0xf]
    %v95 = vld [vmem:[%s2 + $0x28] sm:$0xf]
    %v96 = vld [vmem:[%s2 + $0x2c] sm:$0xf]
    %v97 = vld [vmem:[%s2 + $0x30] sm:$0xf]
    %v98 = vld [vmem:[%s2 + $0x34] sm:$0xf]
    %v99 = vld [vmem:[%s2 + $0x38] sm:$0xf]
    %v100 = vld [vmem:[%s2 + $0x3c] sm:$0xf]
    %v101 = vld [vmem:[%s0] sm:$0xf]
    %v102 = vld [vmem:[%s0 + $0x4] sm:$0xf]
    %v103 = vld [vmem:[%s0 + $0x8] sm:$0xf]
    %v104 = vld [vmem:[%s0 + $0xc] sm:$0xf]
    %v105 = vld [vmem:[%s0 + $0x10] sm:$0xf]
    %v106 = vld [vmem:[%s0 + $0x14] sm:$0xf]
    %v107 = vld [vmem:[%s0 + $0x18] sm:$0xf]
    %v108 = vld [vmem:[%s0 + $0x1c] sm:$0xf]
    %v109 = vld [vmem:[%s0 + $0x20] sm:$0xf]
    %v110 = vld [vmem:[%s0 + $0x24] sm:$0xf]
    %v111 = vld [vmem:[%s0 + $0x28] sm:$0xf]
    %v112 = vld [vmem:[%s0 + $0x2c] sm:$0xf]
    %v113 = vld [vmem:[%s0 + $0x30] sm:$0xf]
    %v114 = vld [vmem:[%s0 + $0x34] sm:$0xf]
    %v115 = vld [vmem:[%s0 + $0x38] sm:$0xf]
    %v116 = vld [vmem:[%s0 + $0x3c] sm:$0xf]
    %v117 = vld [vmem:[%s0 + $0x40] sm:$0xf]
    %v118 = vld [vmem:[%s0 + $0x44] sm:$0xf]
    %v119 = vld [vmem:[%s0 + $0x48] sm:$0xf]
    %v120 = vld [vmem:[%s0 + $0x4c] sm:$0xf]
    %v121 = vld [vmem:[%s0 + $0x50] sm:$0xf]
    %v122 = vld [vmem:[%s0 + $0x54] sm:$0xf]
    %v123 = vld [vmem:[%s0 + $0x58] sm:$0xf]
    %v124 = vld [vmem:[%s0 + $0x5c] sm:$0xf]
    %v125 = vld [vmem:[%s0 + $0x60] sm:$0xf]
    %v126 = vld [vmem:[%s0 + $0x64] sm:$0xf]
    %v127 = vld [vmem:[%s0 + $0x68] sm:$0xf]
    %v128 = vld [vmem:[%s0 + $0x6c] sm:$0xf]
    %v129 = vld [vmem:[%s0 + $0x70] sm:$0xf]
    %v130 = vld [vmem:[%s0 + $0x74] sm:$0xf]
    %v131 = vld [vmem:[%s0 + $0x78] sm:$0xf]
    %v132 = vld [vmem:[%s0 + $0x7c] sm:$0xf]
    %v133 = vld [vmem:[%s0 + $0x80] sm:$0xf]
    %v134 = vld [vmem:[%s0 + $0x84] sm:$0xf]
    %v135 = vld [vmem:[%s0 + $0x88] sm:$0xf]
    %v136 = vld [vmem:[%s0 + $0x8c] sm:$0xf]
    %v137 = vld [vmem:[%s0 + $0x90] sm:$0xf]
    %v138 = vld [vmem:[%s0 + $0x94] sm:$0xf]
    %v139 = vld [vmem:[%s0 + $0x98] sm:$0xf]
    %v140 = vld [vmem:[%s0 + $0x9c] sm:$0xf]
    %v141 = vld [vmem:[%s0 + $0xa0] sm:$0xf]
    %v142 = vld [vmem:[%s0 + $0xa4] sm:$0xf]
    %v143 = vld [vmem:[%s0 + $0xa8] sm:$0xf]
    %v144 = vld [vmem:[%s0 + $0xac] sm:$0xf]
    %v145 = vld [vmem:[%s0 + $0xb0] sm:$0xf]
    %v146 = vld [vmem:[%s0 + $0xb4] sm:$0xf]
    %v147 = vld [vmem:[%s0 + $0xb8] sm:$0xf]
    %v148 = vld [vmem:[%s0 + $0xbc] sm:$0xf]
    %v149 = vld [vmem:[%s0 + $0xc0] sm:$0xf]
    %v150 = vld [vmem:[%s0 + $0xc4] sm:$0xf]
    %v151 = vld [vmem:[%s0 + $0xc8] sm:$0xf]
    %v152 = vld [vmem:[%s0 + $0xcc] sm:$0xf]
    %v153 = vld [vmem:[%s0 + $0xd0] sm:$0xf]
    %v154 = vld [vmem:[%s0 + $0xd4] sm:$0xf]
    %v155 = vld [vmem:[%s0 + $0xd8] sm:$0xf]
    %v156 = vld [vmem:[%s0 + $0xdc] sm:$0xf]
    %v157 = vld [vmem:[%s0 + $0xe0] sm:$0xf]
    %v158 = vld [vmem:[%s0 + $0xe4] sm:$0xf]
    %v159 = vld [vmem:[%s0 + $0xe8] sm:$0xf]
    %v160 = vld [vmem:[%s0 + $0xec] sm:$0xf]
    %v161 = vld [vmem:[%s0 + $0xf0] sm:$0xf]
    %v162 = vld [vmem:[%s0 + $0xf4] sm:$0xf]
    %v163 = vld [vmem:[%s0 + $0xf8] sm:$0xf]
    %v164 = vld [vmem:[%s0 + $0xfc] sm:$0xf]
    %v165 = vunpack.c.l.bf16 %v101
    %v166 = vunpack.c.l.bf16 %v102
    %v167 = vunpack.c.l.bf16 %v103
    %v168 = vunpack.c.l.bf16 %v104
    %v169 = vunpack.c.l.bf16 %v105
    %v170 = vunpack.c.l.bf16 %v106
    %v171 = vunpack.c.l.bf16 %v107
    %v172 = vunpack.c.l.bf16 %v108
    %v173 = vunpack.c.l.bf16 %v109
    %v174 = vunpack.c.l.bf16 %v110
    %v175 = vunpack.c.l.bf16 %v111
    %v176 = vunpack.c.l.bf16 %v112
    %v177 = vunpack.c.l.bf16 %v113
    %v178 = vunpack.c.l.bf16 %v114
    %v179 = vunpack.c.l.bf16 %v115
    %v180 = vunpack.c.l.bf16 %v116
    %v181 = vunpack.c.l.bf16 %v117
    %v182 = vunpack.c.l.bf16 %v118
    %v183 = vunpack.c.l.bf16 %v119
    %v184 = vunpack.c.l.bf16 %v120
    %v185 = vunpack.c.l.bf16 %v121
    %v186 = vunpack.c.l.bf16 %v122
    %v187 = vunpack.c.l.bf16 %v123
    %v188 = vunpack.c.l.bf16 %v124
    %v189 = vunpack.c.l.bf16 %v125
    %v190 = vunpack.c.l.bf16 %v126
    %v191 = vunpack.c.l.bf16 %v127
    %v192 = vunpack.c.l.bf16 %v128
    %v193 = vunpack.c.l.bf16 %v129
    %v194 = vunpack.c.l.bf16 %v130
    %v195 = vunpack.c.l.bf16 %v131
    %v196 = vunpack.c.l.bf16 %v132
    %v197 = vunpack.c.l.bf16 %v133
    %v198 = vunpack.c.l.bf16 %v134
    %v199 = vunpack.c.l.bf16 %v135
    %v200 = vunpack.c.l.bf16 %v136
    %v201 = vunpack.c.l.bf16 %v137
    %v202 = vunpack.c.l.bf16 %v138
    %v203 = vunpack.c.l.bf16 %v139
    %v204 = vunpack.c.l.bf16 %v140
    %v205 = vunpack.c.l.bf16 %v141
    %v206 = vunpack.c.l.bf16 %v142
    %v207 = vunpack.c.l.bf16 %v143
    %v208 = vunpack.c.l.bf16 %v144
    %v209 = vunpack.c.l.bf16 %v145
    %v210 = vunpack.c.l.bf16 %v146
    %v211 = vunpack.c.l.bf16 %v147
    %v212 = vunpack.c.l.bf16 %v148
    %v213 = vunpack.c.l.bf16 %v149
    %v214 = vunpack.c.l.bf16 %v150
    %v215 = vunpack.c.l.bf16 %v151
    %v216 = vunpack.c.l.bf16 %v152
    %v217 = vunpack.c.l.bf16 %v153
    %v218 = vunpack.c.l.bf16 %v154
    %v219 = vunpack.c.l.bf16 %v155
    %v220 = vunpack.c.l.bf16 %v156
    %v221 = vunpack.c.l.bf16 %v157
    %v222 = vunpack.c.l.bf16 %v158
    %v223 = vunpack.c.l.bf16 %v159
    %v224 = vunpack.c.l.bf16 %v160
    %v225 = vunpack.c.l.bf16 %v161
    %v226 = vunpack.c.l.bf16 %v162
    %v227 = vunpack.c.l.bf16 %v163
    %v228 = vunpack.c.l.bf16 %v164
    %v293 = vunpack.c.l.b16 %v21
    %v294 = vunpack.c.l.b16 %v22
    %v295 = vunpack.c.l.b16 %v23
    %v296 = vunpack.c.l.b16 %v24
    %v297 = vunpack.c.l.b16 %v25
    %v298 = vunpack.c.l.b16 %v26
    %v299 = vunpack.c.l.b16 %v27
    %v300 = vunpack.c.l.b16 %v28
    %v301 = vunpack.c.l.b16 %v29
    %v302 = vunpack.c.l.b16 %v30
    %v303 = vunpack.c.l.b16 %v31
    %v304 = vunpack.c.l.b16 %v32
    %v305 = vunpack.c.l.b16 %v33
    %v306 = vunpack.c.l.b16 %v34
    %v307 = vunpack.c.l.b16 %v35
    %v308 = vunpack.c.l.b16 %v36
    %v309 = vunpack.c.l.b16 %v37
    %v310 = vunpack.c.l.b16 %v38
    %v311 = vunpack.c.l.b16 %v39
    %v312 = vunpack.c.l.b16 %v40
    %v313 = vunpack.c.l.b16 %v41
    %v314 = vunpack.c.l.b16 %v42
    %v315 = vunpack.c.l.b16 %v43
    %v316 = vunpack.c.l.b16 %v44
    %v317 = vunpack.c.l.b16 %v45
    %v318 = vunpack.c.l.b16 %v46
    %v319 = vunpack.c.l.b16 %v47
    %v320 = vunpack.c.l.b16 %v48
    %v321 = vunpack.c.l.b16 %v49
    %v322 = vunpack.c.l.b16 %v50
    %v323 = vunpack.c.l.b16 %v51
    %v324 = vunpack.c.l.b16 %v52
    %v325 = vunpack.c.l.b16 %v53
    %v326 = vunpack.c.l.b16 %v54
    %v327 = vunpack.c.l.b16 %v55
    %v328 = vunpack.c.l.b16 %v56
    %v329 = vunpack.c.l.b16 %v57
    %v330 = vunpack.c.l.b16 %v58
    %v331 = vunpack.c.l.b16 %v59
    %v332 = vunpack.c.l.b16 %v60
    %v333 = vunpack.c.l.b16 %v61
    %v334 = vunpack.c.l.b16 %v62
    %v335 = vunpack.c.l.b16 %v63
    %v336 = vunpack.c.l.b16 %v64
    %v337 = vunpack.c.l.b16 %v65
    %v338 = vunpack.c.l.b16 %v66
    %v339 = vunpack.c.l.b16 %v67
    %v340 = vunpack.c.l.b16 %v68
    %v341 = vunpack.c.l.b16 %v69
    %v342 = vunpack.c.l.b16 %v70
    %v343 = vunpack.c.l.b16 %v71
    %v344 = vunpack.c.l.b16 %v72
    %v345 = vunpack.c.l.b16 %v73
    %v346 = vunpack.c.l.b16 %v74
    %v347 = vunpack.c.l.b16 %v75
    %v348 = vunpack.c.l.b16 %v76
    %v349 = vunpack.c.l.b16 %v77
    %v350 = vunpack.c.l.b16 %v78
    %v351 = vunpack.c.l.b16 %v79
    %v352 = vunpack.c.l.b16 %v80
    %v353 = vunpack.c.l.b16 %v81
    %v354 = vunpack.c.l.b16 %v82
    %v355 = vunpack.c.l.b16 %v83
    %v356 = vunpack.c.l.b16 %v84
    %v357 = vpack.c.b16 %v294, %v293
    %v358 = vpack.c.b16 %v296, %v295
    %v359 = vpack.c.b16 %v298, %v297
    %v360 = vpack.c.b16 %v300, %v299
    %v361 = vpack.c.b16 %v302, %v301
    %v362 = vpack.c.b16 %v304, %v303
    %v363 = vpack.c.b16 %v306, %v305
    %v364 = vpack.c.b16 %v308, %v307
    %v365 = vpack.c.b16 %v310, %v309
    %v366 = vpack.c.b16 %v312, %v311
    %v367 = vpack.c.b16 %v314, %v313
    %v368 = vpack.c.b16 %v316, %v315
    %v369 = vpack.c.b16 %v318, %v317
    %v370 = vpack.c.b16 %v320, %v319
    %v371 = vpack.c.b16 %v322, %v321
    %v372 = vpack.c.b16 %v324, %v323
    %v373 = vpack.c.b16 %v326, %v325
    %v374 = vpack.c.b16 %v328, %v327
    %v375 = vpack.c.b16 %v330, %v329
    %v376 = vpack.c.b16 %v332, %v331
    %v377 = vpack.c.b16 %v334, %v333
    %v378 = vpack.c.b16 %v336, %v335
    %v379 = vpack.c.b16 %v338, %v337
    %v380 = vpack.c.b16 %v340, %v339
    %v381 = vpack.c.b16 %v342, %v341
    %v382 = vpack.c.b16 %v344, %v343
    %v383 = vpack.c.b16 %v346, %v345
    %v384 = vpack.c.b16 %v348, %v347
    %v385 = vpack.c.b16 %v350, %v349
    %v386 = vpack.c.b16 %v352, %v351
    %v387 = vpack.c.b16 %v354, %v353
    %v388 = vpack.c.b16 %v356, %v355
    %v437 = vunpack.c.l.b16 %v85
    %v438 = vunpack.c.l.b16 %v86
    %v439 = vunpack.c.l.b16 %v87
    %v440 = vunpack.c.l.b16 %v88
    %v441 = vunpack.c.l.b16 %v89
    %v442 = vunpack.c.l.b16 %v90
    %v443 = vunpack.c.l.b16 %v91
    %v444 = vunpack.c.l.b16 %v92
    %v445 = vunpack.c.l.b16 %v93
    %v446 = vunpack.c.l.b16 %v94
    %v447 = vunpack.c.l.b16 %v95
    %v448 = vunpack.c.l.b16 %v96
    %v449 = vunpack.c.l.b16 %v97
    %v450 = vunpack.c.l.b16 %v98
    %v451 = vunpack.c.l.b16 %v99
    %v452 = vunpack.c.l.b16 %v100
    %v453 = vpack.c.b16 %v438, %v437
    %v454 = vpack.c.b16 %v440, %v439
    %v455 = vpack.c.b16 %v442, %v441
    %v456 = vpack.c.b16 %v444, %v443
    %v457 = vpack.c.b16 %v446, %v445
    %v458 = vpack.c.b16 %v448, %v447
    %v459 = vpack.c.b16 %v450, %v449
    %v460 = vpack.c.b16 %v452, %v451
    %469 = vmatpush.bf16.msra.mxu0 %v460
    %470 = vmatpush.bf16.msra.mxu0 %v459
    %471 = vmatpush.bf16.msra.mxu0 %v458
    %472 = vmatpush.bf16.msra.mxu0 %v457
    %473 = vmatpush.bf16.msra.mxu0 %v456
    %474 = vmatpush.bf16.msra.mxu0 %v455
    %475 = vmatpush.bf16.msra.mxu0 %v454
    %476 = vmatpush.bf16.msra.mxu0 %v453
    %477 = vmatmul.bf16.gmra.mxu0 %v357
    %v478 = vpop.f32.mrf.mxu0
    %v479 = vadd.f32 %v165, %v478
    %v480 = vpop.f32.mrf.mxu0
    %v481 = vadd.f32 %v166, %v480
    %482 = vmatmul.bf16.gmra.mxu0 %v358
    %v483 = vpop.f32.mrf.mxu0
    %v484 = vadd.f32 %v167, %v483
    %v485 = vpop.f32.mrf.mxu0
    %v486 = vadd.f32 %v168, %v485
    %487 = vmatmul.bf16.gmra.mxu0 %v359
    %v488 = vpop.f32.mrf.mxu0
    %v489 = vadd.f32 %v169, %v488
    %v490 = vpop.f32.mrf.mxu0
    %v491 = vadd.f32 %v170, %v490
    %492 = vmatmul.bf16.gmra.mxu0 %v360
    %v493 = vpop.f32.mrf.mxu0
    %v494 = vadd.f32 %v171, %v493
    %v495 = vpop.f32.mrf.mxu0
    %v496 = vadd.f32 %v172, %v495
    %497 = vmatmul.bf16.gmra.mxu0 %v361
    %v498 = vpop.f32.mrf.mxu0
    %v499 = vadd.f32 %v173, %v498
    %v500 = vpop.f32.mrf.mxu0
    %v501 = vadd.f32 %v174, %v500
    %502 = vmatmul.bf16.gmra.mxu0 %v362
    %v503 = vpop.f32.mrf.mxu0
    %v504 = vadd.f32 %v175, %v503
    %v505 = vpop.f32.mrf.mxu0
    %v506 = vadd.f32 %v176, %v505
    %507 = vmatmul.bf16.gmra.mxu0 %v363
    %v508 = vpop.f32.mrf.mxu0
    %v509 = vadd.f32 %v177, %v508
    %v510 = vpop.f32.mrf.mxu0
    %v511 = vadd.f32 %v178, %v510
    %512 = vmatmul.bf16.gmra.mxu0 %v364
    %v513 = vpop.f32.mrf.mxu0
    %v514 = vadd.f32 %v179, %v513
    %v515 = vpop.f32.mrf.mxu0
    %v516 = vadd.f32 %v180, %v515
    %517 = vmatmul.bf16.gmra.mxu0 %v365
    %v518 = vpop.f32.mrf.mxu0
    %v519 = vadd.f32 %v181, %v518
    %v520 = vpop.f32.mrf.mxu0
    %v521 = vadd.f32 %v182, %v520
    %522 = vmatmul.bf16.gmra.mxu0 %v366
    %v523 = vpop.f32.mrf.mxu0
    %v524 = vadd.f32 %v183, %v523
    %v525 = vpop.f32.mrf.mxu0
    %v526 = vadd.f32 %v184, %v525
    %527 = vmatmul.bf16.gmra.mxu0 %v367
    %v528 = vpop.f32.mrf.mxu0
    %v529 = vadd.f32 %v185, %v528
    %v530 = vpop.f32.mrf.mxu0
    %v531 = vadd.f32 %v186, %v530
    %532 = vmatmul.bf16.gmra.mxu0 %v368
    %v533 = vpop.f32.mrf.mxu0
    %v534 = vadd.f32 %v187, %v533
    %v535 = vpop.f32.mrf.mxu0
    %v536 = vadd.f32 %v188, %v535
    %537 = vmatmul.bf16.gmra.mxu0 %v369
    %v538 = vpop.f32.mrf.mxu0
    %v539 = vadd.f32 %v189, %v538
    %v540 = vpop.f32.mrf.mxu0
    %v541 = vadd.f32 %v190, %v540
    %542 = vmatmul.bf16.gmra.mxu0 %v370
    %v543 = vpop.f32.mrf.mxu0
    %v544 = vadd.f32 %v191, %v543
    %v545 = vpop.f32.mrf.mxu0
    %v546 = vadd.f32 %v192, %v545
    %547 = vmatmul.bf16.gmra.mxu0 %v371
    %v548 = vpop.f32.mrf.mxu0
    %v549 = vadd.f32 %v193, %v548
    %v550 = vpop.f32.mrf.mxu0
    %v551 = vadd.f32 %v194, %v550
    %552 = vmatmul.bf16.gmra.mxu0 %v372
    %v553 = vpop.f32.mrf.mxu0
    %v554 = vadd.f32 %v195, %v553
    %v555 = vpop.f32.mrf.mxu0
    %v556 = vadd.f32 %v196, %v555
    %557 = vmatmul.bf16.gmra.mxu0 %v373
    %v558 = vpop.f32.mrf.mxu0
    %v559 = vadd.f32 %v197, %v558
    %v560 = vpop.f32.mrf.mxu0
    %v561 = vadd.f32 %v198, %v560
    %562 = vmatmul.bf16.gmra.mxu0 %v374
    %v563 = vpop.f32.mrf.mxu0
    %v564 = vadd.f32 %v199, %v563
    %v565 = vpop.f32.mrf.mxu0
    %v566 = vadd.f32 %v200, %v565
    %567 = vmatmul.bf16.gmra.mxu0 %v375
    %v568 = vpop.f32.mrf.mxu0
    %v569 = vadd.f32 %v201, %v568
    %v570 = vpop.f32.mrf.mxu0
    %v571 = vadd.f32 %v202, %v570
    %572 = vmatmul.bf16.gmra.mxu0 %v376
    %v573 = vpop.f32.mrf.mxu0
    %v574 = vadd.f32 %v203, %v573
    %v575 = vpop.f32.mrf.mxu0
    %v576 = vadd.f32 %v204, %v575
    %577 = vmatmul.bf16.gmra.mxu0 %v377
    %v578 = vpop.f32.mrf.mxu0
    %v579 = vadd.f32 %v205, %v578
    %v580 = vpop.f32.mrf.mxu0
    %v581 = vadd.f32 %v206, %v580
    %582 = vmatmul.bf16.gmra.mxu0 %v378
    %v583 = vpop.f32.mrf.mxu0
    %v584 = vadd.f32 %v207, %v583
    %v585 = vpop.f32.mrf.mxu0
    %v586 = vadd.f32 %v208, %v585
    %587 = vmatmul.bf16.gmra.mxu0 %v379
    %v588 = vpop.f32.mrf.mxu0
    %v589 = vadd.f32 %v209, %v588
    %v590 = vpop.f32.mrf.mxu0
    %v591 = vadd.f32 %v210, %v590
    %592 = vmatmul.bf16.gmra.mxu0 %v380
    %v593 = vpop.f32.mrf.mxu0
    %v594 = vadd.f32 %v211, %v593
    %v595 = vpop.f32.mrf.mxu0
    %v596 = vadd.f32 %v212, %v595
    %597 = vmatmul.bf16.gmra.mxu0 %v381
    %v598 = vpop.f32.mrf.mxu0
    %v599 = vadd.f32 %v213, %v598
    %v600 = vpop.f32.mrf.mxu0
    %v601 = vadd.f32 %v214, %v600
    %602 = vmatmul.bf16.gmra.mxu0 %v382
    %v603 = vpop.f32.mrf.mxu0
    %v604 = vadd.f32 %v215, %v603
    %v605 = vpop.f32.mrf.mxu0
    %v606 = vadd.f32 %v216, %v605
    %607 = vmatmul.bf16.gmra.mxu0 %v383
    %v608 = vpop.f32.mrf.mxu0
    %v609 = vadd.f32 %v217, %v608
    %v610 = vpop.f32.mrf.mxu0
    %v611 = vadd.f32 %v218, %v610
    %612 = vmatmul.bf16.gmra.mxu0 %v384
    %v613 = vpop.f32.mrf.mxu0
    %v614 = vadd.f32 %v219, %v613
    %v615 = vpop.f32.mrf.mxu0
    %v616 = vadd.f32 %v220, %v615
    %617 = vmatmul.bf16.gmra.mxu0 %v385
    %v618 = vpop.f32.mrf.mxu0
    %v619 = vadd.f32 %v221, %v618
    %v620 = vpop.f32.mrf.mxu0
    %v621 = vadd.f32 %v222, %v620
    %622 = vmatmul.bf16.gmra.mxu0 %v386
    %v623 = vpop.f32.mrf.mxu0
    %v624 = vadd.f32 %v223, %v623
    %v625 = vpop.f32.mrf.mxu0
    %v626 = vadd.f32 %v224, %v625
    %627 = vmatmul.bf16.gmra.mxu0 %v387
    %v628 = vpop.f32.mrf.mxu0
    %v629 = vadd.f32 %v225, %v628
    %v630 = vpop.f32.mrf.mxu0
    %v631 = vadd.f32 %v226, %v630
    %632 = vmatmul.bf16.gmra.mxu0 %v388
    %v633 = vpop.f32.mrf.mxu0
    %v634 = vadd.f32 %v227, %v633
    %v635 = vpop.f32.mrf.mxu0
    %v636 = vadd.f32 %v228, %v635
    %637 = vdwg.mxu0
    %v638 = vlaneseq
    %v639 = vshrl.u32 %v638, 7
    %v640 = vadd.s32 %v639, 8
    %vm641 = vcmp.ge.s32.totalorder %v639, 1
    %vm642 = vcmp.ge.s32.totalorder %v640, 1
    %vm643 = vcmp.lt.s32.totalorder %v639, 15
    %vm644 = vcmp.lt.s32.totalorder %v640, 15
    %v646 = vrot.slane %v636, 7
    %vm709 = vcmask 1040384
    %v710 = vrot.slane %v479, 7
    %v711 = vrot.slane %v481, 7
    %v712 = vsel %vm709, %v710, %v711
    %v713 = vrot.slane %v484, 7
    %v714 = vsel %vm709, %v711, %v713
    %v715 = vrot.slane %v486, 7
    %v716 = vsel %vm709, %v713, %v715
    %v717 = vrot.slane %v489, 7
    %v718 = vsel %vm709, %v715, %v717
    %v719 = vrot.slane %v491, 7
    %v720 = vsel %vm709, %v717, %v719
    %v721 = vrot.slane %v494, 7
    %v722 = vsel %vm709, %v719, %v721
    %v723 = vrot.slane %v496, 7
    %v724 = vsel %vm709, %v721, %v723
    %v725 = vrot.slane %v499, 7
    %v726 = vsel %vm709, %v723, %v725
    %v727 = vrot.slane %v501, 7
    %v728 = vsel %vm709, %v725, %v727
    %v729 = vrot.slane %v504, 7
    %v730 = vsel %vm709, %v727, %v729
    %v731 = vrot.slane %v506, 7
    %v732 = vsel %vm709, %v729, %v731
    %v733 = vrot.slane %v509, 7
    %v734 = vsel %vm709, %v731, %v733
    %v735 = vrot.slane %v511, 7
    %v736 = vsel %vm709, %v733, %v735
    %v737 = vrot.slane %v514, 7
    %v738 = vsel %vm709, %v735, %v737
    %v739 = vrot.slane %v516, 7
    %v740 = vsel %vm709, %v737, %v739
    %v741 = vrot.slane %v519, 7
    %v742 = vsel %vm709, %v739, %v741
    %v743 = vrot.slane %v521, 7
    %v744 = vsel %vm709, %v741, %v743
    %v745 = vrot.slane %v524, 7
    %v746 = vsel %vm709, %v743, %v745
    %v747 = vrot.slane %v526, 7
    %v748 = vsel %vm709, %v745, %v747
    %v749 = vrot.slane %v529, 7
    %v750 = vsel %vm709, %v747, %v749
    %v751 = vrot.slane %v531, 7
    %v752 = vsel %vm709, %v749, %v751
    %v753 = vrot.slane %v534, 7
    %v754 = vsel %vm709, %v751, %v753
    %v755 = vrot.slane %v536, 7
    %v756 = vsel %vm709, %v753, %v755
    %v757 = vrot.slane %v539, 7
    %v758 = vsel %vm709, %v755, %v757
    %v759 = vrot.slane %v541, 7
    %v760 = vsel %vm709, %v757, %v759
    %v761 = vrot.slane %v544, 7
    %v762 = vsel %vm709, %v759, %v761
    %v763 = vrot.slane %v546, 7
    %v764 = vsel %vm709, %v761, %v763
    %v765 = vrot.slane %v549, 7
    %v766 = vsel %vm709, %v763, %v765
    %v767 = vrot.slane %v551, 7
    %v768 = vsel %vm709, %v765, %v767
    %v769 = vrot.slane %v556, 7
    %v770 = vrot.slane %v559, 7
    %v771 = vsel %vm709, %v769, %v770
    %v772 = vrot.slane %v561, 7
    %v773 = vsel %vm709, %v770, %v772
    %v774 = vrot.slane %v564, 7
    %v775 = vsel %vm709, %v772, %v774
    %v776 = vrot.slane %v566, 7
    %v777 = vsel %vm709, %v774, %v776
    %v778 = vrot.slane %v569, 7
    %v779 = vsel %vm709, %v776, %v778
    %v780 = vrot.slane %v571, 7
    %v781 = vsel %vm709, %v778, %v780
    %v782 = vrot.slane %v574, 7
    %v783 = vsel %vm709, %v780, %v782
    %v784 = vrot.slane %v576, 7
    %v785 = vsel %vm709, %v782, %v784
    %v786 = vrot.slane %v579, 7
    %v787 = vsel %vm709, %v784, %v786
    %v788 = vrot.slane %v581, 7
    %v789 = vsel %vm709, %v786, %v788
    %v790 = vrot.slane %v584, 7
    %v791 = vsel %vm709, %v788, %v790
    %v792 = vrot.slane %v586, 7
    %v793 = vsel %vm709, %v790, %v792
    %v794 = vrot.slane %v589, 7
    %v795 = vsel %vm709, %v792, %v794
    %v796 = vrot.slane %v591, 7
    %v797 = vsel %vm709, %v794, %v796
    %v798 = vrot.slane %v594, 7
    %v799 = vsel %vm709, %v796, %v798
    %v800 = vrot.slane %v596, 7
    %v801 = vsel %vm709, %v798, %v800
    %v802 = vrot.slane %v599, 7
    %v803 = vsel %vm709, %v800, %v802
    %v804 = vrot.slane %v601, 7
    %v805 = vsel %vm709, %v802, %v804
    %v806 = vrot.slane %v604, 7
    %v807 = vsel %vm709, %v804, %v806
    %v808 = vrot.slane %v606, 7
    %v809 = vsel %vm709, %v806, %v808
    %v810 = vrot.slane %v609, 7
    %v811 = vsel %vm709, %v808, %v810
    %v812 = vrot.slane %v611, 7
    %v813 = vsel %vm709, %v810, %v812
    %v814 = vrot.slane %v614, 7
    %v815 = vsel %vm709, %v812, %v814
    %v816 = vrot.slane %v616, 7
    %v817 = vsel %vm709, %v814, %v816
    %v818 = vrot.slane %v619, 7
    %v819 = vsel %vm709, %v816, %v818
    %v820 = vrot.slane %v621, 7
    %v821 = vsel %vm709, %v818, %v820
    %v822 = vrot.slane %v624, 7
    %v823 = vsel %vm709, %v820, %v822
    %v824 = vrot.slane %v626, 7
    %v825 = vsel %vm709, %v822, %v824
    %v826 = vrot.slane %v629, 7
    %v827 = vsel %vm709, %v824, %v826
    %v828 = vrot.slane %v631, 7
    %v829 = vsel %vm709, %v826, %v828
    %v890 = vsel %vm709, %v646, %v710
    %v891 = vsel %vm641, 1, 0
    %v892 = vsel %vm642, 1, 0
    %vm893 = vcmp.eq.s32.totalorder %v891, 1
    %vm894 = vcmp.eq.s32.totalorder %v892, 1
    %v895 = vsel %vm893, %v890, 0.0
    %v896 = vsel %vm894, %v712, 0.0
    %v897 = vsel %vm893, %v714, 0.0
    %v898 = vsel %vm894, %v716, 0.0
    %v899 = vsel %vm893, %v718, 0.0
    %v900 = vsel %vm894, %v720, 0.0
    %v901 = vsel %vm893, %v722, 0.0
    %v902 = vsel %vm894, %v724, 0.0
    %v903 = vsel %vm893, %v726, 0.0
    %v904 = vsel %vm894, %v728, 0.0
    %v905 = vsel %vm893, %v730, 0.0
    %v906 = vsel %vm894, %v732, 0.0
    %v907 = vsel %vm893, %v734, 0.0
    %v908 = vsel %vm894, %v736, 0.0
    %v909 = vsel %vm893, %v738, 0.0
    %v910 = vsel %vm894, %v740, 0.0
    %v911 = vsel %vm893, %v742, 0.0
    %v912 = vsel %vm894, %v744, 0.0
    %v913 = vsel %vm893, %v746, 0.0
    %v914 = vsel %vm894, %v748, 0.0
    %v915 = vsel %vm893, %v750, 0.0
    %v916 = vsel %vm894, %v752, 0.0
    %v917 = vsel %vm893, %v754, 0.0
    %v918 = vsel %vm894, %v756, 0.0
    %v919 = vsel %vm893, %v758, 0.0
    %v920 = vsel %vm894, %v760, 0.0
    %v921 = vsel %vm893, %v762, 0.0
    %v922 = vsel %vm894, %v764, 0.0
    %v923 = vsel %vm893, %v766, 0.0
    %v924 = vsel %vm894, %v768, 0.0
    %v925 = vsel %vm893, %v771, 0.0
    %v926 = vsel %vm894, %v773, 0.0
    %v927 = vsel %vm893, %v775, 0.0
    %v928 = vsel %vm894, %v777, 0.0
    %v929 = vsel %vm893, %v779, 0.0
    %v930 = vsel %vm894, %v781, 0.0
    %v931 = vsel %vm893, %v783, 0.0
    %v932 = vsel %vm894, %v785, 0.0
    %v933 = vsel %vm893, %v787, 0.0
    %v934 = vsel %vm894, %v789, 0.0
    %v935 = vsel %vm893, %v791, 0.0
    %v936 = vsel %vm894, %v793, 0.0
    %v937 = vsel %vm893, %v795, 0.0
    %v938 = vsel %vm894, %v797, 0.0
    %v939 = vsel %vm893, %v799, 0.0
    %v940 = vsel %vm894, %v801, 0.0
    %v941 = vsel %vm893, %v803, 0.0
    %v942 = vsel %vm894, %v805, 0.0
    %v943 = vsel %vm893, %v807, 0.0
    %v944 = vsel %vm894, %v809, 0.0
    %v945 = vsel %vm893, %v811, 0.0
    %v946 = vsel %vm894, %v813, 0.0
    %v947 = vsel %vm893, %v815, 0.0
    %v948 = vsel %vm894, %v817, 0.0
    %v949 = vsel %vm893, %v819, 0.0
    %v950 = vsel %vm894, %v821, 0.0
    %v951 = vsel %vm893, %v823, 0.0
    %v952 = vsel %vm894, %v825, 0.0
    %v953 = vsel %vm893, %v827, 0.0
    %v954 = vsel %vm894, %v829, 0.0
    %v955 = vpack.c.bf16 0.0, 0.0
    %v956 = vpack.c.bf16 %v896, %v895
    %v957 = vpack.c.bf16 %v898, %v897
    %v958 = vpack.c.bf16 %v900, %v899
    %v959 = vpack.c.bf16 %v902, %v901
    %v960 = vpack.c.bf16 %v904, %v903
    %v961 = vpack.c.bf16 %v906, %v905
    %v962 = vpack.c.bf16 %v908, %v907
    %v963 = vpack.c.bf16 %v910, %v909
    %v964 = vpack.c.bf16 %v912, %v911
    %v965 = vpack.c.bf16 %v914, %v913
    %v966 = vpack.c.bf16 %v916, %v915
    %v967 = vpack.c.bf16 %v918, %v917
    %v968 = vpack.c.bf16 %v920, %v919
    %v969 = vpack.c.bf16 %v922, %v921
    %v970 = vpack.c.bf16 %v924, %v923
    %v971 = vpack.c.bf16 %v926, %v925
    %v972 = vpack.c.bf16 %v928, %v927
    %v973 = vpack.c.bf16 %v930, %v929
    %v974 = vpack.c.bf16 %v932, %v931
    %v975 = vpack.c.bf16 %v934, %v933
    %v976 = vpack.c.bf16 %v936, %v935
    %v977 = vpack.c.bf16 %v938, %v937
    %v978 = vpack.c.bf16 %v940, %v939
    %v979 = vpack.c.bf16 %v942, %v941
    %v980 = vpack.c.bf16 %v944, %v943
    %v981 = vpack.c.bf16 %v946, %v945
    %v982 = vpack.c.bf16 %v948, %v947
    %v983 = vpack.c.bf16 %v950, %v949
    %v984 = vpack.c.bf16 %v952, %v951
    %v985 = vpack.c.bf16 %v954, %v953
    %v986 = vld [vmem:[%s3] sm:$0xf]
    %v987 = vld [vmem:[%s3 + $0x4] sm:$0xf]
    %v988 = vld [vmem:[%s3 + $0x8] sm:$0xf]
    %v989 = vld [vmem:[%s3 + $0xc] sm:$0xf]
    %v990 = vld [vmem:[%s3 + $0x10] sm:$0xf]
    %v991 = vld [vmem:[%s3 + $0x14] sm:$0xf]
    %v992 = vld [vmem:[%s3 + $0x18] sm:$0xf]
    %v993 = vld [vmem:[%s3 + $0x1c] sm:$0xf]
    %v994 = vld [vmem:[%s3 + $0x20] sm:$0xf]
    %v995 = vld [vmem:[%s3 + $0x24] sm:$0xf]
    %v996 = vld [vmem:[%s3 + $0x28] sm:$0xf]
    %v997 = vld [vmem:[%s3 + $0x2c] sm:$0xf]
    %v998 = vld [vmem:[%s3 + $0x30] sm:$0xf]
    %v999 = vld [vmem:[%s3 + $0x34] sm:$0xf]
    %v1000 = vld [vmem:[%s3 + $0x38] sm:$0xf]
    %v1001 = vld [vmem:[%s3 + $0x3c] sm:$0xf]
    %v1002 = vpack.c.bf16 %v481, %v479
    %v1003 = vpack.c.bf16 %v486, %v484
    %v1004 = vpack.c.bf16 %v491, %v489
    %v1005 = vpack.c.bf16 %v496, %v494
    %v1006 = vpack.c.bf16 %v501, %v499
    %v1007 = vpack.c.bf16 %v506, %v504
    %v1008 = vpack.c.bf16 %v511, %v509
    %v1009 = vpack.c.bf16 %v516, %v514
    %v1010 = vpack.c.bf16 %v521, %v519
    %v1011 = vpack.c.bf16 %v526, %v524
    %v1012 = vpack.c.bf16 %v531, %v529
    %v1013 = vpack.c.bf16 %v536, %v534
    %v1014 = vpack.c.bf16 %v541, %v539
    %v1015 = vpack.c.bf16 %v546, %v544
    %v1016 = vpack.c.bf16 %v551, %v549
    %v1017 = vpack.c.bf16 %v561, %v559
    %v1018 = vpack.c.bf16 %v566, %v564
    %v1019 = vpack.c.bf16 %v571, %v569
    %v1020 = vpack.c.bf16 %v576, %v574
    %v1021 = vpack.c.bf16 %v581, %v579
    %v1022 = vpack.c.bf16 %v586, %v584
    %v1023 = vpack.c.bf16 %v591, %v589
    %v1024 = vpack.c.bf16 %v596, %v594
    %v1025 = vpack.c.bf16 %v601, %v599
    %v1026 = vpack.c.bf16 %v606, %v604
    %v1027 = vpack.c.bf16 %v611, %v609
    %v1028 = vpack.c.bf16 %v616, %v614
    %v1029 = vpack.c.bf16 %v621, %v619
    %v1030 = vpack.c.bf16 %v626, %v624
    %v1031 = vpack.c.bf16 %v631, %v629
    %s1032 = scalar_lea.vmem %s3, 64
    %v1033 = vld [vmem:[%s1032] sm:$0xf]
    %v1034 = vld [vmem:[%s1032 + $0x4] sm:$0xf]
    %v1035 = vld [vmem:[%s1032 + $0x8] sm:$0xf]
    %v1036 = vld [vmem:[%s1032 + $0xc] sm:$0xf]
    %v1037 = vld [vmem:[%s1032 + $0x10] sm:$0xf]
    %v1038 = vld [vmem:[%s1032 + $0x14] sm:$0xf]
    %v1039 = vld [vmem:[%s1032 + $0x18] sm:$0xf]
    %v1040 = vld [vmem:[%s1032 + $0x1c] sm:$0xf]
    %v1041 = vld [vmem:[%s1032 + $0x20] sm:$0xf]
    %v1042 = vld [vmem:[%s1032 + $0x24] sm:$0xf]
    %v1043 = vld [vmem:[%s1032 + $0x28] sm:$0xf]
    %v1044 = vld [vmem:[%s1032 + $0x2c] sm:$0xf]
    %v1045 = vld [vmem:[%s1032 + $0x30] sm:$0xf]
    %v1046 = vld [vmem:[%s1032 + $0x34] sm:$0xf]
    %v1047 = vld [vmem:[%s1032 + $0x38] sm:$0xf]
    %v1048 = vld [vmem:[%s1032 + $0x3c] sm:$0xf]
    %v1065 = vunpack.c.l.b16 %v1033
    %v1066 = vunpack.c.l.b16 %v1034
    %v1067 = vunpack.c.l.b16 %v1035
    %v1068 = vunpack.c.l.b16 %v1036
    %v1069 = vunpack.c.l.b16 %v1037
    %v1070 = vunpack.c.l.b16 %v1038
    %v1071 = vunpack.c.l.b16 %v1039
    %v1072 = vunpack.c.l.b16 %v1040
    %v1073 = vunpack.c.l.b16 %v1041
    %v1074 = vunpack.c.l.b16 %v1042
    %v1075 = vunpack.c.l.b16 %v1043
    %v1076 = vunpack.c.l.b16 %v1044
    %v1077 = vunpack.c.l.b16 %v1045
    %v1078 = vunpack.c.l.b16 %v1046
    %v1079 = vunpack.c.l.b16 %v1047
    %v1080 = vunpack.c.l.b16 %v1048
    %v1081 = vpack.c.b16 %v1066, %v1065
    %v1082 = vpack.c.b16 %v1068, %v1067
    %v1083 = vpack.c.b16 %v1070, %v1069
    %v1084 = vpack.c.b16 %v1072, %v1071
    %v1085 = vpack.c.b16 %v1074, %v1073
    %v1086 = vpack.c.b16 %v1076, %v1075
    %v1087 = vpack.c.b16 %v1078, %v1077
    %v1088 = vpack.c.b16 %v1080, %v1079
    %1097 = vmatpush.bf16.msra.mxu0 %v1088
    %1098 = vmatpush.bf16.msra.mxu0 %v1087
    %1099 = vmatpush.bf16.msra.mxu0 %v1086
    %1100 = vmatpush.bf16.msra.mxu0 %v1085
    %1101 = vmatpush.bf16.msra.mxu0 %v1084
    %1102 = vmatpush.bf16.msra.mxu0 %v1083
    %1103 = vmatpush.bf16.msra.mxu0 %v1082
    %1104 = vmatpush.bf16.msra.mxu0 %v1081
    %1105 = vmatmul.bf16.gmra.mxu0 %v955
    %v1106 = vpop.f32.mrf.mxu0
    %v1107 = vadd.f32 0.0, %v1106
    %v1108 = vpop.f32.mrf.mxu0
    %v1109 = vadd.f32 0.0, %v1108
    %1110 = vmatmul.bf16.gmra.mxu0 %v1002
    %v1111 = vpop.f32.mrf.mxu0
    %v1112 = vadd.f32 0.0, %v1111
    %v1113 = vpop.f32.mrf.mxu0
    %v1114 = vadd.f32 0.0, %v1113
    %1115 = vmatmul.bf16.gmra.mxu0 %v1003
    %v1116 = vpop.f32.mrf.mxu0
    %v1117 = vadd.f32 0.0, %v1116
    %v1118 = vpop.f32.mrf.mxu0
    %v1119 = vadd.f32 0.0, %v1118
    %1120 = vmatmul.bf16.gmra.mxu0 %v1004
    %v1121 = vpop.f32.mrf.mxu0
    %v1122 = vadd.f32 0.0, %v1121
    %v1123 = vpop.f32.mrf.mxu0
    %v1124 = vadd.f32 0.0, %v1123
    %1125 = vmatmul.bf16.gmra.mxu0 %v1005
    %v1126 = vpop.f32.mrf.mxu0
    %v1127 = vadd.f32 0.0, %v1126
    %v1128 = vpop.f32.mrf.mxu0
    %v1129 = vadd.f32 0.0, %v1128
    %1130 = vmatmul.bf16.gmra.mxu0 %v1006
    %v1131 = vpop.f32.mrf.mxu0
    %v1132 = vadd.f32 0.0, %v1131
    %v1133 = vpop.f32.mrf.mxu0
    %v1134 = vadd.f32 0.0, %v1133
    %1135 = vmatmul.bf16.gmra.mxu0 %v1007
    %v1136 = vpop.f32.mrf.mxu0
    %v1137 = vadd.f32 0.0, %v1136
    %v1138 = vpop.f32.mrf.mxu0
    %v1139 = vadd.f32 0.0, %v1138
    %1140 = vmatmul.bf16.gmra.mxu0 %v1008
    %v1141 = vpop.f32.mrf.mxu0
    %v1142 = vadd.f32 0.0, %v1141
    %v1143 = vpop.f32.mrf.mxu0
    %v1144 = vadd.f32 0.0, %v1143
    %1145 = vmatmul.bf16.gmra.mxu0 %v1009
    %v1146 = vpop.f32.mrf.mxu0
    %v1147 = vadd.f32 0.0, %v1146
    %v1148 = vpop.f32.mrf.mxu0
    %v1149 = vadd.f32 0.0, %v1148
    %1150 = vmatmul.bf16.gmra.mxu0 %v1010
    %v1151 = vpop.f32.mrf.mxu0
    %v1152 = vadd.f32 0.0, %v1151
    %v1153 = vpop.f32.mrf.mxu0
    %v1154 = vadd.f32 0.0, %v1153
    %1155 = vmatmul.bf16.gmra.mxu0 %v1011
    %v1156 = vpop.f32.mrf.mxu0
    %v1157 = vadd.f32 0.0, %v1156
    %v1158 = vpop.f32.mrf.mxu0
    %v1159 = vadd.f32 0.0, %v1158
    %1160 = vmatmul.bf16.gmra.mxu0 %v1012
    %v1161 = vpop.f32.mrf.mxu0
    %v1162 = vadd.f32 0.0, %v1161
    %v1163 = vpop.f32.mrf.mxu0
    %v1164 = vadd.f32 0.0, %v1163
    %1165 = vmatmul.bf16.gmra.mxu0 %v1013
    %v1166 = vpop.f32.mrf.mxu0
    %v1167 = vadd.f32 0.0, %v1166
    %v1168 = vpop.f32.mrf.mxu0
    %v1169 = vadd.f32 0.0, %v1168
    %1170 = vmatmul.bf16.gmra.mxu0 %v1014
    %v1171 = vpop.f32.mrf.mxu0
    %v1172 = vadd.f32 0.0, %v1171
    %v1173 = vpop.f32.mrf.mxu0
    %v1174 = vadd.f32 0.0, %v1173
    %1175 = vmatmul.bf16.gmra.mxu0 %v1015
    %v1176 = vpop.f32.mrf.mxu0
    %v1177 = vadd.f32 0.0, %v1176
    %v1178 = vpop.f32.mrf.mxu0
    %v1179 = vadd.f32 0.0, %v1178
    %1180 = vmatmul.bf16.gmra.mxu0 %v1016
    %v1181 = vpop.f32.mrf.mxu0
    %v1182 = vadd.f32 0.0, %v1181
    %v1183 = vpop.f32.mrf.mxu0
    %v1184 = vadd.f32 0.0, %v1183
    %1185 = vmatmul.bf16.gmra.mxu0 %v955
    %v1186 = vpop.f32.mrf.mxu0
    %v1187 = vadd.f32 0.0, %v1186
    %v1188 = vpop.f32.mrf.mxu0
    %v1189 = vadd.f32 0.0, %v1188
    %1190 = vmatmul.bf16.gmra.mxu0 %v1017
    %v1191 = vpop.f32.mrf.mxu0
    %v1192 = vadd.f32 0.0, %v1191
    %v1193 = vpop.f32.mrf.mxu0
    %v1194 = vadd.f32 0.0, %v1193
    %1195 = vmatmul.bf16.gmra.mxu0 %v1018
    %v1196 = vpop.f32.mrf.mxu0
    %v1197 = vadd.f32 0.0, %v1196
    %v1198 = vpop.f32.mrf.mxu0
    %v1199 = vadd.f32 0.0, %v1198
    %1200 = vmatmul.bf16.gmra.mxu0 %v1019
    %v1201 = vpop.f32.mrf.mxu0
    %v1202 = vadd.f32 0.0, %v1201
    %v1203 = vpop.f32.mrf.mxu0
    %v1204 = vadd.f32 0.0, %v1203
    %1205 = vmatmul.bf16.gmra.mxu0 %v1020
    %v1206 = vpop.f32.mrf.mxu0
    %v1207 = vadd.f32 0.0, %v1206
    %v1208 = vpop.f32.mrf.mxu0
    %v1209 = vadd.f32 0.0, %v1208
    %1210 = vmatmul.bf16.gmra.mxu0 %v1021
    %v1211 = vpop.f32.mrf.mxu0
    %v1212 = vadd.f32 0.0, %v1211
    %v1213 = vpop.f32.mrf.mxu0
    %v1214 = vadd.f32 0.0, %v1213
    %1215 = vmatmul.bf16.gmra.mxu0 %v1022
    %v1216 = vpop.f32.mrf.mxu0
    %v1217 = vadd.f32 0.0, %v1216
    %v1218 = vpop.f32.mrf.mxu0
    %v1219 = vadd.f32 0.0, %v1218
    %1220 = vmatmul.bf16.gmra.mxu0 %v1023
    %v1221 = vpop.f32.mrf.mxu0
    %v1222 = vadd.f32 0.0, %v1221
    %v1223 = vpop.f32.mrf.mxu0
    %v1224 = vadd.f32 0.0, %v1223
    %1225 = vmatmul.bf16.gmra.mxu0 %v1024
    %v1226 = vpop.f32.mrf.mxu0
    %v1227 = vadd.f32 0.0, %v1226
    %v1228 = vpop.f32.mrf.mxu0
    %v1229 = vadd.f32 0.0, %v1228
    %1230 = vmatmul.bf16.gmra.mxu0 %v1025
    %v1231 = vpop.f32.mrf.mxu0
    %v1232 = vadd.f32 0.0, %v1231
    %v1233 = vpop.f32.mrf.mxu0
    %v1234 = vadd.f32 0.0, %v1233
    %1235 = vmatmul.bf16.gmra.mxu0 %v1026
    %v1236 = vpop.f32.mrf.mxu0
    %v1237 = vadd.f32 0.0, %v1236
    %v1238 = vpop.f32.mrf.mxu0
    %v1239 = vadd.f32 0.0, %v1238
    %1240 = vmatmul.bf16.gmra.mxu0 %v1027
    %v1241 = vpop.f32.mrf.mxu0
    %v1242 = vadd.f32 0.0, %v1241
    %v1243 = vpop.f32.mrf.mxu0
    %v1244 = vadd.f32 0.0, %v1243
    %1245 = vmatmul.bf16.gmra.mxu0 %v1028
    %v1246 = vpop.f32.mrf.mxu0
    %v1247 = vadd.f32 0.0, %v1246
    %v1248 = vpop.f32.mrf.mxu0
    %v1249 = vadd.f32 0.0, %v1248
    %1250 = vmatmul.bf16.gmra.mxu0 %v1029
    %v1251 = vpop.f32.mrf.mxu0
    %v1252 = vadd.f32 0.0, %v1251
    %v1253 = vpop.f32.mrf.mxu0
    %v1254 = vadd.f32 0.0, %v1253
    %1255 = vmatmul.bf16.gmra.mxu0 %v1030
    %v1256 = vpop.f32.mrf.mxu0
    %v1257 = vadd.f32 0.0, %v1256
    %v1258 = vpop.f32.mrf.mxu0
    %v1259 = vadd.f32 0.0, %v1258
    %1260 = vmatmul.bf16.gmra.mxu0 %v1031
    %v1261 = vpop.f32.mrf.mxu0
    %v1262 = vadd.f32 0.0, %v1261
    %v1263 = vpop.f32.mrf.mxu0
    %v1264 = vadd.f32 0.0, %v1263
    %1265 = vdwg.mxu0
    %v1282 = vunpack.c.l.b16 %v986
    %v1283 = vunpack.c.l.b16 %v987
    %v1284 = vunpack.c.l.b16 %v988
    %v1285 = vunpack.c.l.b16 %v989
    %v1286 = vunpack.c.l.b16 %v990
    %v1287 = vunpack.c.l.b16 %v991
    %v1288 = vunpack.c.l.b16 %v992
    %v1289 = vunpack.c.l.b16 %v993
    %v1290 = vunpack.c.l.b16 %v994
    %v1291 = vunpack.c.l.b16 %v995
    %v1292 = vunpack.c.l.b16 %v996
    %v1293 = vunpack.c.l.b16 %v997
    %v1294 = vunpack.c.l.b16 %v998
    %v1295 = vunpack.c.l.b16 %v999
    %v1296 = vunpack.c.l.b16 %v1000
    %v1297 = vunpack.c.l.b16 %v1001
    %v1298 = vpack.c.b16 %v1283, %v1282
    %v1299 = vpack.c.b16 %v1285, %v1284
    %v1300 = vpack.c.b16 %v1287, %v1286
    %v1301 = vpack.c.b16 %v1289, %v1288
    %v1302 = vpack.c.b16 %v1291, %v1290
    %v1303 = vpack.c.b16 %v1293, %v1292
    %v1304 = vpack.c.b16 %v1295, %v1294
    %v1305 = vpack.c.b16 %v1297, %v1296
    %1314 = vmatpush.bf16.msra.mxu0 %v1305
    %1315 = vmatpush.bf16.msra.mxu0 %v1304
    %1316 = vmatpush.bf16.msra.mxu0 %v1303
    %1317 = vmatpush.bf16.msra.mxu0 %v1302
    %1318 = vmatpush.bf16.msra.mxu0 %v1301
    %1319 = vmatpush.bf16.msra.mxu0 %v1300
    %1320 = vmatpush.bf16.msra.mxu0 %v1299
    %1321 = vmatpush.bf16.msra.mxu0 %v1298
    %1322 = vmatmul.bf16.gmra.mxu0 %v955
    %v1323 = vpop.f32.mrf.mxu0
    %v1324 = vadd.f32 %v1107, %v1323
    %v1325 = vpop.f32.mrf.mxu0
    %v1326 = vadd.f32 %v1109, %v1325
    %1327 = vmatmul.bf16.gmra.mxu0 %v956
    %v1328 = vpop.f32.mrf.mxu0
    %v1329 = vadd.f32 %v1112, %v1328
    %v1330 = vpop.f32.mrf.mxu0
    %v1331 = vadd.f32 %v1114, %v1330
    %1332 = vmatmul.bf16.gmra.mxu0 %v957
    %v1333 = vpop.f32.mrf.mxu0
    %v1334 = vadd.f32 %v1117, %v1333
    %v1335 = vpop.f32.mrf.mxu0
    %v1336 = vadd.f32 %v1119, %v1335
    %1337 = vmatmul.bf16.gmra.mxu0 %v958
    %v1338 = vpop.f32.mrf.mxu0
    %v1339 = vadd.f32 %v1122, %v1338
    %v1340 = vpop.f32.mrf.mxu0
    %v1341 = vadd.f32 %v1124, %v1340
    %1342 = vmatmul.bf16.gmra.mxu0 %v959
    %v1343 = vpop.f32.mrf.mxu0
    %v1344 = vadd.f32 %v1127, %v1343
    %v1345 = vpop.f32.mrf.mxu0
    %v1346 = vadd.f32 %v1129, %v1345
    %1347 = vmatmul.bf16.gmra.mxu0 %v960
    %v1348 = vpop.f32.mrf.mxu0
    %v1349 = vadd.f32 %v1132, %v1348
    %v1350 = vpop.f32.mrf.mxu0
    %v1351 = vadd.f32 %v1134, %v1350
    %1352 = vmatmul.bf16.gmra.mxu0 %v961
    %v1353 = vpop.f32.mrf.mxu0
    %v1354 = vadd.f32 %v1137, %v1353
    %v1355 = vpop.f32.mrf.mxu0
    %v1356 = vadd.f32 %v1139, %v1355
    %1357 = vmatmul.bf16.gmra.mxu0 %v962
    %v1358 = vpop.f32.mrf.mxu0
    %v1359 = vadd.f32 %v1142, %v1358
    %v1360 = vpop.f32.mrf.mxu0
    %v1361 = vadd.f32 %v1144, %v1360
    %1362 = vmatmul.bf16.gmra.mxu0 %v963
    %v1363 = vpop.f32.mrf.mxu0
    %v1364 = vadd.f32 %v1147, %v1363
    %v1365 = vpop.f32.mrf.mxu0
    %v1366 = vadd.f32 %v1149, %v1365
    %1367 = vmatmul.bf16.gmra.mxu0 %v964
    %v1368 = vpop.f32.mrf.mxu0
    %v1369 = vadd.f32 %v1152, %v1368
    %v1370 = vpop.f32.mrf.mxu0
    %v1371 = vadd.f32 %v1154, %v1370
    %1372 = vmatmul.bf16.gmra.mxu0 %v965
    %v1373 = vpop.f32.mrf.mxu0
    %v1374 = vadd.f32 %v1157, %v1373
    %v1375 = vpop.f32.mrf.mxu0
    %v1376 = vadd.f32 %v1159, %v1375
    %1377 = vmatmul.bf16.gmra.mxu0 %v966
    %v1378 = vpop.f32.mrf.mxu0
    %v1379 = vadd.f32 %v1162, %v1378
    %v1380 = vpop.f32.mrf.mxu0
    %v1381 = vadd.f32 %v1164, %v1380
    %1382 = vmatmul.bf16.gmra.mxu0 %v967
    %v1383 = vpop.f32.mrf.mxu0
    %v1384 = vadd.f32 %v1167, %v1383
    %v1385 = vpop.f32.mrf.mxu0
    %v1386 = vadd.f32 %v1169, %v1385
    %1387 = vmatmul.bf16.gmra.mxu0 %v968
    %v1388 = vpop.f32.mrf.mxu0
    %v1389 = vadd.f32 %v1172, %v1388
    %v1390 = vpop.f32.mrf.mxu0
    %v1391 = vadd.f32 %v1174, %v1390
    %1392 = vmatmul.bf16.gmra.mxu0 %v969
    %v1393 = vpop.f32.mrf.mxu0
    %v1394 = vadd.f32 %v1177, %v1393
    %v1395 = vpop.f32.mrf.mxu0
    %v1396 = vadd.f32 %v1179, %v1395
    %1397 = vmatmul.bf16.gmra.mxu0 %v970
    %v1398 = vpop.f32.mrf.mxu0
    %v1399 = vadd.f32 %v1182, %v1398
    %v1400 = vpop.f32.mrf.mxu0
    %v1401 = vadd.f32 %v1184, %v1400
    %1402 = vmatmul.bf16.gmra.mxu0 %v955
    %v1403 = vpop.f32.mrf.mxu0
    %v1404 = vadd.f32 %v1187, %v1403
    %v1405 = vpop.f32.mrf.mxu0
    %v1406 = vadd.f32 %v1189, %v1405
    %1407 = vmatmul.bf16.gmra.mxu0 %v971
    %v1408 = vpop.f32.mrf.mxu0
    %v1409 = vadd.f32 %v1192, %v1408
    %v1410 = vpop.f32.mrf.mxu0
    %v1411 = vadd.f32 %v1194, %v1410
    %1412 = vmatmul.bf16.gmra.mxu0 %v972
    %v1413 = vpop.f32.mrf.mxu0
    %v1414 = vadd.f32 %v1197, %v1413
    %v1415 = vpop.f32.mrf.mxu0
    %v1416 = vadd.f32 %v1199, %v1415
    %1417 = vmatmul.bf16.gmra.mxu0 %v973
    %v1418 = vpop.f32.mrf.mxu0
    %v1419 = vadd.f32 %v1202, %v1418
    %v1420 = vpop.f32.mrf.mxu0
    %v1421 = vadd.f32 %v1204, %v1420
    %1422 = vmatmul.bf16.gmra.mxu0 %v974
    %v1423 = vpop.f32.mrf.mxu0
    %v1424 = vadd.f32 %v1207, %v1423
    %v1425 = vpop.f32.mrf.mxu0
    %v1426 = vadd.f32 %v1209, %v1425
    %1427 = vmatmul.bf16.gmra.mxu0 %v975
    %v1428 = vpop.f32.mrf.mxu0
    %v1429 = vadd.f32 %v1212, %v1428
    %v1430 = vpop.f32.mrf.mxu0
    %v1431 = vadd.f32 %v1214, %v1430
    %1432 = vmatmul.bf16.gmra.mxu0 %v976
    %v1433 = vpop.f32.mrf.mxu0
    %v1434 = vadd.f32 %v1217, %v1433
    %v1435 = vpop.f32.mrf.mxu0
    %v1436 = vadd.f32 %v1219, %v1435
    %1437 = vmatmul.bf16.gmra.mxu0 %v977
    %v1438 = vpop.f32.mrf.mxu0
    %v1439 = vadd.f32 %v1222, %v1438
    %v1440 = vpop.f32.mrf.mxu0
    %v1441 = vadd.f32 %v1224, %v1440
    %1442 = vmatmul.bf16.gmra.mxu0 %v978
    %v1443 = vpop.f32.mrf.mxu0
    %v1444 = vadd.f32 %v1227, %v1443
    %v1445 = vpop.f32.mrf.mxu0
    %v1446 = vadd.f32 %v1229, %v1445
    %1447 = vmatmul.bf16.gmra.mxu0 %v979
    %v1448 = vpop.f32.mrf.mxu0
    %v1449 = vadd.f32 %v1232, %v1448
    %v1450 = vpop.f32.mrf.mxu0
    %v1451 = vadd.f32 %v1234, %v1450
    %1452 = vmatmul.bf16.gmra.mxu0 %v980
    %v1453 = vpop.f32.mrf.mxu0
    %v1454 = vadd.f32 %v1237, %v1453
    %v1455 = vpop.f32.mrf.mxu0
    %v1456 = vadd.f32 %v1239, %v1455
    %1457 = vmatmul.bf16.gmra.mxu0 %v981
    %v1458 = vpop.f32.mrf.mxu0
    %v1459 = vadd.f32 %v1242, %v1458
    %v1460 = vpop.f32.mrf.mxu0
    %v1461 = vadd.f32 %v1244, %v1460
    %1462 = vmatmul.bf16.gmra.mxu0 %v982
    %v1463 = vpop.f32.mrf.mxu0
    %v1464 = vadd.f32 %v1247, %v1463
    %v1465 = vpop.f32.mrf.mxu0
    %v1466 = vadd.f32 %v1249, %v1465
    %1467 = vmatmul.bf16.gmra.mxu0 %v983
    %v1468 = vpop.f32.mrf.mxu0
    %v1469 = vadd.f32 %v1252, %v1468
    %v1470 = vpop.f32.mrf.mxu0
    %v1471 = vadd.f32 %v1254, %v1470
    %1472 = vmatmul.bf16.gmra.mxu0 %v984
    %v1473 = vpop.f32.mrf.mxu0
    %v1474 = vadd.f32 %v1257, %v1473
    %v1475 = vpop.f32.mrf.mxu0
    %v1476 = vadd.f32 %v1259, %v1475
    %1477 = vmatmul.bf16.gmra.mxu0 %v985
    %v1478 = vpop.f32.mrf.mxu0
    %v1479 = vadd.f32 %v1262, %v1478
    %v1480 = vpop.f32.mrf.mxu0
    %v1481 = vadd.f32 %v1264, %v1480
    %1482 = vdwg.mxu0
    %vm1485 = vcmask 1046528
    %v1486 = vrot.slane %v479, 1
    %v1487 = vrot.slane %v481, 1
    %v1488 = vsel %vm1485, %v1486, %v1487
    %v1489 = vrot.slane %v484, 1
    %v1490 = vsel %vm1485, %v1487, %v1489
    %v1491 = vrot.slane %v486, 1
    %v1492 = vsel %vm1485, %v1489, %v1491
    %v1493 = vrot.slane %v489, 1
    %v1494 = vsel %vm1485, %v1491, %v1493
    %v1495 = vrot.slane %v491, 1
    %v1496 = vsel %vm1485, %v1493, %v1495
    %v1497 = vrot.slane %v494, 1
    %v1498 = vsel %vm1485, %v1495, %v1497
    %v1499 = vrot.slane %v496, 1
    %v1500 = vsel %vm1485, %v1497, %v1499
    %v1501 = vrot.slane %v499, 1
    %v1502 = vsel %vm1485, %v1499, %v1501
    %v1503 = vrot.slane %v501, 1
    %v1504 = vsel %vm1485, %v1501, %v1503
    %v1505 = vrot.slane %v504, 1
    %v1506 = vsel %vm1485, %v1503, %v1505
    %v1507 = vrot.slane %v506, 1
    %v1508 = vsel %vm1485, %v1505, %v1507
    %v1509 = vrot.slane %v509, 1
    %v1510 = vsel %vm1485, %v1507, %v1509
    %v1511 = vrot.slane %v511, 1
    %v1512 = vsel %vm1485, %v1509, %v1511
    %v1513 = vrot.slane %v514, 1
    %v1514 = vsel %vm1485, %v1511, %v1513
    %v1515 = vrot.slane %v516, 1
    %v1516 = vsel %vm1485, %v1513, %v1515
    %v1517 = vrot.slane %v519, 1
    %v1518 = vsel %vm1485, %v1515, %v1517
    %v1519 = vrot.slane %v521, 1
    %v1520 = vsel %vm1485, %v1517, %v1519
    %v1521 = vrot.slane %v524, 1
    %v1522 = vsel %vm1485, %v1519, %v1521
    %v1523 = vrot.slane %v526, 1
    %v1524 = vsel %vm1485, %v1521, %v1523
    %v1525 = vrot.slane %v529, 1
    %v1526 = vsel %vm1485, %v1523, %v1525
    %v1527 = vrot.slane %v531, 1
    %v1528 = vsel %vm1485, %v1525, %v1527
    %v1529 = vrot.slane %v534, 1
    %v1530 = vsel %vm1485, %v1527, %v1529
    %v1531 = vrot.slane %v536, 1
    %v1532 = vsel %vm1485, %v1529, %v1531
    %v1533 = vrot.slane %v539, 1
    %v1534 = vsel %vm1485, %v1531, %v1533
    %v1535 = vrot.slane %v541, 1
    %v1536 = vsel %vm1485, %v1533, %v1535
    %v1537 = vrot.slane %v544, 1
    %v1538 = vsel %vm1485, %v1535, %v1537
    %v1539 = vrot.slane %v546, 1
    %v1540 = vsel %vm1485, %v1537, %v1539
    %v1541 = vrot.slane %v549, 1
    %v1542 = vsel %vm1485, %v1539, %v1541
    %v1543 = vrot.slane %v551, 1
    %v1544 = vsel %vm1485, %v1541, %v1543
    %v1545 = vrot.slane %v554, 1
    %v1546 = vsel %vm1485, %v1543, %v1545
    %v1547 = vrot.slane %v559, 1
    %v1548 = vrot.slane %v561, 1
    %v1549 = vsel %vm1485, %v1547, %v1548
    %v1550 = vrot.slane %v564, 1
    %v1551 = vsel %vm1485, %v1548, %v1550
    %v1552 = vrot.slane %v566, 1
    %v1553 = vsel %vm1485, %v1550, %v1552
    %v1554 = vrot.slane %v569, 1
    %v1555 = vsel %vm1485, %v1552, %v1554
    %v1556 = vrot.slane %v571, 1
    %v1557 = vsel %vm1485, %v1554, %v1556
    %v1558 = vrot.slane %v574, 1
    %v1559 = vsel %vm1485, %v1556, %v1558
    %v1560 = vrot.slane %v576, 1
    %v1561 = vsel %vm1485, %v1558, %v1560
    %v1562 = vrot.slane %v579, 1
    %v1563 = vsel %vm1485, %v1560, %v1562
    %v1564 = vrot.slane %v581, 1
    %v1565 = vsel %vm1485, %v1562, %v1564
    %v1566 = vrot.slane %v584, 1
    %v1567 = vsel %vm1485, %v1564, %v1566
    %v1568 = vrot.slane %v586, 1
    %v1569 = vsel %vm1485, %v1566, %v1568
    %v1570 = vrot.slane %v589, 1
    %v1571 = vsel %vm1485, %v1568, %v1570
    %v1572 = vrot.slane %v591, 1
    %v1573 = vsel %vm1485, %v1570, %v1572
    %v1574 = vrot.slane %v594, 1
    %v1575 = vsel %vm1485, %v1572, %v1574
    %v1576 = vrot.slane %v596, 1
    %v1577 = vsel %vm1485, %v1574, %v1576
    %v1578 = vrot.slane %v599, 1
    %v1579 = vsel %vm1485, %v1576, %v1578
    %v1580 = vrot.slane %v601, 1
    %v1581 = vsel %vm1485, %v1578, %v1580
    %v1582 = vrot.slane %v604, 1
    %v1583 = vsel %vm1485, %v1580, %v1582
    %v1584 = vrot.slane %v606, 1
    %v1585 = vsel %vm1485, %v1582, %v1584
    %v1586 = vrot.slane %v609, 1
    %v1587 = vsel %vm1485, %v1584, %v1586
    %v1588 = vrot.slane %v611, 1
    %v1589 = vsel %vm1485, %v1586, %v1588
    %v1590 = vrot.slane %v614, 1
    %v1591 = vsel %vm1485, %v1588, %v1590
    %v1592 = vrot.slane %v616, 1
    %v1593 = vsel %vm1485, %v1590, %v1592
    %v1594 = vrot.slane %v619, 1
    %v1595 = vsel %vm1485, %v1592, %v1594
    %v1596 = vrot.slane %v621, 1
    %v1597 = vsel %vm1485, %v1594, %v1596
    %v1598 = vrot.slane %v624, 1
    %v1599 = vsel %vm1485, %v1596, %v1598
    %v1600 = vrot.slane %v626, 1
    %v1601 = vsel %vm1485, %v1598, %v1600
    %v1602 = vrot.slane %v629, 1
    %v1603 = vsel %vm1485, %v1600, %v1602
    %v1604 = vrot.slane %v631, 1
    %v1605 = vsel %vm1485, %v1602, %v1604
    %v1606 = vrot.slane %v634, 1
    %v1607 = vsel %vm1485, %v1604, %v1606
    %v1668 = vsel %vm643, 1, 0
    %v1669 = vsel %vm644, 1, 0
    %vm1670 = vcmp.eq.s32.totalorder %v1668, 1
    %vm1671 = vcmp.eq.s32.totalorder %v1669, 1
    %v1672 = vsel %vm1670, %v1488, 0.0
    %v1673 = vsel %vm1671, %v1490, 0.0
    %v1674 = vsel %vm1670, %v1492, 0.0
    %v1675 = vsel %vm1671, %v1494, 0.0
    %v1676 = vsel %vm1670, %v1496, 0.0
    %v1677 = vsel %vm1671, %v1498, 0.0
    %v1678 = vsel %vm1670, %v1500, 0.0
    %v1679 = vsel %vm1671, %v1502, 0.0
    %v1680 = vsel %vm1670, %v1504, 0.0
    %v1681 = vsel %vm1671, %v1506, 0.0
    %v1682 = vsel %vm1670, %v1508, 0.0
    %v1683 = vsel %vm1671, %v1510, 0.0
    %v1684 = vsel %vm1670, %v1512, 0.0
    %v1685 = vsel %vm1671, %v1514, 0.0
    %v1686 = vsel %vm1670, %v1516, 0.0
    %v1687 = vsel %vm1671, %v1518, 0.0
    %v1688 = vsel %vm1670, %v1520, 0.0
    %v1689 = vsel %vm1671, %v1522, 0.0
    %v1690 = vsel %vm1670, %v1524, 0.0
    %v1691 = vsel %vm1671, %v1526, 0.0
    %v1692 = vsel %vm1670, %v1528, 0.0
    %v1693 = vsel %vm1671, %v1530, 0.0
    %v1694 = vsel %vm1670, %v1532, 0.0
    %v1695 = vsel %vm1671, %v1534, 0.0
    %v1696 = vsel %vm1670, %v1536, 0.0
    %v1697 = vsel %vm1671, %v1538, 0.0
    %v1698 = vsel %vm1670, %v1540, 0.0
    %v1699 = vsel %vm1671, %v1542, 0.0
    %v1700 = vsel %vm1670, %v1544, 0.0
    %v1701 = vsel %vm1671, %v1546, 0.0
    %v1702 = vsel %vm1670, %v1549, 0.0
    %v1703 = vsel %vm1671, %v1551, 0.0
    %v1704 = vsel %vm1670, %v1553, 0.0
    %v1705 = vsel %vm1671, %v1555, 0.0
    %v1706 = vsel %vm1670, %v1557, 0.0
    %v1707 = vsel %vm1671, %v1559, 0.0
    %v1708 = vsel %vm1670, %v1561, 0.0
    %v1709 = vsel %vm1671, %v1563, 0.0
    %v1710 = vsel %vm1670, %v1565, 0.0
    %v1711 = vsel %vm1671, %v1567, 0.0
    %v1712 = vsel %vm1670, %v1569, 0.0
    %v1713 = vsel %vm1671, %v1571, 0.0
    %v1714 = vsel %vm1670, %v1573, 0.0
    %v1715 = vsel %vm1671, %v1575, 0.0
    %v1716 = vsel %vm1670, %v1577, 0.0
    %v1717 = vsel %vm1671, %v1579, 0.0
    %v1718 = vsel %vm1670, %v1581, 0.0
    %v1719 = vsel %vm1671, %v1583, 0.0
    %v1720 = vsel %vm1670, %v1585, 0.0
    %v1721 = vsel %vm1671, %v1587, 0.0
    %v1722 = vsel %vm1670, %v1589, 0.0
    %v1723 = vsel %vm1671, %v1591, 0.0
    %v1724 = vsel %vm1670, %v1593, 0.0
    %v1725 = vsel %vm1671, %v1595, 0.0
    %v1726 = vsel %vm1670, %v1597, 0.0
    %v1727 = vsel %vm1671, %v1599, 0.0
    %v1728 = vsel %vm1670, %v1601, 0.0
    %v1729 = vsel %vm1671, %v1603, 0.0
    %v1730 = vsel %vm1670, %v1605, 0.0
    %v1731 = vsel %vm1671, %v1607, 0.0
    %v1732 = vpack.c.bf16 %v1673, %v1672
    %v1733 = vpack.c.bf16 %v1675, %v1674
    %v1734 = vpack.c.bf16 %v1677, %v1676
    %v1735 = vpack.c.bf16 %v1679, %v1678
    %v1736 = vpack.c.bf16 %v1681, %v1680
    %v1737 = vpack.c.bf16 %v1683, %v1682
    %v1738 = vpack.c.bf16 %v1685, %v1684
    %v1739 = vpack.c.bf16 %v1687, %v1686
    %v1740 = vpack.c.bf16 %v1689, %v1688
    %v1741 = vpack.c.bf16 %v1691, %v1690
    %v1742 = vpack.c.bf16 %v1693, %v1692
    %v1743 = vpack.c.bf16 %v1695, %v1694
    %v1744 = vpack.c.bf16 %v1697, %v1696
    %v1745 = vpack.c.bf16 %v1699, %v1698
    %v1746 = vpack.c.bf16 %v1701, %v1700
    %v1747 = vpack.c.bf16 %v1703, %v1702
    %v1748 = vpack.c.bf16 %v1705, %v1704
    %v1749 = vpack.c.bf16 %v1707, %v1706
    %v1750 = vpack.c.bf16 %v1709, %v1708
    %v1751 = vpack.c.bf16 %v1711, %v1710
    %v1752 = vpack.c.bf16 %v1713, %v1712
    %v1753 = vpack.c.bf16 %v1715, %v1714
    %v1754 = vpack.c.bf16 %v1717, %v1716
    %v1755 = vpack.c.bf16 %v1719, %v1718
    %v1756 = vpack.c.bf16 %v1721, %v1720
    %v1757 = vpack.c.bf16 %v1723, %v1722
    %v1758 = vpack.c.bf16 %v1725, %v1724
    %v1759 = vpack.c.bf16 %v1727, %v1726
    %v1760 = vpack.c.bf16 %v1729, %v1728
    %v1761 = vpack.c.bf16 %v1731, %v1730
    %s1762 = scalar_lea.vmem %s3, 128
    %v1763 = vld [vmem:[%s1762] sm:$0xf]
    %v1764 = vld [vmem:[%s1762 + $0x4] sm:$0xf]
    %v1765 = vld [vmem:[%s1762 + $0x8] sm:$0xf]
    %v1766 = vld [vmem:[%s1762 + $0xc] sm:$0xf]
    %v1767 = vld [vmem:[%s1762 + $0x10] sm:$0xf]
    %v1768 = vld [vmem:[%s1762 + $0x14] sm:$0xf]
    %v1769 = vld [vmem:[%s1762 + $0x18] sm:$0xf]
    %v1770 = vld [vmem:[%s1762 + $0x1c] sm:$0xf]
    %v1771 = vld [vmem:[%s1762 + $0x20] sm:$0xf]
    %v1772 = vld [vmem:[%s1762 + $0x24] sm:$0xf]
    %v1773 = vld [vmem:[%s1762 + $0x28] sm:$0xf]
    %v1774 = vld [vmem:[%s1762 + $0x2c] sm:$0xf]
    %v1775 = vld [vmem:[%s1762 + $0x30] sm:$0xf]
    %v1776 = vld [vmem:[%s1762 + $0x34] sm:$0xf]
    %v1777 = vld [vmem:[%s1762 + $0x38] sm:$0xf]
    %v1778 = vld [vmem:[%s1762 + $0x3c] sm:$0xf]
    %v1795 = vunpack.c.l.b16 %v1763
    %v1796 = vunpack.c.l.b16 %v1764
    %v1797 = vunpack.c.l.b16 %v1765
    %v1798 = vunpack.c.l.b16 %v1766
    %v1799 = vunpack.c.l.b16 %v1767
    %v1800 = vunpack.c.l.b16 %v1768
    %v1801 = vunpack.c.l.b16 %v1769
    %v1802 = vunpack.c.l.b16 %v1770
    %v1803 = vunpack.c.l.b16 %v1771
    %v1804 = vunpack.c.l.b16 %v1772
    %v1805 = vunpack.c.l.b16 %v1773
    %v1806 = vunpack.c.l.b16 %v1774
    %v1807 = vunpack.c.l.b16 %v1775
    %v1808 = vunpack.c.l.b16 %v1776
    %v1809 = vunpack.c.l.b16 %v1777
    %v1810 = vunpack.c.l.b16 %v1778
    %v1811 = vpack.c.b16 %v1796, %v1795
    %v1812 = vpack.c.b16 %v1798, %v1797
    %v1813 = vpack.c.b16 %v1800, %v1799
    %v1814 = vpack.c.b16 %v1802, %v1801
    %v1815 = vpack.c.b16 %v1804, %v1803
    %v1816 = vpack.c.b16 %v1806, %v1805
    %v1817 = vpack.c.b16 %v1808, %v1807
    %v1818 = vpack.c.b16 %v1810, %v1809
    %1827 = vmatpush.bf16.msra.mxu0 %v1818
    %1828 = vmatpush.bf16.msra.mxu0 %v1817
    %1829 = vmatpush.bf16.msra.mxu0 %v1816
    %1830 = vmatpush.bf16.msra.mxu0 %v1815
    %1831 = vmatpush.bf16.msra.mxu0 %v1814
    %1832 = vmatpush.bf16.msra.mxu0 %v1813
    %1833 = vmatpush.bf16.msra.mxu0 %v1812
    %1834 = vmatpush.bf16.msra.mxu0 %v1811
    %1835 = vmatmul.bf16.gmra.mxu0 %v955
    %v1836 = vpop.f32.mrf.mxu0
    %v1837 = vadd.f32 0.0, %v1836
    %v1838 = vpop.f32.mrf.mxu0
    %v1839 = vadd.f32 0.0, %v1838
    %1840 = vmatmul.bf16.gmra.mxu0 %v1732
    %v1841 = vpop.f32.mrf.mxu0
    %v1842 = vadd.f32 0.0, %v1841
    %v1843 = vpop.f32.mrf.mxu0
    %v1844 = vadd.f32 0.0, %v1843
    %1845 = vmatmul.bf16.gmra.mxu0 %v1733
    %v1846 = vpop.f32.mrf.mxu0
    %v1847 = vadd.f32 0.0, %v1846
    %v1848 = vpop.f32.mrf.mxu0
    %v1849 = vadd.f32 0.0, %v1848
    %1850 = vmatmul.bf16.gmra.mxu0 %v1734
    %v1851 = vpop.f32.mrf.mxu0
    %v1852 = vadd.f32 0.0, %v1851
    %v1853 = vpop.f32.mrf.mxu0
    %v1854 = vadd.f32 0.0, %v1853
    %1855 = vmatmul.bf16.gmra.mxu0 %v1735
    %v1856 = vpop.f32.mrf.mxu0
    %v1857 = vadd.f32 0.0, %v1856
    %v1858 = vpop.f32.mrf.mxu0
    %v1859 = vadd.f32 0.0, %v1858
    %1860 = vmatmul.bf16.gmra.mxu0 %v1736
    %v1861 = vpop.f32.mrf.mxu0
    %v1862 = vadd.f32 0.0, %v1861
    %v1863 = vpop.f32.mrf.mxu0
    %v1864 = vadd.f32 0.0, %v1863
    %1865 = vmatmul.bf16.gmra.mxu0 %v1737
    %v1866 = vpop.f32.mrf.mxu0
    %v1867 = vadd.f32 0.0, %v1866
    %v1868 = vpop.f32.mrf.mxu0
    %v1869 = vadd.f32 0.0, %v1868
    %1870 = vmatmul.bf16.gmra.mxu0 %v1738
    %v1871 = vpop.f32.mrf.mxu0
    %v1872 = vadd.f32 0.0, %v1871
    %v1873 = vpop.f32.mrf.mxu0
    %v1874 = vadd.f32 0.0, %v1873
    %1875 = vmatmul.bf16.gmra.mxu0 %v1739
    %v1876 = vpop.f32.mrf.mxu0
    %v1877 = vadd.f32 0.0, %v1876
    %v1878 = vpop.f32.mrf.mxu0
    %v1879 = vadd.f32 0.0, %v1878
    %1880 = vmatmul.bf16.gmra.mxu0 %v1740
    %v1881 = vpop.f32.mrf.mxu0
    %v1882 = vadd.f32 0.0, %v1881
    %v1883 = vpop.f32.mrf.mxu0
    %v1884 = vadd.f32 0.0, %v1883
    %1885 = vmatmul.bf16.gmra.mxu0 %v1741
    %v1886 = vpop.f32.mrf.mxu0
    %v1887 = vadd.f32 0.0, %v1886
    %v1888 = vpop.f32.mrf.mxu0
    %v1889 = vadd.f32 0.0, %v1888
    %1890 = vmatmul.bf16.gmra.mxu0 %v1742
    %v1891 = vpop.f32.mrf.mxu0
    %v1892 = vadd.f32 0.0, %v1891
    %v1893 = vpop.f32.mrf.mxu0
    %v1894 = vadd.f32 0.0, %v1893
    %1895 = vmatmul.bf16.gmra.mxu0 %v1743
    %v1896 = vpop.f32.mrf.mxu0
    %v1897 = vadd.f32 0.0, %v1896
    %v1898 = vpop.f32.mrf.mxu0
    %v1899 = vadd.f32 0.0, %v1898
    %1900 = vmatmul.bf16.gmra.mxu0 %v1744
    %v1901 = vpop.f32.mrf.mxu0
    %v1902 = vadd.f32 0.0, %v1901
    %v1903 = vpop.f32.mrf.mxu0
    %v1904 = vadd.f32 0.0, %v1903
    %1905 = vmatmul.bf16.gmra.mxu0 %v1745
    %v1906 = vpop.f32.mrf.mxu0
    %v1907 = vadd.f32 0.0, %v1906
    %v1908 = vpop.f32.mrf.mxu0
    %v1909 = vadd.f32 0.0, %v1908
    %1910 = vmatmul.bf16.gmra.mxu0 %v1746
    %v1911 = vpop.f32.mrf.mxu0
    %v1912 = vadd.f32 0.0, %v1911
    %v1913 = vpop.f32.mrf.mxu0
    %v1914 = vadd.f32 0.0, %v1913
    %1915 = vmatmul.bf16.gmra.mxu0 %v955
    %v1916 = vpop.f32.mrf.mxu0
    %v1917 = vadd.f32 0.0, %v1916
    %v1918 = vpop.f32.mrf.mxu0
    %v1919 = vadd.f32 0.0, %v1918
    %1920 = vmatmul.bf16.gmra.mxu0 %v1747
    %v1921 = vpop.f32.mrf.mxu0
    %v1922 = vadd.f32 0.0, %v1921
    %v1923 = vpop.f32.mrf.mxu0
    %v1924 = vadd.f32 0.0, %v1923
    %1925 = vmatmul.bf16.gmra.mxu0 %v1748
    %v1926 = vpop.f32.mrf.mxu0
    %v1927 = vadd.f32 0.0, %v1926
    %v1928 = vpop.f32.mrf.mxu0
    %v1929 = vadd.f32 0.0, %v1928
    %1930 = vmatmul.bf16.gmra.mxu0 %v1749
    %v1931 = vpop.f32.mrf.mxu0
    %v1932 = vadd.f32 0.0, %v1931
    %v1933 = vpop.f32.mrf.mxu0
    %v1934 = vadd.f32 0.0, %v1933
    %1935 = vmatmul.bf16.gmra.mxu0 %v1750
    %v1936 = vpop.f32.mrf.mxu0
    %v1937 = vadd.f32 0.0, %v1936
    %v1938 = vpop.f32.mrf.mxu0
    %v1939 = vadd.f32 0.0, %v1938
    %1940 = vmatmul.bf16.gmra.mxu0 %v1751
    %v1941 = vpop.f32.mrf.mxu0
    %v1942 = vadd.f32 0.0, %v1941
    %v1943 = vpop.f32.mrf.mxu0
    %v1944 = vadd.f32 0.0, %v1943
    %1945 = vmatmul.bf16.gmra.mxu0 %v1752
    %v1946 = vpop.f32.mrf.mxu0
    %v1947 = vadd.f32 0.0, %v1946
    %v1948 = vpop.f32.mrf.mxu0
    %v1949 = vadd.f32 0.0, %v1948
    %1950 = vmatmul.bf16.gmra.mxu0 %v1753
    %v1951 = vpop.f32.mrf.mxu0
    %v1952 = vadd.f32 0.0, %v1951
    %v1953 = vpop.f32.mrf.mxu0
    %v1954 = vadd.f32 0.0, %v1953
    %1955 = vmatmul.bf16.gmra.mxu0 %v1754
    %v1956 = vpop.f32.mrf.mxu0
    %v1957 = vadd.f32 0.0, %v1956
    %v1958 = vpop.f32.mrf.mxu0
    %v1959 = vadd.f32 0.0, %v1958
    %1960 = vmatmul.bf16.gmra.mxu0 %v1755
    %v1961 = vpop.f32.mrf.mxu0
    %v1962 = vadd.f32 0.0, %v1961
    %v1963 = vpop.f32.mrf.mxu0
    %v1964 = vadd.f32 0.0, %v1963
    %1965 = vmatmul.bf16.gmra.mxu0 %v1756
    %v1966 = vpop.f32.mrf.mxu0
    %v1967 = vadd.f32 0.0, %v1966
    %v1968 = vpop.f32.mrf.mxu0
    %v1969 = vadd.f32 0.0, %v1968
    %1970 = vmatmul.bf16.gmra.mxu0 %v1757
    %v1971 = vpop.f32.mrf.mxu0
    %v1972 = vadd.f32 0.0, %v1971
    %v1973 = vpop.f32.mrf.mxu0
    %v1974 = vadd.f32 0.0, %v1973
    %1975 = vmatmul.bf16.gmra.mxu0 %v1758
    %v1976 = vpop.f32.mrf.mxu0
    %v1977 = vadd.f32 0.0, %v1976
    %v1978 = vpop.f32.mrf.mxu0
    %v1979 = vadd.f32 0.0, %v1978
    %1980 = vmatmul.bf16.gmra.mxu0 %v1759
    %v1981 = vpop.f32.mrf.mxu0
    %v1982 = vadd.f32 0.0, %v1981
    %v1983 = vpop.f32.mrf.mxu0
    %v1984 = vadd.f32 0.0, %v1983
    %1985 = vmatmul.bf16.gmra.mxu0 %v1760
    %v1986 = vpop.f32.mrf.mxu0
    %v1987 = vadd.f32 0.0, %v1986
    %v1988 = vpop.f32.mrf.mxu0
    %v1989 = vadd.f32 0.0, %v1988
    %1990 = vmatmul.bf16.gmra.mxu0 %v1761
    %v1991 = vpop.f32.mrf.mxu0
    %v1992 = vadd.f32 0.0, %v1991
    %v1993 = vpop.f32.mrf.mxu0
    %v1994 = vadd.f32 0.0, %v1993
    %1995 = vdwg.mxu0
    %v1996 = vadd.f32 %v1324, %v1837
    %v1997 = vadd.f32 %v1326, %v1839
    %v1998 = vadd.f32 %v1329, %v1842
    %v1999 = vadd.f32 %v1331, %v1844
    %v2000 = vadd.f32 %v1334, %v1847
    %v2001 = vadd.f32 %v1336, %v1849
    %v2002 = vadd.f32 %v1339, %v1852
    %v2003 = vadd.f32 %v1341, %v1854
    %v2004 = vadd.f32 %v1344, %v1857
    %v2005 = vadd.f32 %v1346, %v1859
    %v2006 = vadd.f32 %v1349, %v1862
    %v2007 = vadd.f32 %v1351, %v1864
    %v2008 = vadd.f32 %v1354, %v1867
    %v2009 = vadd.f32 %v1356, %v1869
    %v2010 = vadd.f32 %v1359, %v1872
    %v2011 = vadd.f32 %v1361, %v1874
    %v2012 = vadd.f32 %v1364, %v1877
    %v2013 = vadd.f32 %v1366, %v1879
    %v2014 = vadd.f32 %v1369, %v1882
    %v2015 = vadd.f32 %v1371, %v1884
    %v2016 = vadd.f32 %v1374, %v1887
    %v2017 = vadd.f32 %v1376, %v1889
    %v2018 = vadd.f32 %v1379, %v1892
    %v2019 = vadd.f32 %v1381, %v1894
    %v2020 = vadd.f32 %v1384, %v1897
    %v2021 = vadd.f32 %v1386, %v1899
    %v2022 = vadd.f32 %v1389, %v1902
    %v2023 = vadd.f32 %v1391, %v1904
    %v2024 = vadd.f32 %v1394, %v1907
    %v2025 = vadd.f32 %v1396, %v1909
    %v2026 = vadd.f32 %v1399, %v1912
    %v2027 = vadd.f32 %v1401, %v1914
    %v2028 = vadd.f32 %v1404, %v1917
    %v2029 = vadd.f32 %v1406, %v1919
    %v2030 = vadd.f32 %v1409, %v1922
    %v2031 = vadd.f32 %v1411, %v1924
    %v2032 = vadd.f32 %v1414, %v1927
    %v2033 = vadd.f32 %v1416, %v1929
    %v2034 = vadd.f32 %v1419, %v1932
    %v2035 = vadd.f32 %v1421, %v1934
    %v2036 = vadd.f32 %v1424, %v1937
    %v2037 = vadd.f32 %v1426, %v1939
    %v2038 = vadd.f32 %v1429, %v1942
    %v2039 = vadd.f32 %v1431, %v1944
    %v2040 = vadd.f32 %v1434, %v1947
    %v2041 = vadd.f32 %v1436, %v1949
    %v2042 = vadd.f32 %v1439, %v1952
    %v2043 = vadd.f32 %v1441, %v1954
    %v2044 = vadd.f32 %v1444, %v1957
    %v2045 = vadd.f32 %v1446, %v1959
    %v2046 = vadd.f32 %v1449, %v1962
    %v2047 = vadd.f32 %v1451, %v1964
    %v2048 = vadd.f32 %v1454, %v1967
    %v2049 = vadd.f32 %v1456, %v1969
    %v2050 = vadd.f32 %v1459, %v1972
    %v2051 = vadd.f32 %v1461, %v1974
    %v2052 = vadd.f32 %v1464, %v1977
    %v2053 = vadd.f32 %v1466, %v1979
    %v2054 = vadd.f32 %v1469, %v1982
    %v2055 = vadd.f32 %v1471, %v1984
    %v2056 = vadd.f32 %v1474, %v1987
    %v2057 = vadd.f32 %v1476, %v1989
    %v2058 = vadd.f32 %v1479, %v1992
    %v2059 = vadd.f32 %v1481, %v1994
    %v2060 = vrot.slane %v554, 7
    %v2061 = vsel %vm709, %v767, %v2060
    %v2062 = vsel %vm709, %v2060, %v769
    %v2063 = vrot.slane %v634, 7
    %v2064 = vsel %vm709, %v828, %v2063
    %v2065 = vsel %vm709, %v2063, %v646
    %v2070 = vsel %vm893, %v2061, 0.0
    %v2071 = vsel %vm894, %v2062, 0.0
    %v2072 = vsel %vm893, %v2064, 0.0
    %v2073 = vsel %vm894, %v2065, 0.0
    %v2074 = vpack.c.bf16 %v2071, %v2070
    %v2075 = vpack.c.bf16 %v2073, %v2072
    %s2076 = scalar_lea.vmem %s3, 192
    %v2077 = vld [vmem:[%s2076] sm:$0xf]
    %v2078 = vld [vmem:[%s2076 + $0x4] sm:$0xf]
    %v2079 = vld [vmem:[%s2076 + $0x8] sm:$0xf]
    %v2080 = vld [vmem:[%s2076 + $0xc] sm:$0xf]
    %v2081 = vld [vmem:[%s2076 + $0x10] sm:$0xf]
    %v2082 = vld [vmem:[%s2076 + $0x14] sm:$0xf]
    %v2083 = vld [vmem:[%s2076 + $0x18] sm:$0xf]
    %v2084 = vld [vmem:[%s2076 + $0x1c] sm:$0xf]
    %v2085 = vld [vmem:[%s2076 + $0x20] sm:$0xf]
    %v2086 = vld [vmem:[%s2076 + $0x24] sm:$0xf]
    %v2087 = vld [vmem:[%s2076 + $0x28] sm:$0xf]
    %v2088 = vld [vmem:[%s2076 + $0x2c] sm:$0xf]
    %v2089 = vld [vmem:[%s2076 + $0x30] sm:$0xf]
    %v2090 = vld [vmem:[%s2076 + $0x34] sm:$0xf]
    %v2091 = vld [vmem:[%s2076 + $0x38] sm:$0xf]
    %v2092 = vld [vmem:[%s2076 + $0x3c] sm:$0xf]
    %v2109 = vunpack.c.l.b16 %v2077
    %v2110 = vunpack.c.l.b16 %v2078
    %v2111 = vunpack.c.l.b16 %v2079
    %v2112 = vunpack.c.l.b16 %v2080
    %v2113 = vunpack.c.l.b16 %v2081
    %v2114 = vunpack.c.l.b16 %v2082
    %v2115 = vunpack.c.l.b16 %v2083
    %v2116 = vunpack.c.l.b16 %v2084
    %v2117 = vunpack.c.l.b16 %v2085
    %v2118 = vunpack.c.l.b16 %v2086
    %v2119 = vunpack.c.l.b16 %v2087
    %v2120 = vunpack.c.l.b16 %v2088
    %v2121 = vunpack.c.l.b16 %v2089
    %v2122 = vunpack.c.l.b16 %v2090
    %v2123 = vunpack.c.l.b16 %v2091
    %v2124 = vunpack.c.l.b16 %v2092
    %v2125 = vpack.c.b16 %v2110, %v2109
    %v2126 = vpack.c.b16 %v2112, %v2111
    %v2127 = vpack.c.b16 %v2114, %v2113
    %v2128 = vpack.c.b16 %v2116, %v2115
    %v2129 = vpack.c.b16 %v2118, %v2117
    %v2130 = vpack.c.b16 %v2120, %v2119
    %v2131 = vpack.c.b16 %v2122, %v2121
    %v2132 = vpack.c.b16 %v2124, %v2123
    %2141 = vmatpush.bf16.msra.mxu0 %v2132
    %2142 = vmatpush.bf16.msra.mxu0 %v2131
    %2143 = vmatpush.bf16.msra.mxu0 %v2130
    %2144 = vmatpush.bf16.msra.mxu0 %v2129
    %2145 = vmatpush.bf16.msra.mxu0 %v2128
    %2146 = vmatpush.bf16.msra.mxu0 %v2127
    %2147 = vmatpush.bf16.msra.mxu0 %v2126
    %2148 = vmatpush.bf16.msra.mxu0 %v2125
    %2149 = vmatmul.bf16.gmra.mxu0 %v956
    %v2150 = vpop.f32.mrf.mxu0
    %v2151 = vadd.f32 0.0, %v2150
    %v2152 = vpop.f32.mrf.mxu0
    %v2153 = vadd.f32 0.0, %v2152
    %2154 = vmatmul.bf16.gmra.mxu0 %v957
    %v2155 = vpop.f32.mrf.mxu0
    %v2156 = vadd.f32 0.0, %v2155
    %v2157 = vpop.f32.mrf.mxu0
    %v2158 = vadd.f32 0.0, %v2157
    %2159 = vmatmul.bf16.gmra.mxu0 %v958
    %v2160 = vpop.f32.mrf.mxu0
    %v2161 = vadd.f32 0.0, %v2160
    %v2162 = vpop.f32.mrf.mxu0
    %v2163 = vadd.f32 0.0, %v2162
    %2164 = vmatmul.bf16.gmra.mxu0 %v959
    %v2165 = vpop.f32.mrf.mxu0
    %v2166 = vadd.f32 0.0, %v2165
    %v2167 = vpop.f32.mrf.mxu0
    %v2168 = vadd.f32 0.0, %v2167
    %2169 = vmatmul.bf16.gmra.mxu0 %v960
    %v2170 = vpop.f32.mrf.mxu0
    %v2171 = vadd.f32 0.0, %v2170
    %v2172 = vpop.f32.mrf.mxu0
    %v2173 = vadd.f32 0.0, %v2172
    %2174 = vmatmul.bf16.gmra.mxu0 %v961
    %v2175 = vpop.f32.mrf.mxu0
    %v2176 = vadd.f32 0.0, %v2175
    %v2177 = vpop.f32.mrf.mxu0
    %v2178 = vadd.f32 0.0, %v2177
    %2179 = vmatmul.bf16.gmra.mxu0 %v962
    %v2180 = vpop.f32.mrf.mxu0
    %v2181 = vadd.f32 0.0, %v2180
    %v2182 = vpop.f32.mrf.mxu0
    %v2183 = vadd.f32 0.0, %v2182
    %2184 = vmatmul.bf16.gmra.mxu0 %v963
    %v2185 = vpop.f32.mrf.mxu0
    %v2186 = vadd.f32 0.0, %v2185
    %v2187 = vpop.f32.mrf.mxu0
    %v2188 = vadd.f32 0.0, %v2187
    %2189 = vmatmul.bf16.gmra.mxu0 %v964
    %v2190 = vpop.f32.mrf.mxu0
    %v2191 = vadd.f32 0.0, %v2190
    %v2192 = vpop.f32.mrf.mxu0
    %v2193 = vadd.f32 0.0, %v2192
    %2194 = vmatmul.bf16.gmra.mxu0 %v965
    %v2195 = vpop.f32.mrf.mxu0
    %v2196 = vadd.f32 0.0, %v2195
    %v2197 = vpop.f32.mrf.mxu0
    %v2198 = vadd.f32 0.0, %v2197
    %2199 = vmatmul.bf16.gmra.mxu0 %v966
    %v2200 = vpop.f32.mrf.mxu0
    %v2201 = vadd.f32 0.0, %v2200
    %v2202 = vpop.f32.mrf.mxu0
    %v2203 = vadd.f32 0.0, %v2202
    %2204 = vmatmul.bf16.gmra.mxu0 %v967
    %v2205 = vpop.f32.mrf.mxu0
    %v2206 = vadd.f32 0.0, %v2205
    %v2207 = vpop.f32.mrf.mxu0
    %v2208 = vadd.f32 0.0, %v2207
    %2209 = vmatmul.bf16.gmra.mxu0 %v968
    %v2210 = vpop.f32.mrf.mxu0
    %v2211 = vadd.f32 0.0, %v2210
    %v2212 = vpop.f32.mrf.mxu0
    %v2213 = vadd.f32 0.0, %v2212
    %2214 = vmatmul.bf16.gmra.mxu0 %v969
    %v2215 = vpop.f32.mrf.mxu0
    %v2216 = vadd.f32 0.0, %v2215
    %v2217 = vpop.f32.mrf.mxu0
    %v2218 = vadd.f32 0.0, %v2217
    %2219 = vmatmul.bf16.gmra.mxu0 %v970
    %v2220 = vpop.f32.mrf.mxu0
    %v2221 = vadd.f32 0.0, %v2220
    %v2222 = vpop.f32.mrf.mxu0
    %v2223 = vadd.f32 0.0, %v2222
    %2224 = vmatmul.bf16.gmra.mxu0 %v2074
    %v2225 = vpop.f32.mrf.mxu0
    %v2226 = vadd.f32 0.0, %v2225
    %v2227 = vpop.f32.mrf.mxu0
    %v2228 = vadd.f32 0.0, %v2227
    %2229 = vmatmul.bf16.gmra.mxu0 %v971
    %v2230 = vpop.f32.mrf.mxu0
    %v2231 = vadd.f32 0.0, %v2230
    %v2232 = vpop.f32.mrf.mxu0
    %v2233 = vadd.f32 0.0, %v2232
    %2234 = vmatmul.bf16.gmra.mxu0 %v972
    %v2235 = vpop.f32.mrf.mxu0
    %v2236 = vadd.f32 0.0, %v2235
    %v2237 = vpop.f32.mrf.mxu0
    %v2238 = vadd.f32 0.0, %v2237
    %2239 = vmatmul.bf16.gmra.mxu0 %v973
    %v2240 = vpop.f32.mrf.mxu0
    %v2241 = vadd.f32 0.0, %v2240
    %v2242 = vpop.f32.mrf.mxu0
    %v2243 = vadd.f32 0.0, %v2242
    %2244 = vmatmul.bf16.gmra.mxu0 %v974
    %v2245 = vpop.f32.mrf.mxu0
    %v2246 = vadd.f32 0.0, %v2245
    %v2247 = vpop.f32.mrf.mxu0
    %v2248 = vadd.f32 0.0, %v2247
    %2249 = vmatmul.bf16.gmra.mxu0 %v975
    %v2250 = vpop.f32.mrf.mxu0
    %v2251 = vadd.f32 0.0, %v2250
    %v2252 = vpop.f32.mrf.mxu0
    %v2253 = vadd.f32 0.0, %v2252
    %2254 = vmatmul.bf16.gmra.mxu0 %v976
    %v2255 = vpop.f32.mrf.mxu0
    %v2256 = vadd.f32 0.0, %v2255
    %v2257 = vpop.f32.mrf.mxu0
    %v2258 = vadd.f32 0.0, %v2257
    %2259 = vmatmul.bf16.gmra.mxu0 %v977
    %v2260 = vpop.f32.mrf.mxu0
    %v2261 = vadd.f32 0.0, %v2260
    %v2262 = vpop.f32.mrf.mxu0
    %v2263 = vadd.f32 0.0, %v2262
    %2264 = vmatmul.bf16.gmra.mxu0 %v978
    %v2265 = vpop.f32.mrf.mxu0
    %v2266 = vadd.f32 0.0, %v2265
    %v2267 = vpop.f32.mrf.mxu0
    %v2268 = vadd.f32 0.0, %v2267
    %2269 = vmatmul.bf16.gmra.mxu0 %v979
    %v2270 = vpop.f32.mrf.mxu0
    %v2271 = vadd.f32 0.0, %v2270
    %v2272 = vpop.f32.mrf.mxu0
    %v2273 = vadd.f32 0.0, %v2272
    %2274 = vmatmul.bf16.gmra.mxu0 %v980
    %v2275 = vpop.f32.mrf.mxu0
    %v2276 = vadd.f32 0.0, %v2275
    %v2277 = vpop.f32.mrf.mxu0
    %v2278 = vadd.f32 0.0, %v2277
    %2279 = vmatmul.bf16.gmra.mxu0 %v981
    %v2280 = vpop.f32.mrf.mxu0
    %v2281 = vadd.f32 0.0, %v2280
    %v2282 = vpop.f32.mrf.mxu0
    %v2283 = vadd.f32 0.0, %v2282
    %2284 = vmatmul.bf16.gmra.mxu0 %v982
    %v2285 = vpop.f32.mrf.mxu0
    %v2286 = vadd.f32 0.0, %v2285
    %v2287 = vpop.f32.mrf.mxu0
    %v2288 = vadd.f32 0.0, %v2287
    %2289 = vmatmul.bf16.gmra.mxu0 %v983
    %v2290 = vpop.f32.mrf.mxu0
    %v2291 = vadd.f32 0.0, %v2290
    %v2292 = vpop.f32.mrf.mxu0
    %v2293 = vadd.f32 0.0, %v2292
    %2294 = vmatmul.bf16.gmra.mxu0 %v984
    %v2295 = vpop.f32.mrf.mxu0
    %v2296 = vadd.f32 0.0, %v2295
    %v2297 = vpop.f32.mrf.mxu0
    %v2298 = vadd.f32 0.0, %v2297
    %2299 = vmatmul.bf16.gmra.mxu0 %v985
    %v2300 = vpop.f32.mrf.mxu0
    %v2301 = vadd.f32 0.0, %v2300
    %v2302 = vpop.f32.mrf.mxu0
    %v2303 = vadd.f32 0.0, %v2302
    %2304 = vmatmul.bf16.gmra.mxu0 %v2075
    %v2305 = vpop.f32.mrf.mxu0
    %v2306 = vadd.f32 0.0, %v2305
    %v2307 = vpop.f32.mrf.mxu0
    %v2308 = vadd.f32 0.0, %v2307
    %2309 = vdwg.mxu0
    %v2310 = vadd.f32 %v1996, %v2151
    %v2311 = vadd.f32 %v1997, %v2153
    %v2312 = vadd.f32 %v1998, %v2156
    %v2313 = vadd.f32 %v1999, %v2158
    %v2314 = vadd.f32 %v2000, %v2161
    %v2315 = vadd.f32 %v2001, %v2163
    %v2316 = vadd.f32 %v2002, %v2166
    %v2317 = vadd.f32 %v2003, %v2168
    %v2318 = vadd.f32 %v2004, %v2171
    %v2319 = vadd.f32 %v2005, %v2173
    %v2320 = vadd.f32 %v2006, %v2176
    %v2321 = vadd.f32 %v2007, %v2178
    %v2322 = vadd.f32 %v2008, %v2181
    %v2323 = vadd.f32 %v2009, %v2183
    %v2324 = vadd.f32 %v2010, %v2186
    %v2325 = vadd.f32 %v2011, %v2188
    %v2326 = vadd.f32 %v2012, %v2191
    %v2327 = vadd.f32 %v2013, %v2193
    %v2328 = vadd.f32 %v2014, %v2196
    %v2329 = vadd.f32 %v2015, %v2198
    %v2330 = vadd.f32 %v2016, %v2201
    %v2331 = vadd.f32 %v2017, %v2203
    %v2332 = vadd.f32 %v2018, %v2206
    %v2333 = vadd.f32 %v2019, %v2208
    %v2334 = vadd.f32 %v2020, %v2211
    %v2335 = vadd.f32 %v2021, %v2213
    %v2336 = vadd.f32 %v2022, %v2216
    %v2337 = vadd.f32 %v2023, %v2218
    %v2338 = vadd.f32 %v2024, %v2221
    %v2339 = vadd.f32 %v2025, %v2223
    %v2340 = vadd.f32 %v2026, %v2226
    %v2341 = vadd.f32 %v2027, %v2228
    %v2342 = vadd.f32 %v2028, %v2231
    %v2343 = vadd.f32 %v2029, %v2233
    %v2344 = vadd.f32 %v2030, %v2236
    %v2345 = vadd.f32 %v2031, %v2238
    %v2346 = vadd.f32 %v2032, %v2241
    %v2347 = vadd.f32 %v2033, %v2243
    %v2348 = vadd.f32 %v2034, %v2246
    %v2349 = vadd.f32 %v2035, %v2248
    %v2350 = vadd.f32 %v2036, %v2251
    %v2351 = vadd.f32 %v2037, %v2253
    %v2352 = vadd.f32 %v2038, %v2256
    %v2353 = vadd.f32 %v2039, %v2258
    %v2354 = vadd.f32 %v2040, %v2261
    %v2355 = vadd.f32 %v2041, %v2263
    %v2356 = vadd.f32 %v2042, %v2266
    %v2357 = vadd.f32 %v2043, %v2268
    %v2358 = vadd.f32 %v2044, %v2271
    %v2359 = vadd.f32 %v2045, %v2273
    %v2360 = vadd.f32 %v2046, %v2276
    %v2361 = vadd.f32 %v2047, %v2278
    %v2362 = vadd.f32 %v2048, %v2281
    %v2363 = vadd.f32 %v2049, %v2283
    %v2364 = vadd.f32 %v2050, %v2286
    %v2365 = vadd.f32 %v2051, %v2288
    %v2366 = vadd.f32 %v2052, %v2291
    %v2367 = vadd.f32 %v2053, %v2293
    %v2368 = vadd.f32 %v2054, %v2296
    %v2369 = vadd.f32 %v2055, %v2298
    %v2370 = vadd.f32 %v2056, %v2301
    %v2371 = vadd.f32 %v2057, %v2303
    %v2372 = vadd.f32 %v2058, %v2306
    %v2373 = vadd.f32 %v2059, %v2308
    %v2374 = vpack.c.bf16 %v556, %v554
    %v2375 = vpack.c.bf16 %v636, %v634
    %s2376 = scalar_lea.vmem %s3, 256
    %v2377 = vld [vmem:[%s2376] sm:$0xf]
    %v2378 = vld [vmem:[%s2376 + $0x4] sm:$0xf]
    %v2379 = vld [vmem:[%s2376 + $0x8] sm:$0xf]
    %v2380 = vld [vmem:[%s2376 + $0xc] sm:$0xf]
    %v2381 = vld [vmem:[%s2376 + $0x10] sm:$0xf]
    %v2382 = vld [vmem:[%s2376 + $0x14] sm:$0xf]
    %v2383 = vld [vmem:[%s2376 + $0x18] sm:$0xf]
    %v2384 = vld [vmem:[%s2376 + $0x1c] sm:$0xf]
    %v2385 = vld [vmem:[%s2376 + $0x20] sm:$0xf]
    %v2386 = vld [vmem:[%s2376 + $0x24] sm:$0xf]
    %v2387 = vld [vmem:[%s2376 + $0x28] sm:$0xf]
    %v2388 = vld [vmem:[%s2376 + $0x2c] sm:$0xf]
    %v2389 = vld [vmem:[%s2376 + $0x30] sm:$0xf]
    %v2390 = vld [vmem:[%s2376 + $0x34] sm:$0xf]
    %v2391 = vld [vmem:[%s2376 + $0x38] sm:$0xf]
    %v2392 = vld [vmem:[%s2376 + $0x3c] sm:$0xf]
    %v2409 = vunpack.c.l.b16 %v2377
    %v2410 = vunpack.c.l.b16 %v2378
    %v2411 = vunpack.c.l.b16 %v2379
    %v2412 = vunpack.c.l.b16 %v2380
    %v2413 = vunpack.c.l.b16 %v2381
    %v2414 = vunpack.c.l.b16 %v2382
    %v2415 = vunpack.c.l.b16 %v2383
    %v2416 = vunpack.c.l.b16 %v2384
    %v2417 = vunpack.c.l.b16 %v2385
    %v2418 = vunpack.c.l.b16 %v2386
    %v2419 = vunpack.c.l.b16 %v2387
    %v2420 = vunpack.c.l.b16 %v2388
    %v2421 = vunpack.c.l.b16 %v2389
    %v2422 = vunpack.c.l.b16 %v2390
    %v2423 = vunpack.c.l.b16 %v2391
    %v2424 = vunpack.c.l.b16 %v2392
    %v2425 = vpack.c.b16 %v2410, %v2409
    %v2426 = vpack.c.b16 %v2412, %v2411
    %v2427 = vpack.c.b16 %v2414, %v2413
    %v2428 = vpack.c.b16 %v2416, %v2415
    %v2429 = vpack.c.b16 %v2418, %v2417
    %v2430 = vpack.c.b16 %v2420, %v2419
    %v2431 = vpack.c.b16 %v2422, %v2421
    %v2432 = vpack.c.b16 %v2424, %v2423
    %2441 = vmatpush.bf16.msra.mxu0 %v2432
    %2442 = vmatpush.bf16.msra.mxu0 %v2431
    %2443 = vmatpush.bf16.msra.mxu0 %v2430
    %2444 = vmatpush.bf16.msra.mxu0 %v2429
    %2445 = vmatpush.bf16.msra.mxu0 %v2428
    %2446 = vmatpush.bf16.msra.mxu0 %v2427
    %2447 = vmatpush.bf16.msra.mxu0 %v2426
    %2448 = vmatpush.bf16.msra.mxu0 %v2425
    %2449 = vmatmul.bf16.gmra.mxu0 %v1002
    %v2450 = vpop.f32.mrf.mxu0
    %v2451 = vadd.f32 0.0, %v2450
    %v2452 = vpop.f32.mrf.mxu0
    %v2453 = vadd.f32 0.0, %v2452
    %2454 = vmatmul.bf16.gmra.mxu0 %v1003
    %v2455 = vpop.f32.mrf.mxu0
    %v2456 = vadd.f32 0.0, %v2455
    %v2457 = vpop.f32.mrf.mxu0
    %v2458 = vadd.f32 0.0, %v2457
    %2459 = vmatmul.bf16.gmra.mxu0 %v1004
    %v2460 = vpop.f32.mrf.mxu0
    %v2461 = vadd.f32 0.0, %v2460
    %v2462 = vpop.f32.mrf.mxu0
    %v2463 = vadd.f32 0.0, %v2462
    %2464 = vmatmul.bf16.gmra.mxu0 %v1005
    %v2465 = vpop.f32.mrf.mxu0
    %v2466 = vadd.f32 0.0, %v2465
    %v2467 = vpop.f32.mrf.mxu0
    %v2468 = vadd.f32 0.0, %v2467
    %2469 = vmatmul.bf16.gmra.mxu0 %v1006
    %v2470 = vpop.f32.mrf.mxu0
    %v2471 = vadd.f32 0.0, %v2470
    %v2472 = vpop.f32.mrf.mxu0
    %v2473 = vadd.f32 0.0, %v2472
    %2474 = vmatmul.bf16.gmra.mxu0 %v1007
    %v2475 = vpop.f32.mrf.mxu0
    %v2476 = vadd.f32 0.0, %v2475
    %v2477 = vpop.f32.mrf.mxu0
    %v2478 = vadd.f32 0.0, %v2477
    %2479 = vmatmul.bf16.gmra.mxu0 %v1008
    %v2480 = vpop.f32.mrf.mxu0
    %v2481 = vadd.f32 0.0, %v2480
    %v2482 = vpop.f32.mrf.mxu0
    %v2483 = vadd.f32 0.0, %v2482
    %2484 = vmatmul.bf16.gmra.mxu0 %v1009
    %v2485 = vpop.f32.mrf.mxu0
    %v2486 = vadd.f32 0.0, %v2485
    %v2487 = vpop.f32.mrf.mxu0
    %v2488 = vadd.f32 0.0, %v2487
    %2489 = vmatmul.bf16.gmra.mxu0 %v1010
    %v2490 = vpop.f32.mrf.mxu0
    %v2491 = vadd.f32 0.0, %v2490
    %v2492 = vpop.f32.mrf.mxu0
    %v2493 = vadd.f32 0.0, %v2492
    %2494 = vmatmul.bf16.gmra.mxu0 %v1011
    %v2495 = vpop.f32.mrf.mxu0
    %v2496 = vadd.f32 0.0, %v2495
    %v2497 = vpop.f32.mrf.mxu0
    %v2498 = vadd.f32 0.0, %v2497
    %2499 = vmatmul.bf16.gmra.mxu0 %v1012
    %v2500 = vpop.f32.mrf.mxu0
    %v2501 = vadd.f32 0.0, %v2500
    %v2502 = vpop.f32.mrf.mxu0
    %v2503 = vadd.f32 0.0, %v2502
    %2504 = vmatmul.bf16.gmra.mxu0 %v1013
    %v2505 = vpop.f32.mrf.mxu0
    %v2506 = vadd.f32 0.0, %v2505
    %v2507 = vpop.f32.mrf.mxu0
    %v2508 = vadd.f32 0.0, %v2507
    %2509 = vmatmul.bf16.gmra.mxu0 %v1014
    %v2510 = vpop.f32.mrf.mxu0
    %v2511 = vadd.f32 0.0, %v2510
    %v2512 = vpop.f32.mrf.mxu0
    %v2513 = vadd.f32 0.0, %v2512
    %2514 = vmatmul.bf16.gmra.mxu0 %v1015
    %v2515 = vpop.f32.mrf.mxu0
    %v2516 = vadd.f32 0.0, %v2515
    %v2517 = vpop.f32.mrf.mxu0
    %v2518 = vadd.f32 0.0, %v2517
    %2519 = vmatmul.bf16.gmra.mxu0 %v1016
    %v2520 = vpop.f32.mrf.mxu0
    %v2521 = vadd.f32 0.0, %v2520
    %v2522 = vpop.f32.mrf.mxu0
    %v2523 = vadd.f32 0.0, %v2522
    %2524 = vmatmul.bf16.gmra.mxu0 %v2374
    %v2525 = vpop.f32.mrf.mxu0
    %v2526 = vadd.f32 0.0, %v2525
    %v2527 = vpop.f32.mrf.mxu0
    %v2528 = vadd.f32 0.0, %v2527
    %2529 = vmatmul.bf16.gmra.mxu0 %v1017
    %v2530 = vpop.f32.mrf.mxu0
    %v2531 = vadd.f32 0.0, %v2530
    %v2532 = vpop.f32.mrf.mxu0
    %v2533 = vadd.f32 0.0, %v2532
    %2534 = vmatmul.bf16.gmra.mxu0 %v1018
    %v2535 = vpop.f32.mrf.mxu0
    %v2536 = vadd.f32 0.0, %v2535
    %v2537 = vpop.f32.mrf.mxu0
    %v2538 = vadd.f32 0.0, %v2537
    %2539 = vmatmul.bf16.gmra.mxu0 %v1019
    %v2540 = vpop.f32.mrf.mxu0
    %v2541 = vadd.f32 0.0, %v2540
    %v2542 = vpop.f32.mrf.mxu0
    %v2543 = vadd.f32 0.0, %v2542
    %2544 = vmatmul.bf16.gmra.mxu0 %v1020
    %v2545 = vpop.f32.mrf.mxu0
    %v2546 = vadd.f32 0.0, %v2545
    %v2547 = vpop.f32.mrf.mxu0
    %v2548 = vadd.f32 0.0, %v2547
    %2549 = vmatmul.bf16.gmra.mxu0 %v1021
    %v2550 = vpop.f32.mrf.mxu0
    %v2551 = vadd.f32 0.0, %v2550
    %v2552 = vpop.f32.mrf.mxu0
    %v2553 = vadd.f32 0.0, %v2552
    %2554 = vmatmul.bf16.gmra.mxu0 %v1022
    %v2555 = vpop.f32.mrf.mxu0
    %v2556 = vadd.f32 0.0, %v2555
    %v2557 = vpop.f32.mrf.mxu0
    %v2558 = vadd.f32 0.0, %v2557
    %2559 = vmatmul.bf16.gmra.mxu0 %v1023
    %v2560 = vpop.f32.mrf.mxu0
    %v2561 = vadd.f32 0.0, %v2560
    %v2562 = vpop.f32.mrf.mxu0
    %v2563 = vadd.f32 0.0, %v2562
    %2564 = vmatmul.bf16.gmra.mxu0 %v1024
    %v2565 = vpop.f32.mrf.mxu0
    %v2566 = vadd.f32 0.0, %v2565
    %v2567 = vpop.f32.mrf.mxu0
    %v2568 = vadd.f32 0.0, %v2567
    %2569 = vmatmul.bf16.gmra.mxu0 %v1025
    %v2570 = vpop.f32.mrf.mxu0
    %v2571 = vadd.f32 0.0, %v2570
    %v2572 = vpop.f32.mrf.mxu0
    %v2573 = vadd.f32 0.0, %v2572
    %2574 = vmatmul.bf16.gmra.mxu0 %v1026
    %v2575 = vpop.f32.mrf.mxu0
    %v2576 = vadd.f32 0.0, %v2575
    %v2577 = vpop.f32.mrf.mxu0
    %v2578 = vadd.f32 0.0, %v2577
    %2579 = vmatmul.bf16.gmra.mxu0 %v1027
    %v2580 = vpop.f32.mrf.mxu0
    %v2581 = vadd.f32 0.0, %v2580
    %v2582 = vpop.f32.mrf.mxu0
    %v2583 = vadd.f32 0.0, %v2582
    %2584 = vmatmul.bf16.gmra.mxu0 %v1028
    %v2585 = vpop.f32.mrf.mxu0
    %v2586 = vadd.f32 0.0, %v2585
    %v2587 = vpop.f32.mrf.mxu0
    %v2588 = vadd.f32 0.0, %v2587
    %2589 = vmatmul.bf16.gmra.mxu0 %v1029
    %v2590 = vpop.f32.mrf.mxu0
    %v2591 = vadd.f32 0.0, %v2590
    %v2592 = vpop.f32.mrf.mxu0
    %v2593 = vadd.f32 0.0, %v2592
    %2594 = vmatmul.bf16.gmra.mxu0 %v1030
    %v2595 = vpop.f32.mrf.mxu0
    %v2596 = vadd.f32 0.0, %v2595
    %v2597 = vpop.f32.mrf.mxu0
    %v2598 = vadd.f32 0.0, %v2597
    %2599 = vmatmul.bf16.gmra.mxu0 %v1031
    %v2600 = vpop.f32.mrf.mxu0
    %v2601 = vadd.f32 0.0, %v2600
    %v2602 = vpop.f32.mrf.mxu0
    %v2603 = vadd.f32 0.0, %v2602
    %2604 = vmatmul.bf16.gmra.mxu0 %v2375
    %v2605 = vpop.f32.mrf.mxu0
    %v2606 = vadd.f32 0.0, %v2605
    %v2607 = vpop.f32.mrf.mxu0
    %v2608 = vadd.f32 0.0, %v2607
    %2609 = vdwg.mxu0
    %v2610 = vadd.f32 %v2310, %v2451
    %v2611 = vadd.f32 %v2311, %v2453
    %v2612 = vadd.f32 %v2312, %v2456
    %v2613 = vadd.f32 %v2313, %v2458
    %v2614 = vadd.f32 %v2314, %v2461
    %v2615 = vadd.f32 %v2315, %v2463
    %v2616 = vadd.f32 %v2316, %v2466
    %v2617 = vadd.f32 %v2317, %v2468
    %v2618 = vadd.f32 %v2318, %v2471
    %v2619 = vadd.f32 %v2319, %v2473
    %v2620 = vadd.f32 %v2320, %v2476
    %v2621 = vadd.f32 %v2321, %v2478
    %v2622 = vadd.f32 %v2322, %v2481
    %v2623 = vadd.f32 %v2323, %v2483
    %v2624 = vadd.f32 %v2324, %v2486
    %v2625 = vadd.f32 %v2325, %v2488
    %v2626 = vadd.f32 %v2326, %v2491
    %v2627 = vadd.f32 %v2327, %v2493
    %v2628 = vadd.f32 %v2328, %v2496
    %v2629 = vadd.f32 %v2329, %v2498
    %v2630 = vadd.f32 %v2330, %v2501
    %v2631 = vadd.f32 %v2331, %v2503
    %v2632 = vadd.f32 %v2332, %v2506
    %v2633 = vadd.f32 %v2333, %v2508
    %v2634 = vadd.f32 %v2334, %v2511
    %v2635 = vadd.f32 %v2335, %v2513
    %v2636 = vadd.f32 %v2336, %v2516
    %v2637 = vadd.f32 %v2337, %v2518
    %v2638 = vadd.f32 %v2338, %v2521
    %v2639 = vadd.f32 %v2339, %v2523
    %v2640 = vadd.f32 %v2340, %v2526
    %v2641 = vadd.f32 %v2341, %v2528
    %v2642 = vadd.f32 %v2342, %v2531
    %v2643 = vadd.f32 %v2343, %v2533
    %v2644 = vadd.f32 %v2344, %v2536
    %v2645 = vadd.f32 %v2345, %v2538
    %v2646 = vadd.f32 %v2346, %v2541
    %v2647 = vadd.f32 %v2347, %v2543
    %v2648 = vadd.f32 %v2348, %v2546
    %v2649 = vadd.f32 %v2349, %v2548
    %v2650 = vadd.f32 %v2350, %v2551
    %v2651 = vadd.f32 %v2351, %v2553
    %v2652 = vadd.f32 %v2352, %v2556
    %v2653 = vadd.f32 %v2353, %v2558
    %v2654 = vadd.f32 %v2354, %v2561
    %v2655 = vadd.f32 %v2355, %v2563
    %v2656 = vadd.f32 %v2356, %v2566
    %v2657 = vadd.f32 %v2357, %v2568
    %v2658 = vadd.f32 %v2358, %v2571
    %v2659 = vadd.f32 %v2359, %v2573
    %v2660 = vadd.f32 %v2360, %v2576
    %v2661 = vadd.f32 %v2361, %v2578
    %v2662 = vadd.f32 %v2362, %v2581
    %v2663 = vadd.f32 %v2363, %v2583
    %v2664 = vadd.f32 %v2364, %v2586
    %v2665 = vadd.f32 %v2365, %v2588
    %v2666 = vadd.f32 %v2366, %v2591
    %v2667 = vadd.f32 %v2367, %v2593
    %v2668 = vadd.f32 %v2368, %v2596
    %v2669 = vadd.f32 %v2369, %v2598
    %v2670 = vadd.f32 %v2370, %v2601
    %v2671 = vadd.f32 %v2371, %v2603
    %v2672 = vadd.f32 %v2372, %v2606
    %v2673 = vadd.f32 %v2373, %v2608
    %v2674 = vrot.slane %v556, 1
    %v2675 = vsel %vm1485, %v1545, %v2674
    %v2676 = vsel %vm1485, %v2674, %v1547
    %v2677 = vrot.slane %v636, 1
    %v2678 = vsel %vm1485, %v1606, %v2677
    %v2684 = vsel %vm1485, %v2677, %v1486
    %v2685 = vsel %vm1670, %v2675, 0.0
    %v2686 = vsel %vm1671, %v2676, 0.0
    %v2687 = vsel %vm1670, %v2678, 0.0
    %v2688 = vsel %vm1671, %v2684, 0.0
    %v2689 = vpack.c.bf16 %v2686, %v2685
    %v2690 = vpack.c.bf16 %v2688, %v2687
    %s2691 = scalar_lea.vmem %s3, 320
    %v2692 = vld [vmem:[%s2691] sm:$0xf]
    %v2693 = vld [vmem:[%s2691 + $0x4] sm:$0xf]
    %v2694 = vld [vmem:[%s2691 + $0x8] sm:$0xf]
    %v2695 = vld [vmem:[%s2691 + $0xc] sm:$0xf]
    %v2696 = vld [vmem:[%s2691 + $0x10] sm:$0xf]
    %v2697 = vld [vmem:[%s2691 + $0x14] sm:$0xf]
    %v2698 = vld [vmem:[%s2691 + $0x18] sm:$0xf]
    %v2699 = vld [vmem:[%s2691 + $0x1c] sm:$0xf]
    %v2700 = vld [vmem:[%s2691 + $0x20] sm:$0xf]
    %v2701 = vld [vmem:[%s2691 + $0x24] sm:$0xf]
    %v2702 = vld [vmem:[%s2691 + $0x28] sm:$0xf]
    %v2703 = vld [vmem:[%s2691 + $0x2c] sm:$0xf]
    %v2704 = vld [vmem:[%s2691 + $0x30] sm:$0xf]
    %v2705 = vld [vmem:[%s2691 + $0x34] sm:$0xf]
    %v2706 = vld [vmem:[%s2691 + $0x38] sm:$0xf]
    %v2707 = vld [vmem:[%s2691 + $0x3c] sm:$0xf]
    %v2724 = vunpack.c.l.b16 %v2692
    %v2725 = vunpack.c.l.b16 %v2693
    %v2726 = vunpack.c.l.b16 %v2694
    %v2727 = vunpack.c.l.b16 %v2695
    %v2728 = vunpack.c.l.b16 %v2696
    %v2729 = vunpack.c.l.b16 %v2697
    %v2730 = vunpack.c.l.b16 %v2698
    %v2731 = vunpack.c.l.b16 %v2699
    %v2732 = vunpack.c.l.b16 %v2700
    %v2733 = vunpack.c.l.b16 %v2701
    %v2734 = vunpack.c.l.b16 %v2702
    %v2735 = vunpack.c.l.b16 %v2703
    %v2736 = vunpack.c.l.b16 %v2704
    %v2737 = vunpack.c.l.b16 %v2705
    %v2738 = vunpack.c.l.b16 %v2706
    %v2739 = vunpack.c.l.b16 %v2707
    %v2740 = vpack.c.b16 %v2725, %v2724
    %v2741 = vpack.c.b16 %v2727, %v2726
    %v2742 = vpack.c.b16 %v2729, %v2728
    %v2743 = vpack.c.b16 %v2731, %v2730
    %v2744 = vpack.c.b16 %v2733, %v2732
    %v2745 = vpack.c.b16 %v2735, %v2734
    %v2746 = vpack.c.b16 %v2737, %v2736
    %v2747 = vpack.c.b16 %v2739, %v2738
    %2756 = vmatpush.bf16.msra.mxu0 %v2747
    %2757 = vmatpush.bf16.msra.mxu0 %v2746
    %2758 = vmatpush.bf16.msra.mxu0 %v2745
    %2759 = vmatpush.bf16.msra.mxu0 %v2744
    %2760 = vmatpush.bf16.msra.mxu0 %v2743
    %2761 = vmatpush.bf16.msra.mxu0 %v2742
    %2762 = vmatpush.bf16.msra.mxu0 %v2741
    %2763 = vmatpush.bf16.msra.mxu0 %v2740
    %2764 = vmatmul.bf16.gmra.mxu0 %v1732
    %v2765 = vpop.f32.mrf.mxu0
    %v2766 = vadd.f32 0.0, %v2765
    %v2767 = vpop.f32.mrf.mxu0
    %v2768 = vadd.f32 0.0, %v2767
    %2769 = vmatmul.bf16.gmra.mxu0 %v1733
    %v2770 = vpop.f32.mrf.mxu0
    %v2771 = vadd.f32 0.0, %v2770
    %v2772 = vpop.f32.mrf.mxu0
    %v2773 = vadd.f32 0.0, %v2772
    %2774 = vmatmul.bf16.gmra.mxu0 %v1734
    %v2775 = vpop.f32.mrf.mxu0
    %v2776 = vadd.f32 0.0, %v2775
    %v2777 = vpop.f32.mrf.mxu0
    %v2778 = vadd.f32 0.0, %v2777
    %2779 = vmatmul.bf16.gmra.mxu0 %v1735
    %v2780 = vpop.f32.mrf.mxu0
    %v2781 = vadd.f32 0.0, %v2780
    %v2782 = vpop.f32.mrf.mxu0
    %v2783 = vadd.f32 0.0, %v2782
    %2784 = vmatmul.bf16.gmra.mxu0 %v1736
    %v2785 = vpop.f32.mrf.mxu0
    %v2786 = vadd.f32 0.0, %v2785
    %v2787 = vpop.f32.mrf.mxu0
    %v2788 = vadd.f32 0.0, %v2787
    %2789 = vmatmul.bf16.gmra.mxu0 %v1737
    %v2790 = vpop.f32.mrf.mxu0
    %v2791 = vadd.f32 0.0, %v2790
    %v2792 = vpop.f32.mrf.mxu0
    %v2793 = vadd.f32 0.0, %v2792
    %2794 = vmatmul.bf16.gmra.mxu0 %v1738
    %v2795 = vpop.f32.mrf.mxu0
    %v2796 = vadd.f32 0.0, %v2795
    %v2797 = vpop.f32.mrf.mxu0
    %v2798 = vadd.f32 0.0, %v2797
    %2799 = vmatmul.bf16.gmra.mxu0 %v1739
    %v2800 = vpop.f32.mrf.mxu0
    %v2801 = vadd.f32 0.0, %v2800
    %v2802 = vpop.f32.mrf.mxu0
    %v2803 = vadd.f32 0.0, %v2802
    %2804 = vmatmul.bf16.gmra.mxu0 %v1740
    %v2805 = vpop.f32.mrf.mxu0
    %v2806 = vadd.f32 0.0, %v2805
    %v2807 = vpop.f32.mrf.mxu0
    %v2808 = vadd.f32 0.0, %v2807
    %2809 = vmatmul.bf16.gmra.mxu0 %v1741
    %v2810 = vpop.f32.mrf.mxu0
    %v2811 = vadd.f32 0.0, %v2810
    %v2812 = vpop.f32.mrf.mxu0
    %v2813 = vadd.f32 0.0, %v2812
    %2814 = vmatmul.bf16.gmra.mxu0 %v1742
    %v2815 = vpop.f32.mrf.mxu0
    %v2816 = vadd.f32 0.0, %v2815
    %v2817 = vpop.f32.mrf.mxu0
    %v2818 = vadd.f32 0.0, %v2817
    %2819 = vmatmul.bf16.gmra.mxu0 %v1743
    %v2820 = vpop.f32.mrf.mxu0
    %v2821 = vadd.f32 0.0, %v2820
    %v2822 = vpop.f32.mrf.mxu0
    %v2823 = vadd.f32 0.0, %v2822
    %2824 = vmatmul.bf16.gmra.mxu0 %v1744
    %v2825 = vpop.f32.mrf.mxu0
    %v2826 = vadd.f32 0.0, %v2825
    %v2827 = vpop.f32.mrf.mxu0
    %v2828 = vadd.f32 0.0, %v2827
    %2829 = vmatmul.bf16.gmra.mxu0 %v1745
    %v2830 = vpop.f32.mrf.mxu0
    %v2831 = vadd.f32 0.0, %v2830
    %v2832 = vpop.f32.mrf.mxu0
    %v2833 = vadd.f32 0.0, %v2832
    %2834 = vmatmul.bf16.gmra.mxu0 %v1746
    %v2835 = vpop.f32.mrf.mxu0
    %v2836 = vadd.f32 0.0, %v2835
    %v2837 = vpop.f32.mrf.mxu0
    %v2838 = vadd.f32 0.0, %v2837
    %2839 = vmatmul.bf16.gmra.mxu0 %v2689
    %v2840 = vpop.f32.mrf.mxu0
    %v2841 = vadd.f32 0.0, %v2840
    %v2842 = vpop.f32.mrf.mxu0
    %v2843 = vadd.f32 0.0, %v2842
    %2844 = vmatmul.bf16.gmra.mxu0 %v1747
    %v2845 = vpop.f32.mrf.mxu0
    %v2846 = vadd.f32 0.0, %v2845
    %v2847 = vpop.f32.mrf.mxu0
    %v2848 = vadd.f32 0.0, %v2847
    %2849 = vmatmul.bf16.gmra.mxu0 %v1748
    %v2850 = vpop.f32.mrf.mxu0
    %v2851 = vadd.f32 0.0, %v2850
    %v2852 = vpop.f32.mrf.mxu0
    %v2853 = vadd.f32 0.0, %v2852
    %2854 = vmatmul.bf16.gmra.mxu0 %v1749
    %v2855 = vpop.f32.mrf.mxu0
    %v2856 = vadd.f32 0.0, %v2855
    %v2857 = vpop.f32.mrf.mxu0
    %v2858 = vadd.f32 0.0, %v2857
    %2859 = vmatmul.bf16.gmra.mxu0 %v1750
    %v2860 = vpop.f32.mrf.mxu0
    %v2861 = vadd.f32 0.0, %v2860
    %v2862 = vpop.f32.mrf.mxu0
    %v2863 = vadd.f32 0.0, %v2862
    %2864 = vmatmul.bf16.gmra.mxu0 %v1751
    %v2865 = vpop.f32.mrf.mxu0
    %v2866 = vadd.f32 0.0, %v2865
    %v2867 = vpop.f32.mrf.mxu0
    %v2868 = vadd.f32 0.0, %v2867
    %2869 = vmatmul.bf16.gmra.mxu0 %v1752
    %v2870 = vpop.f32.mrf.mxu0
    %v2871 = vadd.f32 0.0, %v2870
    %v2872 = vpop.f32.mrf.mxu0
    %v2873 = vadd.f32 0.0, %v2872
    %2874 = vmatmul.bf16.gmra.mxu0 %v1753
    %v2875 = vpop.f32.mrf.mxu0
    %v2876 = vadd.f32 0.0, %v2875
    %v2877 = vpop.f32.mrf.mxu0
    %v2878 = vadd.f32 0.0, %v2877
    %2879 = vmatmul.bf16.gmra.mxu0 %v1754
    %v2880 = vpop.f32.mrf.mxu0
    %v2881 = vadd.f32 0.0, %v2880
    %v2882 = vpop.f32.mrf.mxu0
    %v2883 = vadd.f32 0.0, %v2882
    %2884 = vmatmul.bf16.gmra.mxu0 %v1755
    %v2885 = vpop.f32.mrf.mxu0
    %v2886 = vadd.f32 0.0, %v2885
    %v2887 = vpop.f32.mrf.mxu0
    %v2888 = vadd.f32 0.0, %v2887
    %2889 = vmatmul.bf16.gmra.mxu0 %v1756
    %v2890 = vpop.f32.mrf.mxu0
    %v2891 = vadd.f32 0.0, %v2890
    %v2892 = vpop.f32.mrf.mxu0
    %v2893 = vadd.f32 0.0, %v2892
    %2894 = vmatmul.bf16.gmra.mxu0 %v1757
    %v2895 = vpop.f32.mrf.mxu0
    %v2896 = vadd.f32 0.0, %v2895
    %v2897 = vpop.f32.mrf.mxu0
    %v2898 = vadd.f32 0.0, %v2897
    %2899 = vmatmul.bf16.gmra.mxu0 %v1758
    %v2900 = vpop.f32.mrf.mxu0
    %v2901 = vadd.f32 0.0, %v2900
    %v2902 = vpop.f32.mrf.mxu0
    %v2903 = vadd.f32 0.0, %v2902
    %2904 = vmatmul.bf16.gmra.mxu0 %v1759
    %v2905 = vpop.f32.mrf.mxu0
    %v2906 = vadd.f32 0.0, %v2905
    %v2907 = vpop.f32.mrf.mxu0
    %v2908 = vadd.f32 0.0, %v2907
    %2909 = vmatmul.bf16.gmra.mxu0 %v1760
    %v2910 = vpop.f32.mrf.mxu0
    %v2911 = vadd.f32 0.0, %v2910
    %v2912 = vpop.f32.mrf.mxu0
    %v2913 = vadd.f32 0.0, %v2912
    %2914 = vmatmul.bf16.gmra.mxu0 %v1761
    %v2915 = vpop.f32.mrf.mxu0
    %v2916 = vadd.f32 0.0, %v2915
    %v2917 = vpop.f32.mrf.mxu0
    %v2918 = vadd.f32 0.0, %v2917
    %2919 = vmatmul.bf16.gmra.mxu0 %v2690
    %v2920 = vpop.f32.mrf.mxu0
    %v2921 = vadd.f32 0.0, %v2920
    %v2922 = vpop.f32.mrf.mxu0
    %v2923 = vadd.f32 0.0, %v2922
    %2924 = vdwg.mxu0
    %v2925 = vadd.f32 %v2610, %v2766
    %v2926 = vadd.f32 %v2611, %v2768
    %v2927 = vadd.f32 %v2612, %v2771
    %v2928 = vadd.f32 %v2613, %v2773
    %v2929 = vadd.f32 %v2614, %v2776
    %v2930 = vadd.f32 %v2615, %v2778
    %v2931 = vadd.f32 %v2616, %v2781
    %v2932 = vadd.f32 %v2617, %v2783
    %v2933 = vadd.f32 %v2618, %v2786
    %v2934 = vadd.f32 %v2619, %v2788
    %v2935 = vadd.f32 %v2620, %v2791
    %v2936 = vadd.f32 %v2621, %v2793
    %v2937 = vadd.f32 %v2622, %v2796
    %v2938 = vadd.f32 %v2623, %v2798
    %v2939 = vadd.f32 %v2624, %v2801
    %v2940 = vadd.f32 %v2625, %v2803
    %v2941 = vadd.f32 %v2626, %v2806
    %v2942 = vadd.f32 %v2627, %v2808
    %v2943 = vadd.f32 %v2628, %v2811
    %v2944 = vadd.f32 %v2629, %v2813
    %v2945 = vadd.f32 %v2630, %v2816
    %v2946 = vadd.f32 %v2631, %v2818
    %v2947 = vadd.f32 %v2632, %v2821
    %v2948 = vadd.f32 %v2633, %v2823
    %v2949 = vadd.f32 %v2634, %v2826
    %v2950 = vadd.f32 %v2635, %v2828
    %v2951 = vadd.f32 %v2636, %v2831
    %v2952 = vadd.f32 %v2637, %v2833
    %v2953 = vadd.f32 %v2638, %v2836
    %v2954 = vadd.f32 %v2639, %v2838
    %v2955 = vadd.f32 %v2640, %v2841
    %v2956 = vadd.f32 %v2641, %v2843
    %v2957 = vadd.f32 %v2642, %v2846
    %v2958 = vadd.f32 %v2643, %v2848
    %v2959 = vadd.f32 %v2644, %v2851
    %v2960 = vadd.f32 %v2645, %v2853
    %v2961 = vadd.f32 %v2646, %v2856
    %v2962 = vadd.f32 %v2647, %v2858
    %v2963 = vadd.f32 %v2648, %v2861
    %v2964 = vadd.f32 %v2649, %v2863
    %v2965 = vadd.f32 %v2650, %v2866
    %v2966 = vadd.f32 %v2651, %v2868
    %v2967 = vadd.f32 %v2652, %v2871
    %v2968 = vadd.f32 %v2653, %v2873
    %v2969 = vadd.f32 %v2654, %v2876
    %v2970 = vadd.f32 %v2655, %v2878
    %v2971 = vadd.f32 %v2656, %v2881
    %v2972 = vadd.f32 %v2657, %v2883
    %v2973 = vadd.f32 %v2658, %v2886
    %v2974 = vadd.f32 %v2659, %v2888
    %v2975 = vadd.f32 %v2660, %v2891
    %v2976 = vadd.f32 %v2661, %v2893
    %v2977 = vadd.f32 %v2662, %v2896
    %v2978 = vadd.f32 %v2663, %v2898
    %v2979 = vadd.f32 %v2664, %v2901
    %v2980 = vadd.f32 %v2665, %v2903
    %v2981 = vadd.f32 %v2666, %v2906
    %v2982 = vadd.f32 %v2667, %v2908
    %v2983 = vadd.f32 %v2668, %v2911
    %v2984 = vadd.f32 %v2669, %v2913
    %v2985 = vadd.f32 %v2670, %v2916
    %v2986 = vadd.f32 %v2671, %v2918
    %v2987 = vadd.f32 %v2672, %v2921
    %v2988 = vadd.f32 %v2673, %v2923
    %s2989 = scalar_lea.vmem %s3, 384
    %v2990 = vld [vmem:[%s2989] sm:$0xf]
    %v2991 = vld [vmem:[%s2989 + $0x4] sm:$0xf]
    %v2992 = vld [vmem:[%s2989 + $0x8] sm:$0xf]
    %v2993 = vld [vmem:[%s2989 + $0xc] sm:$0xf]
    %v2994 = vld [vmem:[%s2989 + $0x10] sm:$0xf]
    %v2995 = vld [vmem:[%s2989 + $0x14] sm:$0xf]
    %v2996 = vld [vmem:[%s2989 + $0x18] sm:$0xf]
    %v2997 = vld [vmem:[%s2989 + $0x1c] sm:$0xf]
    %v2998 = vld [vmem:[%s2989 + $0x20] sm:$0xf]
    %v2999 = vld [vmem:[%s2989 + $0x24] sm:$0xf]
    %v3000 = vld [vmem:[%s2989 + $0x28] sm:$0xf]
    %v3001 = vld [vmem:[%s2989 + $0x2c] sm:$0xf]
    %v3002 = vld [vmem:[%s2989 + $0x30] sm:$0xf]
    %v3003 = vld [vmem:[%s2989 + $0x34] sm:$0xf]
    %v3004 = vld [vmem:[%s2989 + $0x38] sm:$0xf]
    %v3005 = vld [vmem:[%s2989 + $0x3c] sm:$0xf]
    %v3022 = vunpack.c.l.b16 %v2990
    %v3023 = vunpack.c.l.b16 %v2991
    %v3024 = vunpack.c.l.b16 %v2992
    %v3025 = vunpack.c.l.b16 %v2993
    %v3026 = vunpack.c.l.b16 %v2994
    %v3027 = vunpack.c.l.b16 %v2995
    %v3028 = vunpack.c.l.b16 %v2996
    %v3029 = vunpack.c.l.b16 %v2997
    %v3030 = vunpack.c.l.b16 %v2998
    %v3031 = vunpack.c.l.b16 %v2999
    %v3032 = vunpack.c.l.b16 %v3000
    %v3033 = vunpack.c.l.b16 %v3001
    %v3034 = vunpack.c.l.b16 %v3002
    %v3035 = vunpack.c.l.b16 %v3003
    %v3036 = vunpack.c.l.b16 %v3004
    %v3037 = vunpack.c.l.b16 %v3005
    %v3038 = vpack.c.b16 %v3023, %v3022
    %v3039 = vpack.c.b16 %v3025, %v3024
    %v3040 = vpack.c.b16 %v3027, %v3026
    %v3041 = vpack.c.b16 %v3029, %v3028
    %v3042 = vpack.c.b16 %v3031, %v3030
    %v3043 = vpack.c.b16 %v3033, %v3032
    %v3044 = vpack.c.b16 %v3035, %v3034
    %v3045 = vpack.c.b16 %v3037, %v3036
    %3054 = vmatpush.bf16.msra.mxu0 %v3045
    %3055 = vmatpush.bf16.msra.mxu0 %v3044
    %3056 = vmatpush.bf16.msra.mxu0 %v3043
    %3057 = vmatpush.bf16.msra.mxu0 %v3042
    %3058 = vmatpush.bf16.msra.mxu0 %v3041
    %3059 = vmatpush.bf16.msra.mxu0 %v3040
    %3060 = vmatpush.bf16.msra.mxu0 %v3039
    %3061 = vmatpush.bf16.msra.mxu0 %v3038
    %3062 = vmatmul.bf16.gmra.mxu0 %v957
    %v3063 = vpop.f32.mrf.mxu0
    %v3064 = vadd.f32 0.0, %v3063
    %v3065 = vpop.f32.mrf.mxu0
    %v3066 = vadd.f32 0.0, %v3065
    %3067 = vmatmul.bf16.gmra.mxu0 %v958
    %v3068 = vpop.f32.mrf.mxu0
    %v3069 = vadd.f32 0.0, %v3068
    %v3070 = vpop.f32.mrf.mxu0
    %v3071 = vadd.f32 0.0, %v3070
    %3072 = vmatmul.bf16.gmra.mxu0 %v959
    %v3073 = vpop.f32.mrf.mxu0
    %v3074 = vadd.f32 0.0, %v3073
    %v3075 = vpop.f32.mrf.mxu0
    %v3076 = vadd.f32 0.0, %v3075
    %3077 = vmatmul.bf16.gmra.mxu0 %v960
    %v3078 = vpop.f32.mrf.mxu0
    %v3079 = vadd.f32 0.0, %v3078
    %v3080 = vpop.f32.mrf.mxu0
    %v3081 = vadd.f32 0.0, %v3080
    %3082 = vmatmul.bf16.gmra.mxu0 %v961
    %v3083 = vpop.f32.mrf.mxu0
    %v3084 = vadd.f32 0.0, %v3083
    %v3085 = vpop.f32.mrf.mxu0
    %v3086 = vadd.f32 0.0, %v3085
    %3087 = vmatmul.bf16.gmra.mxu0 %v962
    %v3088 = vpop.f32.mrf.mxu0
    %v3089 = vadd.f32 0.0, %v3088
    %v3090 = vpop.f32.mrf.mxu0
    %v3091 = vadd.f32 0.0, %v3090
    %3092 = vmatmul.bf16.gmra.mxu0 %v963
    %v3093 = vpop.f32.mrf.mxu0
    %v3094 = vadd.f32 0.0, %v3093
    %v3095 = vpop.f32.mrf.mxu0
    %v3096 = vadd.f32 0.0, %v3095
    %3097 = vmatmul.bf16.gmra.mxu0 %v964
    %v3098 = vpop.f32.mrf.mxu0
    %v3099 = vadd.f32 0.0, %v3098
    %v3100 = vpop.f32.mrf.mxu0
    %v3101 = vadd.f32 0.0, %v3100
    %3102 = vmatmul.bf16.gmra.mxu0 %v965
    %v3103 = vpop.f32.mrf.mxu0
    %v3104 = vadd.f32 0.0, %v3103
    %v3105 = vpop.f32.mrf.mxu0
    %v3106 = vadd.f32 0.0, %v3105
    %3107 = vmatmul.bf16.gmra.mxu0 %v966
    %v3108 = vpop.f32.mrf.mxu0
    %v3109 = vadd.f32 0.0, %v3108
    %v3110 = vpop.f32.mrf.mxu0
    %v3111 = vadd.f32 0.0, %v3110
    %3112 = vmatmul.bf16.gmra.mxu0 %v967
    %v3113 = vpop.f32.mrf.mxu0
    %v3114 = vadd.f32 0.0, %v3113
    %v3115 = vpop.f32.mrf.mxu0
    %v3116 = vadd.f32 0.0, %v3115
    %3117 = vmatmul.bf16.gmra.mxu0 %v968
    %v3118 = vpop.f32.mrf.mxu0
    %v3119 = vadd.f32 0.0, %v3118
    %v3120 = vpop.f32.mrf.mxu0
    %v3121 = vadd.f32 0.0, %v3120
    %3122 = vmatmul.bf16.gmra.mxu0 %v969
    %v3123 = vpop.f32.mrf.mxu0
    %v3124 = vadd.f32 0.0, %v3123
    %v3125 = vpop.f32.mrf.mxu0
    %v3126 = vadd.f32 0.0, %v3125
    %3127 = vmatmul.bf16.gmra.mxu0 %v970
    %v3128 = vpop.f32.mrf.mxu0
    %v3129 = vadd.f32 0.0, %v3128
    %v3130 = vpop.f32.mrf.mxu0
    %v3131 = vadd.f32 0.0, %v3130
    %3132 = vmatmul.bf16.gmra.mxu0 %v2074
    %v3133 = vpop.f32.mrf.mxu0
    %v3134 = vadd.f32 0.0, %v3133
    %v3135 = vpop.f32.mrf.mxu0
    %v3136 = vadd.f32 0.0, %v3135
    %3137 = vmatmul.bf16.gmra.mxu0 %v955
    %v3138 = vpop.f32.mrf.mxu0
    %v3139 = vadd.f32 0.0, %v3138
    %v3140 = vpop.f32.mrf.mxu0
    %v3141 = vadd.f32 0.0, %v3140
    %3142 = vmatmul.bf16.gmra.mxu0 %v972
    %v3143 = vpop.f32.mrf.mxu0
    %v3144 = vadd.f32 0.0, %v3143
    %v3145 = vpop.f32.mrf.mxu0
    %v3146 = vadd.f32 0.0, %v3145
    %3147 = vmatmul.bf16.gmra.mxu0 %v973
    %v3148 = vpop.f32.mrf.mxu0
    %v3149 = vadd.f32 0.0, %v3148
    %v3150 = vpop.f32.mrf.mxu0
    %v3151 = vadd.f32 0.0, %v3150
    %3152 = vmatmul.bf16.gmra.mxu0 %v974
    %v3153 = vpop.f32.mrf.mxu0
    %v3154 = vadd.f32 0.0, %v3153
    %v3155 = vpop.f32.mrf.mxu0
    %v3156 = vadd.f32 0.0, %v3155
    %3157 = vmatmul.bf16.gmra.mxu0 %v975
    %v3158 = vpop.f32.mrf.mxu0
    %v3159 = vadd.f32 0.0, %v3158
    %v3160 = vpop.f32.mrf.mxu0
    %v3161 = vadd.f32 0.0, %v3160
    %3162 = vmatmul.bf16.gmra.mxu0 %v976
    %v3163 = vpop.f32.mrf.mxu0
    %v3164 = vadd.f32 0.0, %v3163
    %v3165 = vpop.f32.mrf.mxu0
    %v3166 = vadd.f32 0.0, %v3165
    %3167 = vmatmul.bf16.gmra.mxu0 %v977
    %v3168 = vpop.f32.mrf.mxu0
    %v3169 = vadd.f32 0.0, %v3168
    %v3170 = vpop.f32.mrf.mxu0
    %v3171 = vadd.f32 0.0, %v3170
    %3172 = vmatmul.bf16.gmra.mxu0 %v978
    %v3173 = vpop.f32.mrf.mxu0
    %v3174 = vadd.f32 0.0, %v3173
    %v3175 = vpop.f32.mrf.mxu0
    %v3176 = vadd.f32 0.0, %v3175
    %3177 = vmatmul.bf16.gmra.mxu0 %v979
    %v3178 = vpop.f32.mrf.mxu0
    %v3179 = vadd.f32 0.0, %v3178
    %v3180 = vpop.f32.mrf.mxu0
    %v3181 = vadd.f32 0.0, %v3180
    %3182 = vmatmul.bf16.gmra.mxu0 %v980
    %v3183 = vpop.f32.mrf.mxu0
    %v3184 = vadd.f32 0.0, %v3183
    %v3185 = vpop.f32.mrf.mxu0
    %v3186 = vadd.f32 0.0, %v3185
    %3187 = vmatmul.bf16.gmra.mxu0 %v981
    %v3188 = vpop.f32.mrf.mxu0
    %v3189 = vadd.f32 0.0, %v3188
    %v3190 = vpop.f32.mrf.mxu0
    %v3191 = vadd.f32 0.0, %v3190
    %3192 = vmatmul.bf16.gmra.mxu0 %v982
    %v3193 = vpop.f32.mrf.mxu0
    %v3194 = vadd.f32 0.0, %v3193
    %v3195 = vpop.f32.mrf.mxu0
    %v3196 = vadd.f32 0.0, %v3195
    %3197 = vmatmul.bf16.gmra.mxu0 %v983
    %v3198 = vpop.f32.mrf.mxu0
    %v3199 = vadd.f32 0.0, %v3198
    %v3200 = vpop.f32.mrf.mxu0
    %v3201 = vadd.f32 0.0, %v3200
    %3202 = vmatmul.bf16.gmra.mxu0 %v984
    %v3203 = vpop.f32.mrf.mxu0
    %v3204 = vadd.f32 0.0, %v3203
    %v3205 = vpop.f32.mrf.mxu0
    %v3206 = vadd.f32 0.0, %v3205
    %3207 = vmatmul.bf16.gmra.mxu0 %v985
    %v3208 = vpop.f32.mrf.mxu0
    %v3209 = vadd.f32 0.0, %v3208
    %v3210 = vpop.f32.mrf.mxu0
    %v3211 = vadd.f32 0.0, %v3210
    %3212 = vmatmul.bf16.gmra.mxu0 %v2075
    %v3213 = vpop.f32.mrf.mxu0
    %v3214 = vadd.f32 0.0, %v3213
    %v3215 = vpop.f32.mrf.mxu0
    %v3216 = vadd.f32 0.0, %v3215
    %3217 = vmatmul.bf16.gmra.mxu0 %v955
    %v3218 = vpop.f32.mrf.mxu0
    %v3219 = vadd.f32 0.0, %v3218
    %v3220 = vpop.f32.mrf.mxu0
    %v3221 = vadd.f32 0.0, %v3220
    %3222 = vdwg.mxu0
    %v3223 = vadd.f32 %v2925, %v3064
    %v3224 = vadd.f32 %v2926, %v3066
    %v3225 = vadd.f32 %v2927, %v3069
    %v3226 = vadd.f32 %v2928, %v3071
    %v3227 = vadd.f32 %v2929, %v3074
    %v3228 = vadd.f32 %v2930, %v3076
    %v3229 = vadd.f32 %v2931, %v3079
    %v3230 = vadd.f32 %v2932, %v3081
    %v3231 = vadd.f32 %v2933, %v3084
    %v3232 = vadd.f32 %v2934, %v3086
    %v3233 = vadd.f32 %v2935, %v3089
    %v3234 = vadd.f32 %v2936, %v3091
    %v3235 = vadd.f32 %v2937, %v3094
    %v3236 = vadd.f32 %v2938, %v3096
    %v3237 = vadd.f32 %v2939, %v3099
    %v3238 = vadd.f32 %v2940, %v3101
    %v3239 = vadd.f32 %v2941, %v3104
    %v3240 = vadd.f32 %v2942, %v3106
    %v3241 = vadd.f32 %v2943, %v3109
    %v3242 = vadd.f32 %v2944, %v3111
    %v3243 = vadd.f32 %v2945, %v3114
    %v3244 = vadd.f32 %v2946, %v3116
    %v3245 = vadd.f32 %v2947, %v3119
    %v3246 = vadd.f32 %v2948, %v3121
    %v3247 = vadd.f32 %v2949, %v3124
    %v3248 = vadd.f32 %v2950, %v3126
    %v3249 = vadd.f32 %v2951, %v3129
    %v3250 = vadd.f32 %v2952, %v3131
    %v3251 = vadd.f32 %v2953, %v3134
    %v3252 = vadd.f32 %v2954, %v3136
    %v3253 = vadd.f32 %v2955, %v3139
    %v3254 = vadd.f32 %v2956, %v3141
    %v3255 = vadd.f32 %v2957, %v3144
    %v3256 = vadd.f32 %v2958, %v3146
    %v3257 = vadd.f32 %v2959, %v3149
    %v3258 = vadd.f32 %v2960, %v3151
    %v3259 = vadd.f32 %v2961, %v3154
    %v3260 = vadd.f32 %v2962, %v3156
    %v3261 = vadd.f32 %v2963, %v3159
    %v3262 = vadd.f32 %v2964, %v3161
    %v3263 = vadd.f32 %v2965, %v3164
    %v3264 = vadd.f32 %v2966, %v3166
    %v3265 = vadd.f32 %v2967, %v3169
    %v3266 = vadd.f32 %v2968, %v3171
    %v3267 = vadd.f32 %v2969, %v3174
    %v3268 = vadd.f32 %v2970, %v3176
    %v3269 = vadd.f32 %v2971, %v3179
    %v3270 = vadd.f32 %v2972, %v3181
    %v3271 = vadd.f32 %v2973, %v3184
    %v3272 = vadd.f32 %v2974, %v3186
    %v3273 = vadd.f32 %v2975, %v3189
    %v3274 = vadd.f32 %v2976, %v3191
    %v3275 = vadd.f32 %v2977, %v3194
    %v3276 = vadd.f32 %v2978, %v3196
    %v3277 = vadd.f32 %v2979, %v3199
    %v3278 = vadd.f32 %v2980, %v3201
    %v3279 = vadd.f32 %v2981, %v3204
    %v3280 = vadd.f32 %v2982, %v3206
    %v3281 = vadd.f32 %v2983, %v3209
    %v3282 = vadd.f32 %v2984, %v3211
    %v3283 = vadd.f32 %v2985, %v3214
    %v3284 = vadd.f32 %v2986, %v3216
    %v3285 = vadd.f32 %v2987, %v3219
    %v3286 = vadd.f32 %v2988, %v3221
    %s3287 = scalar_lea.vmem %s3, 448
    %v3288 = vld [vmem:[%s3287] sm:$0xf]
    %v3289 = vld [vmem:[%s3287 + $0x4] sm:$0xf]
    %v3290 = vld [vmem:[%s3287 + $0x8] sm:$0xf]
    %v3291 = vld [vmem:[%s3287 + $0xc] sm:$0xf]
    %v3292 = vld [vmem:[%s3287 + $0x10] sm:$0xf]
    %v3293 = vld [vmem:[%s3287 + $0x14] sm:$0xf]
    %v3294 = vld [vmem:[%s3287 + $0x18] sm:$0xf]
    %v3295 = vld [vmem:[%s3287 + $0x1c] sm:$0xf]
    %v3296 = vld [vmem:[%s3287 + $0x20] sm:$0xf]
    %v3297 = vld [vmem:[%s3287 + $0x24] sm:$0xf]
    %v3298 = vld [vmem:[%s3287 + $0x28] sm:$0xf]
    %v3299 = vld [vmem:[%s3287 + $0x2c] sm:$0xf]
    %v3300 = vld [vmem:[%s3287 + $0x30] sm:$0xf]
    %v3301 = vld [vmem:[%s3287 + $0x34] sm:$0xf]
    %v3302 = vld [vmem:[%s3287 + $0x38] sm:$0xf]
    %v3303 = vld [vmem:[%s3287 + $0x3c] sm:$0xf]
    %v3320 = vunpack.c.l.b16 %v3288
    %v3321 = vunpack.c.l.b16 %v3289
    %v3322 = vunpack.c.l.b16 %v3290
    %v3323 = vunpack.c.l.b16 %v3291
    %v3324 = vunpack.c.l.b16 %v3292
    %v3325 = vunpack.c.l.b16 %v3293
    %v3326 = vunpack.c.l.b16 %v3294
    %v3327 = vunpack.c.l.b16 %v3295
    %v3328 = vunpack.c.l.b16 %v3296
    %v3329 = vunpack.c.l.b16 %v3297
    %v3330 = vunpack.c.l.b16 %v3298
    %v3331 = vunpack.c.l.b16 %v3299
    %v3332 = vunpack.c.l.b16 %v3300
    %v3333 = vunpack.c.l.b16 %v3301
    %v3334 = vunpack.c.l.b16 %v3302
    %v3335 = vunpack.c.l.b16 %v3303
    %v3336 = vpack.c.b16 %v3321, %v3320
    %v3337 = vpack.c.b16 %v3323, %v3322
    %v3338 = vpack.c.b16 %v3325, %v3324
    %v3339 = vpack.c.b16 %v3327, %v3326
    %v3340 = vpack.c.b16 %v3329, %v3328
    %v3341 = vpack.c.b16 %v3331, %v3330
    %v3342 = vpack.c.b16 %v3333, %v3332
    %v3343 = vpack.c.b16 %v3335, %v3334
    %3352 = vmatpush.bf16.msra.mxu0 %v3343
    %3353 = vmatpush.bf16.msra.mxu0 %v3342
    %3354 = vmatpush.bf16.msra.mxu0 %v3341
    %3355 = vmatpush.bf16.msra.mxu0 %v3340
    %3356 = vmatpush.bf16.msra.mxu0 %v3339
    %3357 = vmatpush.bf16.msra.mxu0 %v3338
    %3358 = vmatpush.bf16.msra.mxu0 %v3337
    %3359 = vmatpush.bf16.msra.mxu0 %v3336
    %3360 = vmatmul.bf16.gmra.mxu0 %v1003
    %v3361 = vpop.f32.mrf.mxu0
    %v3362 = vadd.f32 0.0, %v3361
    %v3363 = vpop.f32.mrf.mxu0
    %v3364 = vadd.f32 0.0, %v3363
    %3365 = vmatmul.bf16.gmra.mxu0 %v1004
    %v3366 = vpop.f32.mrf.mxu0
    %v3367 = vadd.f32 0.0, %v3366
    %v3368 = vpop.f32.mrf.mxu0
    %v3369 = vadd.f32 0.0, %v3368
    %3370 = vmatmul.bf16.gmra.mxu0 %v1005
    %v3371 = vpop.f32.mrf.mxu0
    %v3372 = vadd.f32 0.0, %v3371
    %v3373 = vpop.f32.mrf.mxu0
    %v3374 = vadd.f32 0.0, %v3373
    %3375 = vmatmul.bf16.gmra.mxu0 %v1006
    %v3376 = vpop.f32.mrf.mxu0
    %v3377 = vadd.f32 0.0, %v3376
    %v3378 = vpop.f32.mrf.mxu0
    %v3379 = vadd.f32 0.0, %v3378
    %3380 = vmatmul.bf16.gmra.mxu0 %v1007
    %v3381 = vpop.f32.mrf.mxu0
    %v3382 = vadd.f32 0.0, %v3381
    %v3383 = vpop.f32.mrf.mxu0
    %v3384 = vadd.f32 0.0, %v3383
    %3385 = vmatmul.bf16.gmra.mxu0 %v1008
    %v3386 = vpop.f32.mrf.mxu0
    %v3387 = vadd.f32 0.0, %v3386
    %v3388 = vpop.f32.mrf.mxu0
    %v3389 = vadd.f32 0.0, %v3388
    %3390 = vmatmul.bf16.gmra.mxu0 %v1009
    %v3391 = vpop.f32.mrf.mxu0
    %v3392 = vadd.f32 0.0, %v3391
    %v3393 = vpop.f32.mrf.mxu0
    %v3394 = vadd.f32 0.0, %v3393
    %3395 = vmatmul.bf16.gmra.mxu0 %v1010
    %v3396 = vpop.f32.mrf.mxu0
    %v3397 = vadd.f32 0.0, %v3396
    %v3398 = vpop.f32.mrf.mxu0
    %v3399 = vadd.f32 0.0, %v3398
    %3400 = vmatmul.bf16.gmra.mxu0 %v1011
    %v3401 = vpop.f32.mrf.mxu0
    %v3402 = vadd.f32 0.0, %v3401
    %v3403 = vpop.f32.mrf.mxu0
    %v3404 = vadd.f32 0.0, %v3403
    %3405 = vmatmul.bf16.gmra.mxu0 %v1012
    %v3406 = vpop.f32.mrf.mxu0
    %v3407 = vadd.f32 0.0, %v3406
    %v3408 = vpop.f32.mrf.mxu0
    %v3409 = vadd.f32 0.0, %v3408
    %3410 = vmatmul.bf16.gmra.mxu0 %v1013
    %v3411 = vpop.f32.mrf.mxu0
    %v3412 = vadd.f32 0.0, %v3411
    %v3413 = vpop.f32.mrf.mxu0
    %v3414 = vadd.f32 0.0, %v3413
    %3415 = vmatmul.bf16.gmra.mxu0 %v1014
    %v3416 = vpop.f32.mrf.mxu0
    %v3417 = vadd.f32 0.0, %v3416
    %v3418 = vpop.f32.mrf.mxu0
    %v3419 = vadd.f32 0.0, %v3418
    %3420 = vmatmul.bf16.gmra.mxu0 %v1015
    %v3421 = vpop.f32.mrf.mxu0
    %v3422 = vadd.f32 0.0, %v3421
    %v3423 = vpop.f32.mrf.mxu0
    %v3424 = vadd.f32 0.0, %v3423
    %3425 = vmatmul.bf16.gmra.mxu0 %v1016
    %v3426 = vpop.f32.mrf.mxu0
    %v3427 = vadd.f32 0.0, %v3426
    %v3428 = vpop.f32.mrf.mxu0
    %v3429 = vadd.f32 0.0, %v3428
    %3430 = vmatmul.bf16.gmra.mxu0 %v2374
    %v3431 = vpop.f32.mrf.mxu0
    %v3432 = vadd.f32 0.0, %v3431
    %v3433 = vpop.f32.mrf.mxu0
    %v3434 = vadd.f32 0.0, %v3433
    %3435 = vmatmul.bf16.gmra.mxu0 %v955
    %v3436 = vpop.f32.mrf.mxu0
    %v3437 = vadd.f32 0.0, %v3436
    %v3438 = vpop.f32.mrf.mxu0
    %v3439 = vadd.f32 0.0, %v3438
    %3440 = vmatmul.bf16.gmra.mxu0 %v1018
    %v3441 = vpop.f32.mrf.mxu0
    %v3442 = vadd.f32 0.0, %v3441
    %v3443 = vpop.f32.mrf.mxu0
    %v3444 = vadd.f32 0.0, %v3443
    %3445 = vmatmul.bf16.gmra.mxu0 %v1019
    %v3446 = vpop.f32.mrf.mxu0
    %v3447 = vadd.f32 0.0, %v3446
    %v3448 = vpop.f32.mrf.mxu0
    %v3449 = vadd.f32 0.0, %v3448
    %3450 = vmatmul.bf16.gmra.mxu0 %v1020
    %v3451 = vpop.f32.mrf.mxu0
    %v3452 = vadd.f32 0.0, %v3451
    %v3453 = vpop.f32.mrf.mxu0
    %v3454 = vadd.f32 0.0, %v3453
    %3455 = vmatmul.bf16.gmra.mxu0 %v1021
    %v3456 = vpop.f32.mrf.mxu0
    %v3457 = vadd.f32 0.0, %v3456
    %v3458 = vpop.f32.mrf.mxu0
    %v3459 = vadd.f32 0.0, %v3458
    %3460 = vmatmul.bf16.gmra.mxu0 %v1022
    %v3461 = vpop.f32.mrf.mxu0
    %v3462 = vadd.f32 0.0, %v3461
    %v3463 = vpop.f32.mrf.mxu0
    %v3464 = vadd.f32 0.0, %v3463
    %3465 = vmatmul.bf16.gmra.mxu0 %v1023
    %v3466 = vpop.f32.mrf.mxu0
    %v3467 = vadd.f32 0.0, %v3466
    %v3468 = vpop.f32.mrf.mxu0
    %v3469 = vadd.f32 0.0, %v3468
    %3470 = vmatmul.bf16.gmra.mxu0 %v1024
    %v3471 = vpop.f32.mrf.mxu0
    %v3472 = vadd.f32 0.0, %v3471
    %v3473 = vpop.f32.mrf.mxu0
    %v3474 = vadd.f32 0.0, %v3473
    %3475 = vmatmul.bf16.gmra.mxu0 %v1025
    %v3476 = vpop.f32.mrf.mxu0
    %v3477 = vadd.f32 0.0, %v3476
    %v3478 = vpop.f32.mrf.mxu0
    %v3479 = vadd.f32 0.0, %v3478
    %3480 = vmatmul.bf16.gmra.mxu0 %v1026
    %v3481 = vpop.f32.mrf.mxu0
    %v3482 = vadd.f32 0.0, %v3481
    %v3483 = vpop.f32.mrf.mxu0
    %v3484 = vadd.f32 0.0, %v3483
    %3485 = vmatmul.bf16.gmra.mxu0 %v1027
    %v3486 = vpop.f32.mrf.mxu0
    %v3487 = vadd.f32 0.0, %v3486
    %v3488 = vpop.f32.mrf.mxu0
    %v3489 = vadd.f32 0.0, %v3488
    %3490 = vmatmul.bf16.gmra.mxu0 %v1028
    %v3491 = vpop.f32.mrf.mxu0
    %v3492 = vadd.f32 0.0, %v3491
    %v3493 = vpop.f32.mrf.mxu0
    %v3494 = vadd.f32 0.0, %v3493
    %3495 = vmatmul.bf16.gmra.mxu0 %v1029
    %v3496 = vpop.f32.mrf.mxu0
    %v3497 = vadd.f32 0.0, %v3496
    %v3498 = vpop.f32.mrf.mxu0
    %v3499 = vadd.f32 0.0, %v3498
    %3500 = vmatmul.bf16.gmra.mxu0 %v1030
    %v3501 = vpop.f32.mrf.mxu0
    %v3502 = vadd.f32 0.0, %v3501
    %v3503 = vpop.f32.mrf.mxu0
    %v3504 = vadd.f32 0.0, %v3503
    %3505 = vmatmul.bf16.gmra.mxu0 %v1031
    %v3506 = vpop.f32.mrf.mxu0
    %v3507 = vadd.f32 0.0, %v3506
    %v3508 = vpop.f32.mrf.mxu0
    %v3509 = vadd.f32 0.0, %v3508
    %3510 = vmatmul.bf16.gmra.mxu0 %v2375
    %v3511 = vpop.f32.mrf.mxu0
    %v3512 = vadd.f32 0.0, %v3511
    %v3513 = vpop.f32.mrf.mxu0
    %v3514 = vadd.f32 0.0, %v3513
    %3515 = vmatmul.bf16.gmra.mxu0 %v955
    %v3516 = vpop.f32.mrf.mxu0
    %v3517 = vadd.f32 0.0, %v3516
    %v3518 = vpop.f32.mrf.mxu0
    %v3519 = vadd.f32 0.0, %v3518
    %3520 = vdwg.mxu0
    %v3521 = vadd.f32 %v3223, %v3362
    %v3522 = vadd.f32 %v3224, %v3364
    %v3523 = vadd.f32 %v3225, %v3367
    %v3524 = vadd.f32 %v3226, %v3369
    %v3525 = vadd.f32 %v3227, %v3372
    %v3526 = vadd.f32 %v3228, %v3374
    %v3527 = vadd.f32 %v3229, %v3377
    %v3528 = vadd.f32 %v3230, %v3379
    %v3529 = vadd.f32 %v3231, %v3382
    %v3530 = vadd.f32 %v3232, %v3384
    %v3531 = vadd.f32 %v3233, %v3387
    %v3532 = vadd.f32 %v3234, %v3389
    %v3533 = vadd.f32 %v3235, %v3392
    %v3534 = vadd.f32 %v3236, %v3394
    %v3535 = vadd.f32 %v3237, %v3397
    %v3536 = vadd.f32 %v3238, %v3399
    %v3537 = vadd.f32 %v3239, %v3402
    %v3538 = vadd.f32 %v3240, %v3404
    %v3539 = vadd.f32 %v3241, %v3407
    %v3540 = vadd.f32 %v3242, %v3409
    %v3541 = vadd.f32 %v3243, %v3412
    %v3542 = vadd.f32 %v3244, %v3414
    %v3543 = vadd.f32 %v3245, %v3417
    %v3544 = vadd.f32 %v3246, %v3419
    %v3545 = vadd.f32 %v3247, %v3422
    %v3546 = vadd.f32 %v3248, %v3424
    %v3547 = vadd.f32 %v3249, %v3427
    %v3548 = vadd.f32 %v3250, %v3429
    %v3549 = vadd.f32 %v3251, %v3432
    %v3550 = vadd.f32 %v3252, %v3434
    %v3551 = vadd.f32 %v3253, %v3437
    %v3552 = vadd.f32 %v3254, %v3439
    %v3553 = vadd.f32 %v3255, %v3442
    %v3554 = vadd.f32 %v3256, %v3444
    %v3555 = vadd.f32 %v3257, %v3447
    %v3556 = vadd.f32 %v3258, %v3449
    %v3557 = vadd.f32 %v3259, %v3452
    %v3558 = vadd.f32 %v3260, %v3454
    %v3559 = vadd.f32 %v3261, %v3457
    %v3560 = vadd.f32 %v3262, %v3459
    %v3561 = vadd.f32 %v3263, %v3462
    %v3562 = vadd.f32 %v3264, %v3464
    %v3563 = vadd.f32 %v3265, %v3467
    %v3564 = vadd.f32 %v3266, %v3469
    %v3565 = vadd.f32 %v3267, %v3472
    %v3566 = vadd.f32 %v3268, %v3474
    %v3567 = vadd.f32 %v3269, %v3477
    %v3568 = vadd.f32 %v3270, %v3479
    %v3569 = vadd.f32 %v3271, %v3482
    %v3570 = vadd.f32 %v3272, %v3484
    %v3571 = vadd.f32 %v3273, %v3487
    %v3572 = vadd.f32 %v3274, %v3489
    %v3573 = vadd.f32 %v3275, %v3492
    %v3574 = vadd.f32 %v3276, %v3494
    %v3575 = vadd.f32 %v3277, %v3497
    %v3576 = vadd.f32 %v3278, %v3499
    %v3577 = vadd.f32 %v3279, %v3502
    %v3578 = vadd.f32 %v3280, %v3504
    %v3579 = vadd.f32 %v3281, %v3507
    %v3580 = vadd.f32 %v3282, %v3509
    %v3581 = vadd.f32 %v3283, %v3512
    %v3582 = vadd.f32 %v3284, %v3514
    %v3583 = vadd.f32 %v3285, %v3517
    %v3584 = vadd.f32 %v3286, %v3519
    %s3585 = scalar_lea.vmem %s3, 512
    %v3586 = vld [vmem:[%s3585] sm:$0xf]
    %v3587 = vld [vmem:[%s3585 + $0x4] sm:$0xf]
    %v3588 = vld [vmem:[%s3585 + $0x8] sm:$0xf]
    %v3589 = vld [vmem:[%s3585 + $0xc] sm:$0xf]
    %v3590 = vld [vmem:[%s3585 + $0x10] sm:$0xf]
    %v3591 = vld [vmem:[%s3585 + $0x14] sm:$0xf]
    %v3592 = vld [vmem:[%s3585 + $0x18] sm:$0xf]
    %v3593 = vld [vmem:[%s3585 + $0x1c] sm:$0xf]
    %v3594 = vld [vmem:[%s3585 + $0x20] sm:$0xf]
    %v3595 = vld [vmem:[%s3585 + $0x24] sm:$0xf]
    %v3596 = vld [vmem:[%s3585 + $0x28] sm:$0xf]
    %v3597 = vld [vmem:[%s3585 + $0x2c] sm:$0xf]
    %v3598 = vld [vmem:[%s3585 + $0x30] sm:$0xf]
    %v3599 = vld [vmem:[%s3585 + $0x34] sm:$0xf]
    %v3600 = vld [vmem:[%s3585 + $0x38] sm:$0xf]
    %v3601 = vld [vmem:[%s3585 + $0x3c] sm:$0xf]
    %v3618 = vunpack.c.l.b16 %v3586
    %v3619 = vunpack.c.l.b16 %v3587
    %v3620 = vunpack.c.l.b16 %v3588
    %v3621 = vunpack.c.l.b16 %v3589
    %v3622 = vunpack.c.l.b16 %v3590
    %v3623 = vunpack.c.l.b16 %v3591
    %v3624 = vunpack.c.l.b16 %v3592
    %v3625 = vunpack.c.l.b16 %v3593
    %v3626 = vunpack.c.l.b16 %v3594
    %v3627 = vunpack.c.l.b16 %v3595
    %v3628 = vunpack.c.l.b16 %v3596
    %v3629 = vunpack.c.l.b16 %v3597
    %v3630 = vunpack.c.l.b16 %v3598
    %v3631 = vunpack.c.l.b16 %v3599
    %v3632 = vunpack.c.l.b16 %v3600
    %v3633 = vunpack.c.l.b16 %v3601
    %v3634 = vpack.c.b16 %v3619, %v3618
    %v3635 = vpack.c.b16 %v3621, %v3620
    %v3636 = vpack.c.b16 %v3623, %v3622
    %v3637 = vpack.c.b16 %v3625, %v3624
    %v3638 = vpack.c.b16 %v3627, %v3626
    %v3639 = vpack.c.b16 %v3629, %v3628
    %v3640 = vpack.c.b16 %v3631, %v3630
    %v3641 = vpack.c.b16 %v3633, %v3632
    %3650 = vmatpush.bf16.msra.mxu0 %v3641
    %3651 = vmatpush.bf16.msra.mxu0 %v3640
    %3652 = vmatpush.bf16.msra.mxu0 %v3639
    %3653 = vmatpush.bf16.msra.mxu0 %v3638
    %3654 = vmatpush.bf16.msra.mxu0 %v3637
    %3655 = vmatpush.bf16.msra.mxu0 %v3636
    %3656 = vmatpush.bf16.msra.mxu0 %v3635
    %3657 = vmatpush.bf16.msra.mxu0 %v3634
    %3658 = vmatmul.bf16.gmra.mxu0 %v1733
    %v3659 = vpop.f32.mrf.mxu0
    %v3660 = vadd.f32 0.0, %v3659
    %v3661 = vpop.f32.mrf.mxu0
    %v3662 = vadd.f32 0.0, %v3661
    %3663 = vmatmul.bf16.gmra.mxu0 %v1734
    %v3664 = vpop.f32.mrf.mxu0
    %v3665 = vadd.f32 0.0, %v3664
    %v3666 = vpop.f32.mrf.mxu0
    %v3667 = vadd.f32 0.0, %v3666
    %3668 = vmatmul.bf16.gmra.mxu0 %v1735
    %v3669 = vpop.f32.mrf.mxu0
    %v3670 = vadd.f32 0.0, %v3669
    %v3671 = vpop.f32.mrf.mxu0
    %v3672 = vadd.f32 0.0, %v3671
    %3673 = vmatmul.bf16.gmra.mxu0 %v1736
    %v3674 = vpop.f32.mrf.mxu0
    %v3675 = vadd.f32 0.0, %v3674
    %v3676 = vpop.f32.mrf.mxu0
    %v3677 = vadd.f32 0.0, %v3676
    %3678 = vmatmul.bf16.gmra.mxu0 %v1737
    %v3679 = vpop.f32.mrf.mxu0
    %v3680 = vadd.f32 0.0, %v3679
    %v3681 = vpop.f32.mrf.mxu0
    %v3682 = vadd.f32 0.0, %v3681
    %3683 = vmatmul.bf16.gmra.mxu0 %v1738
    %v3684 = vpop.f32.mrf.mxu0
    %v3685 = vadd.f32 0.0, %v3684
    %v3686 = vpop.f32.mrf.mxu0
    %v3687 = vadd.f32 0.0, %v3686
    %3688 = vmatmul.bf16.gmra.mxu0 %v1739
    %v3689 = vpop.f32.mrf.mxu0
    %v3690 = vadd.f32 0.0, %v3689
    %v3691 = vpop.f32.mrf.mxu0
    %v3692 = vadd.f32 0.0, %v3691
    %3693 = vmatmul.bf16.gmra.mxu0 %v1740
    %v3694 = vpop.f32.mrf.mxu0
    %v3695 = vadd.f32 0.0, %v3694
    %v3696 = vpop.f32.mrf.mxu0
    %v3697 = vadd.f32 0.0, %v3696
    %3698 = vmatmul.bf16.gmra.mxu0 %v1741
    %v3699 = vpop.f32.mrf.mxu0
    %v3700 = vadd.f32 0.0, %v3699
    %v3701 = vpop.f32.mrf.mxu0
    %v3702 = vadd.f32 0.0, %v3701
    %3703 = vmatmul.bf16.gmra.mxu0 %v1742
    %v3704 = vpop.f32.mrf.mxu0
    %v3705 = vadd.f32 0.0, %v3704
    %v3706 = vpop.f32.mrf.mxu0
    %v3707 = vadd.f32 0.0, %v3706
    %3708 = vmatmul.bf16.gmra.mxu0 %v1743
    %v3709 = vpop.f32.mrf.mxu0
    %v3710 = vadd.f32 0.0, %v3709
    %v3711 = vpop.f32.mrf.mxu0
    %v3712 = vadd.f32 0.0, %v3711
    %3713 = vmatmul.bf16.gmra.mxu0 %v1744
    %v3714 = vpop.f32.mrf.mxu0
    %v3715 = vadd.f32 0.0, %v3714
    %v3716 = vpop.f32.mrf.mxu0
    %v3717 = vadd.f32 0.0, %v3716
    %3718 = vmatmul.bf16.gmra.mxu0 %v1745
    %v3719 = vpop.f32.mrf.mxu0
    %v3720 = vadd.f32 0.0, %v3719
    %v3721 = vpop.f32.mrf.mxu0
    %v3722 = vadd.f32 0.0, %v3721
    %3723 = vmatmul.bf16.gmra.mxu0 %v1746
    %v3724 = vpop.f32.mrf.mxu0
    %v3725 = vadd.f32 0.0, %v3724
    %v3726 = vpop.f32.mrf.mxu0
    %v3727 = vadd.f32 0.0, %v3726
    %3728 = vmatmul.bf16.gmra.mxu0 %v2689
    %v3729 = vpop.f32.mrf.mxu0
    %v3730 = vadd.f32 0.0, %v3729
    %v3731 = vpop.f32.mrf.mxu0
    %v3732 = vadd.f32 0.0, %v3731
    %3733 = vmatmul.bf16.gmra.mxu0 %v955
    %v3734 = vpop.f32.mrf.mxu0
    %v3735 = vadd.f32 0.0, %v3734
    %v3736 = vpop.f32.mrf.mxu0
    %v3737 = vadd.f32 0.0, %v3736
    %3738 = vmatmul.bf16.gmra.mxu0 %v1748
    %v3739 = vpop.f32.mrf.mxu0
    %v3740 = vadd.f32 0.0, %v3739
    %v3741 = vpop.f32.mrf.mxu0
    %v3742 = vadd.f32 0.0, %v3741
    %3743 = vmatmul.bf16.gmra.mxu0 %v1749
    %v3744 = vpop.f32.mrf.mxu0
    %v3745 = vadd.f32 0.0, %v3744
    %v3746 = vpop.f32.mrf.mxu0
    %v3747 = vadd.f32 0.0, %v3746
    %3748 = vmatmul.bf16.gmra.mxu0 %v1750
    %v3749 = vpop.f32.mrf.mxu0
    %v3750 = vadd.f32 0.0, %v3749
    %v3751 = vpop.f32.mrf.mxu0
    %v3752 = vadd.f32 0.0, %v3751
    %3753 = vmatmul.bf16.gmra.mxu0 %v1751
    %v3754 = vpop.f32.mrf.mxu0
    %v3755 = vadd.f32 0.0, %v3754
    %v3756 = vpop.f32.mrf.mxu0
    %v3757 = vadd.f32 0.0, %v3756
    %3758 = vmatmul.bf16.gmra.mxu0 %v1752
    %v3759 = vpop.f32.mrf.mxu0
    %v3760 = vadd.f32 0.0, %v3759
    %v3761 = vpop.f32.mrf.mxu0
    %v3762 = vadd.f32 0.0, %v3761
    %3763 = vmatmul.bf16.gmra.mxu0 %v1753
    %v3764 = vpop.f32.mrf.mxu0
    %v3765 = vadd.f32 0.0, %v3764
    %v3766 = vpop.f32.mrf.mxu0
    %v3767 = vadd.f32 0.0, %v3766
    %3768 = vmatmul.bf16.gmra.mxu0 %v1754
    %v3769 = vpop.f32.mrf.mxu0
    %v3770 = vadd.f32 0.0, %v3769
    %v3771 = vpop.f32.mrf.mxu0
    %v3772 = vadd.f32 0.0, %v3771
    %3773 = vmatmul.bf16.gmra.mxu0 %v1755
    %v3774 = vpop.f32.mrf.mxu0
    %v3775 = vadd.f32 0.0, %v3774
    %v3776 = vpop.f32.mrf.mxu0
    %v3777 = vadd.f32 0.0, %v3776
    %3778 = vmatmul.bf16.gmra.mxu0 %v1756
    %v3779 = vpop.f32.mrf.mxu0
    %v3780 = vadd.f32 0.0, %v3779
    %v3781 = vpop.f32.mrf.mxu0
    %v3782 = vadd.f32 0.0, %v3781
    %3783 = vmatmul.bf16.gmra.mxu0 %v1757
    %v3784 = vpop.f32.mrf.mxu0
    %v3785 = vadd.f32 0.0, %v3784
    %v3786 = vpop.f32.mrf.mxu0
    %v3787 = vadd.f32 0.0, %v3786
    %3788 = vmatmul.bf16.gmra.mxu0 %v1758
    %v3789 = vpop.f32.mrf.mxu0
    %v3790 = vadd.f32 0.0, %v3789
    %v3791 = vpop.f32.mrf.mxu0
    %v3792 = vadd.f32 0.0, %v3791
    %3793 = vmatmul.bf16.gmra.mxu0 %v1759
    %v3794 = vpop.f32.mrf.mxu0
    %v3795 = vadd.f32 0.0, %v3794
    %v3796 = vpop.f32.mrf.mxu0
    %v3797 = vadd.f32 0.0, %v3796
    %3798 = vmatmul.bf16.gmra.mxu0 %v1760
    %v3799 = vpop.f32.mrf.mxu0
    %v3800 = vadd.f32 0.0, %v3799
    %v3801 = vpop.f32.mrf.mxu0
    %v3802 = vadd.f32 0.0, %v3801
    %3803 = vmatmul.bf16.gmra.mxu0 %v1761
    %v3804 = vpop.f32.mrf.mxu0
    %v3805 = vadd.f32 0.0, %v3804
    %v3806 = vpop.f32.mrf.mxu0
    %v3807 = vadd.f32 0.0, %v3806
    %3808 = vmatmul.bf16.gmra.mxu0 %v2690
    %v3809 = vpop.f32.mrf.mxu0
    %v3810 = vadd.f32 0.0, %v3809
    %v3811 = vpop.f32.mrf.mxu0
    %v3812 = vadd.f32 0.0, %v3811
    %3813 = vmatmul.bf16.gmra.mxu0 %v955
    %v3814 = vpop.f32.mrf.mxu0
    %v3815 = vadd.f32 0.0, %v3814
    %v3816 = vpop.f32.mrf.mxu0
    %v3817 = vadd.f32 0.0, %v3816
    %3818 = vdwg.mxu0
    %v3819 = vadd.f32 %v3521, %v3660
    %v3820 = vadd.f32 %v3522, %v3662
    %v3821 = vadd.f32 %v3523, %v3665
    %v3822 = vadd.f32 %v3524, %v3667
    %v3823 = vadd.f32 %v3525, %v3670
    %v3824 = vadd.f32 %v3526, %v3672
    %v3825 = vadd.f32 %v3527, %v3675
    %v3826 = vadd.f32 %v3528, %v3677
    %v3827 = vadd.f32 %v3529, %v3680
    %v3828 = vadd.f32 %v3530, %v3682
    %v3829 = vadd.f32 %v3531, %v3685
    %v3830 = vadd.f32 %v3532, %v3687
    %v3831 = vadd.f32 %v3533, %v3690
    %v3832 = vadd.f32 %v3534, %v3692
    %v3833 = vadd.f32 %v3535, %v3695
    %v3834 = vadd.f32 %v3536, %v3697
    %v3835 = vadd.f32 %v3537, %v3700
    %v3836 = vadd.f32 %v3538, %v3702
    %v3837 = vadd.f32 %v3539, %v3705
    %v3838 = vadd.f32 %v3540, %v3707
    %v3839 = vadd.f32 %v3541, %v3710
    %v3840 = vadd.f32 %v3542, %v3712
    %v3841 = vadd.f32 %v3543, %v3715
    %v3842 = vadd.f32 %v3544, %v3717
    %v3843 = vadd.f32 %v3545, %v3720
    %v3844 = vadd.f32 %v3546, %v3722
    %v3845 = vadd.f32 %v3547, %v3725
    %v3846 = vadd.f32 %v3548, %v3727
    %v3847 = vadd.f32 %v3549, %v3730
    %v3848 = vadd.f32 %v3550, %v3732
    %v3849 = vadd.f32 %v3551, %v3735
    %v3850 = vadd.f32 %v3552, %v3737
    %v3851 = vadd.f32 %v3553, %v3740
    %v3852 = vadd.f32 %v3554, %v3742
    %v3853 = vadd.f32 %v3555, %v3745
    %v3854 = vadd.f32 %v3556, %v3747
    %v3855 = vadd.f32 %v3557, %v3750
    %v3856 = vadd.f32 %v3558, %v3752
    %v3857 = vadd.f32 %v3559, %v3755
    %v3858 = vadd.f32 %v3560, %v3757
    %v3859 = vadd.f32 %v3561, %v3760
    %v3860 = vadd.f32 %v3562, %v3762
    %v3861 = vadd.f32 %v3563, %v3765
    %v3862 = vadd.f32 %v3564, %v3767
    %v3863 = vadd.f32 %v3565, %v3770
    %v3864 = vadd.f32 %v3566, %v3772
    %v3865 = vadd.f32 %v3567, %v3775
    %v3866 = vadd.f32 %v3568, %v3777
    %v3867 = vadd.f32 %v3569, %v3780
    %v3868 = vadd.f32 %v3570, %v3782
    %v3869 = vadd.f32 %v3571, %v3785
    %v3870 = vadd.f32 %v3572, %v3787
    %v3871 = vadd.f32 %v3573, %v3790
    %v3872 = vadd.f32 %v3574, %v3792
    %v3873 = vadd.f32 %v3575, %v3795
    %v3874 = vadd.f32 %v3576, %v3797
    %v3875 = vadd.f32 %v3577, %v3800
    %v3876 = vadd.f32 %v3578, %v3802
    %v3877 = vadd.f32 %v3579, %v3805
    %v3878 = vadd.f32 %v3580, %v3807
    %v3879 = vadd.f32 %v3581, %v3810
    %v3880 = vadd.f32 %v3582, %v3812
    %v3881 = vadd.f32 %v3583, %v3815
    %v3882 = vadd.f32 %v3584, %v3817
    %v3883 = vld [vmem:[%s4] sm:$0x1]
    %v3885 = vperm.slane %v3883, 0
    %v3887 = vadd.f32 %v3819, %v3885
    %v3888 = vadd.f32 %v3820, %v3885
    %v3889 = vadd.f32 %v3821, %v3885
    %v3890 = vadd.f32 %v3822, %v3885
    %v3891 = vadd.f32 %v3823, %v3885
    %v3892 = vadd.f32 %v3824, %v3885
    %v3893 = vadd.f32 %v3825, %v3885
    %v3894 = vadd.f32 %v3826, %v3885
    %v3895 = vadd.f32 %v3827, %v3885
    %v3896 = vadd.f32 %v3828, %v3885
    %v3897 = vadd.f32 %v3829, %v3885
    %v3898 = vadd.f32 %v3830, %v3885
    %v3899 = vadd.f32 %v3831, %v3885
    %v3900 = vadd.f32 %v3832, %v3885
    %v3901 = vadd.f32 %v3833, %v3885
    %v3902 = vadd.f32 %v3834, %v3885
    %v3903 = vadd.f32 %v3835, %v3885
    %v3904 = vadd.f32 %v3836, %v3885
    %v3905 = vadd.f32 %v3837, %v3885
    %v3906 = vadd.f32 %v3838, %v3885
    %v3907 = vadd.f32 %v3839, %v3885
    %v3908 = vadd.f32 %v3840, %v3885
    %v3909 = vadd.f32 %v3841, %v3885
    %v3910 = vadd.f32 %v3842, %v3885
    %v3911 = vadd.f32 %v3843, %v3885
    %v3912 = vadd.f32 %v3844, %v3885
    %v3913 = vadd.f32 %v3845, %v3885
    %v3914 = vadd.f32 %v3846, %v3885
    %v3915 = vadd.f32 %v3847, %v3885
    %v3916 = vadd.f32 %v3848, %v3885
    %v3917 = vadd.f32 %v3849, %v3885
    %v3918 = vadd.f32 %v3850, %v3885
    %v3919 = vadd.f32 %v3851, %v3885
    %v3920 = vadd.f32 %v3852, %v3885
    %v3921 = vadd.f32 %v3853, %v3885
    %v3922 = vadd.f32 %v3854, %v3885
    %v3923 = vadd.f32 %v3855, %v3885
    %v3924 = vadd.f32 %v3856, %v3885
    %v3925 = vadd.f32 %v3857, %v3885
    %v3926 = vadd.f32 %v3858, %v3885
    %v3927 = vadd.f32 %v3859, %v3885
    %v3928 = vadd.f32 %v3860, %v3885
    %v3929 = vadd.f32 %v3861, %v3885
    %v3930 = vadd.f32 %v3862, %v3885
    %v3931 = vadd.f32 %v3863, %v3885
    %v3932 = vadd.f32 %v3864, %v3885
    %v3933 = vadd.f32 %v3865, %v3885
    %v3934 = vadd.f32 %v3866, %v3885
    %v3935 = vadd.f32 %v3867, %v3885
    %v3936 = vadd.f32 %v3868, %v3885
    %v3937 = vadd.f32 %v3869, %v3885
    %v3938 = vadd.f32 %v3870, %v3885
    %v3939 = vadd.f32 %v3871, %v3885
    %v3940 = vadd.f32 %v3872, %v3885
    %v3941 = vadd.f32 %v3873, %v3885
    %v3942 = vadd.f32 %v3874, %v3885
    %v3943 = vadd.f32 %v3875, %v3885
    %v3944 = vadd.f32 %v3876, %v3885
    %v3945 = vadd.f32 %v3877, %v3885
    %v3946 = vadd.f32 %v3878, %v3885
    %v3947 = vadd.f32 %v3879, %v3885
    %v3948 = vadd.f32 %v3880, %v3885
    %v3949 = vadd.f32 %v3881, %v3885
    %v3950 = vadd.f32 %v3882, %v3885
    %v3951 = vmax.f32 %v3887, 0.0
    %v3952 = vmax.f32 %v3888, 0.0
    %v3953 = vmax.f32 %v3889, 0.0
    %v3954 = vmax.f32 %v3890, 0.0
    %v3955 = vmax.f32 %v3891, 0.0
    %v3956 = vmax.f32 %v3892, 0.0
    %v3957 = vmax.f32 %v3893, 0.0
    %v3958 = vmax.f32 %v3894, 0.0
    %v3959 = vmax.f32 %v3895, 0.0
    %v3960 = vmax.f32 %v3896, 0.0
    %v3961 = vmax.f32 %v3897, 0.0
    %v3962 = vmax.f32 %v3898, 0.0
    %v3963 = vmax.f32 %v3899, 0.0
    %v3964 = vmax.f32 %v3900, 0.0
    %v3965 = vmax.f32 %v3901, 0.0
    %v3966 = vmax.f32 %v3902, 0.0
    %v3967 = vmax.f32 %v3903, 0.0
    %v3968 = vmax.f32 %v3904, 0.0
    %v3969 = vmax.f32 %v3905, 0.0
    %v3970 = vmax.f32 %v3906, 0.0
    %v3971 = vmax.f32 %v3907, 0.0
    %v3972 = vmax.f32 %v3908, 0.0
    %v3973 = vmax.f32 %v3909, 0.0
    %v3974 = vmax.f32 %v3910, 0.0
    %v3975 = vmax.f32 %v3911, 0.0
    %v3976 = vmax.f32 %v3912, 0.0
    %v3977 = vmax.f32 %v3913, 0.0
    %v3978 = vmax.f32 %v3914, 0.0
    %v3979 = vmax.f32 %v3915, 0.0
    %v3980 = vmax.f32 %v3916, 0.0
    %v3981 = vmax.f32 %v3917, 0.0
    %v3982 = vmax.f32 %v3918, 0.0
    %v3983 = vmax.f32 %v3919, 0.0
    %v3984 = vmax.f32 %v3920, 0.0
    %v3985 = vmax.f32 %v3921, 0.0
    %v3986 = vmax.f32 %v3922, 0.0
    %v3987 = vmax.f32 %v3923, 0.0
    %v3988 = vmax.f32 %v3924, 0.0
    %v3989 = vmax.f32 %v3925, 0.0
    %v3990 = vmax.f32 %v3926, 0.0
    %v3991 = vmax.f32 %v3927, 0.0
    %v3992 = vmax.f32 %v3928, 0.0
    %v3993 = vmax.f32 %v3929, 0.0
    %v3994 = vmax.f32 %v3930, 0.0
    %v3995 = vmax.f32 %v3931, 0.0
    %v3996 = vmax.f32 %v3932, 0.0
    %v3997 = vmax.f32 %v3933, 0.0
    %v3998 = vmax.f32 %v3934, 0.0
    %v3999 = vmax.f32 %v3935, 0.0
    %v4000 = vmax.f32 %v3936, 0.0
    %v4001 = vmax.f32 %v3937, 0.0
    %v4002 = vmax.f32 %v3938, 0.0
    %v4003 = vmax.f32 %v3939, 0.0
    %v4004 = vmax.f32 %v3940, 0.0
    %v4005 = vmax.f32 %v3941, 0.0
    %v4006 = vmax.f32 %v3942, 0.0
    %v4007 = vmax.f32 %v3943, 0.0
    %v4008 = vmax.f32 %v3944, 0.0
    %v4009 = vmax.f32 %v3945, 0.0
    %v4010 = vmax.f32 %v3946, 0.0
    %v4011 = vmax.f32 %v3947, 0.0
    %v4012 = vmax.f32 %v3948, 0.0
    %v4013 = vmax.f32 %v3949, 0.0
    %v4014 = vmax.f32 %v3950, 0.0
    %4015 = vst [vmem:[#allocation2] sm:$0xff] %v3951
    %4016 = vst [vmem:[#allocation2 + $0x8] sm:$0xff] %v3952
    %4017 = vst [vmem:[#allocation2 + $0x10] sm:$0xff] %v3953
    %4018 = vst [vmem:[#allocation2 + $0x18] sm:$0xff] %v3954
    %4019 = vst [vmem:[#allocation2 + $0x20] sm:$0xff] %v3955
    %4020 = vst [vmem:[#allocation2 + $0x28] sm:$0xff] %v3956
    %4021 = vst [vmem:[#allocation2 + $0x30] sm:$0xff] %v3957
    %4022 = vst [vmem:[#allocation2 + $0x38] sm:$0xff] %v3958
    %4023 = vst [vmem:[#allocation2 + $0x40] sm:$0xff] %v3959
    %4024 = vst [vmem:[#allocation2 + $0x48] sm:$0xff] %v3960
    %4025 = vst [vmem:[#allocation2 + $0x50] sm:$0xff] %v3961
    %4026 = vst [vmem:[#allocation2 + $0x58] sm:$0xff] %v3962
    %4027 = vst [vmem:[#allocation2 + $0x60] sm:$0xff] %v3963
    %4028 = vst [vmem:[#allocation2 + $0x68] sm:$0xff] %v3964
    %4029 = vst [vmem:[#allocation2 + $0x70] sm:$0xff] %v3965
    %4030 = vst [vmem:[#allocation2 + $0x78] sm:$0xff] %v3966
    %4031 = vst [vmem:[#allocation2 + $0x80] sm:$0xff] %v3967
    %4032 = vst [vmem:[#allocation2 + $0x88] sm:$0xff] %v3968
    %4033 = vst [vmem:[#allocation2 + $0x90] sm:$0xff] %v3969
    %4034 = vst [vmem:[#allocation2 + $0x98] sm:$0xff] %v3970
    %4035 = vst [vmem:[#allocation2 + $0xa0] sm:$0xff] %v3971
    %4036 = vst [vmem:[#allocation2 + $0xa8] sm:$0xff] %v3972
    %4037 = vst [vmem:[#allocation2 + $0xb0] sm:$0xff] %v3973
    %4038 = vst [vmem:[#allocation2 + $0xb8] sm:$0xff] %v3974
    %4039 = vst [vmem:[#allocation2 + $0xc0] sm:$0xff] %v3975
    %4040 = vst [vmem:[#allocation2 + $0xc8] sm:$0xff] %v3976
    %4041 = vst [vmem:[#allocation2 + $0xd0] sm:$0xff] %v3977
    %4042 = vst [vmem:[#allocation2 + $0xd8] sm:$0xff] %v3978
    %4043 = vst [vmem:[#allocation2 + $0xe0] sm:$0xff] %v3979
    %4044 = vst [vmem:[#allocation2 + $0xe8] sm:$0xff] %v3980
    %4045 = vst [vmem:[#allocation2 + $0xf0] sm:$0xff] %v3981
    %4046 = vst [vmem:[#allocation2 + $0xf8] sm:$0xff] %v3982
    %4047 = vst [vmem:[#allocation2 + $0x100] sm:$0xff] %v3983
    %4048 = vst [vmem:[#allocation2 + $0x108] sm:$0xff] %v3984
    %4049 = vst [vmem:[#allocation2 + $0x110] sm:$0xff] %v3985
    %4050 = vst [vmem:[#allocation2 + $0x118] sm:$0xff] %v3986
    %4051 = vst [vmem:[#allocation2 + $0x120] sm:$0xff] %v3987
    %4052 = vst [vmem:[#allocation2 + $0x128] sm:$0xff] %v3988
    %4053 = vst [vmem:[#allocation2 + $0x130] sm:$0xff] %v3989
    %4054 = vst [vmem:[#allocation2 + $0x138] sm:$0xff] %v3990
    %4055 = vst [vmem:[#allocation2 + $0x140] sm:$0xff] %v3991
    %4056 = vst [vmem:[#allocation2 + $0x148] sm:$0xff] %v3992
    %4057 = vst [vmem:[#allocation2 + $0x150] sm:$0xff] %v3993
    %4058 = vst [vmem:[#allocation2 + $0x158] sm:$0xff] %v3994
    %4059 = vst [vmem:[#allocation2 + $0x160] sm:$0xff] %v3995
    %4060 = vst [vmem:[#allocation2 + $0x168] sm:$0xff] %v3996
    %4061 = vst [vmem:[#allocation2 + $0x170] sm:$0xff] %v3997
    %4062 = vst [vmem:[#allocation2 + $0x178] sm:$0xff] %v3998
    %4063 = vst [vmem:[#allocation2 + $0x180] sm:$0xff] %v3999
    %4064 = vst [vmem:[#allocation2 + $0x188] sm:$0xff] %v4000
    %4065 = vst [vmem:[#allocation2 + $0x190] sm:$0xff] %v4001
    %4066 = vst [vmem:[#allocation2 + $0x198] sm:$0xff] %v4002
    %4067 = vst [vmem:[#allocation2 + $0x1a0] sm:$0xff] %v4003
    %4068 = vst [vmem:[#allocation2 + $0x1a8] sm:$0xff] %v4004
    %4069 = vst [vmem:[#allocation2 + $0x1b0] sm:$0xff] %v4005
    %4070 = vst [vmem:[#allocation2 + $0x1b8] sm:$0xff] %v4006
    %4071 = vst [vmem:[#allocation2 + $0x1c0] sm:$0xff] %v4007
    %4072 = vst [vmem:[#allocation2 + $0x1c8] sm:$0xff] %v4008
    %4073 = vst [vmem:[#allocation2 + $0x1d0] sm:$0xff] %v4009
    %4074 = vst [vmem:[#allocation2 + $0x1d8] sm:$0xff] %v4010
    %4075 = vst [vmem:[#allocation2 + $0x1e0] sm:$0xff] %v4011
    %4076 = vst [vmem:[#allocation2 + $0x1e8] sm:$0xff] %v4012
    %4077 = vst [vmem:[#allocation2 + $0x1f0] sm:$0xff] %v4013
    %4078 = vst [vmem:[#allocation2 + $0x1f8] sm:$0xff] %v4014
    // Predicated region
    $region22: #{fuse_forward.1} parent=1 // pred_check
      _
    $region23: #{fuse_forward.1} parent=1 // pred_check_branch
      %4080 = sbr.rel (0) target = $region25
    $region24: #{fuse_forward.1} parent=1 // pred_region
      %4082 = vsyncadd [#allocation3], 0
      %s4083 = sshll.u32 [#allocation2], 4
      %s4084 = int_to_ptr.vmem [resolvable:$true] %s4083
      %s4085 = sshll.u32 %s5, 4
      %s4086 = int_to_ptr.hbm [resolvable:$true] %s4085
      %4091 = dma.vmem_to_hbm [thread:$0]  %s4084, 8192, %s4086, [#allocation3], 128, 128, 8
    $region25: #{fuse_forward.1} parent=1 // pred_fallthru
      _
    // Predicated region
    $region26: #{fuse_forward.1} parent=1 // pred_check
      _
    $region27: #{fuse_forward.1} parent=1 // pred_check_branch
      %4093 = sbr.rel (0) target = $region29
    $region28: #{fuse_forward.1} parent=1 // pred_region
      %4095 = dma.done [#allocation3], 8192
    $region29: #{fuse_forward.1} parent=1 // pred_fallthru
      _
    %4096 = vsyncpa [#allocation3], 1

</llo_original>
